<compile_context>
chip_gen: v7x
topology: tpu7x:2x2x1
jax: 0.10.0
libtpu: 0.0.40
codegen_flags: <defaults>
</compile_context>

<pallas_src>
import functools

import jax
import jax.numpy as jnp
from jax import lax
from jax.experimental import pallas as pl
from jax.experimental.pallas import tpu as pltpu


# ----------------------------------------------------------------------------
# Fused kernel: conv1 (+ReLU) -> conv2 -> SE -> * scale + residual
# ----------------------------------------------------------------------------
def _residual_block_kernel(x_ref, t1_ref, b1_ref, t2_ref, b2_ref,
                           f1w_ref, f1b_ref, f2w_ref, f2b_ref,
                           o_ref, xpad_ref, ypad_ref,
                           *, f_sz, dilate, pad, inv_hw):
    # x_ref   : (Nb, H, W*Cin)   lane-dense input slab (residual source)
    # t1_ref  : (f_sz, W*Cin, W*f_ch)   column-Toeplitz conv1 weights (compute dtype)
    # b1_ref  : (1, W*f_ch)      lane-dense tiled conv1 bias (f32)
    # t2_ref  : (f_sz, W*f_ch, W*Cin)   column-Toeplitz conv2 weights
    # b2_ref  : (1, W*Cin)
    # f1w_ref : (Cr, Cin)  SE fc1 weight (out x in), f1b_ref : (1, Cr)
    # f2w_ref : (Cr, Cin)  SE fc2 weight transposed (in x out -> Cr x Cin), f2b_ref : (1, Cin)
    # o_ref   : (Nb, H, W*Cin)   lane-dense output slab
    # xpad_ref: (Nb, H+2p, W*Cin)  VMEM scratch (row-padded input, compute dtype)
    # ypad_ref: (Nb, H+2p, W*f_ch) VMEM scratch (row-padded conv1 output, compute dtype)
    nb, H, WCi = x_ref.shape
    WCo = ypad_ref.shape[2]
    cdt = xpad_ref.dtype

    # ---- stage the input into the row-padded scratch; zero ONLY the halo rows.
    zx = jnp.zeros((nb, pad, WCi), cdt)
    xpad_ref[:, :pad, :] = zx
    xpad_ref[:, pad + H:, :] = zx
    xpad_ref[:, pad:pad + H, :] = x_ref[...].astype(cdt)

    def conv(src_ref, t_ref, b_row, K, Nc):
        # f_sz accumulating MXU dots; W-padding lives inside the Toeplitz weights,
        # so every operand stays lane-dense (rows, W*C) with no relayout.
        acc = jnp.zeros((nb * H, Nc), jnp.float32)
        for kh in range(f_sz):
            r0 = kh * dilate
            slab = src_ref[:, r0:r0 + H, :].reshape(nb * H, K)
            acc += jnp.dot(slab, t_ref[kh], preferred_element_type=jnp.float32)
        return acc + b_row

    # ---- conv1 + fused ReLU, re-pad into ypad (halo-only zeroing).
    y1 = jnp.maximum(conv(xpad_ref, t1_ref, b1_ref[...], WCi, WCo), 0.0)
    zy = jnp.zeros((nb, pad, WCo), cdt)
    ypad_ref[:, :pad, :] = zy
    ypad_ref[:, pad + H:, :] = zy
    ypad_ref[:, pad:pad + H, :] = y1.reshape(nb, H, WCo).astype(cdt)

    # ---- conv2 (f32 accumulation), kept in the lane-dense layout.
    y2 = conv(ypad_ref, t2_ref, b2_ref[...], WCo, WCi).reshape(nb, H, WCi)

    # ---- SE layer: global avg-pool + two tiny FCs on the VPU/XLU.
    Ci = f1w_ref.shape[1]
    W = WCi // Ci
    sum_h = jnp.sum(y2, axis=1)                                    # (Nb, W*Cin)
    pooled = jnp.sum(sum_h.reshape(nb, W, Ci), axis=1) * inv_hw    # (Nb, Cin)  (tiny relayout)
    h = jnp.sum(pooled[:, None, :] * f1w_ref[...][None, :, :], axis=2) + f1b_ref[...]
    h = jnp.maximum(h, 0.0)                                        # (Nb, Cr)
    s = jax.nn.sigmoid(
        jnp.sum(h[:, :, None] * f2w_ref[...][None, :, :], axis=1) + f2b_ref[...])  # (Nb, Cin)
    s_lane = jnp.tile(s, (1, W))                                   # (Nb, W*Cin) lane-dense scale

    # ---- scale + residual + store, all in the lane-dense output layout.
    out = y2 * s_lane[:, None, :] + x_ref[...].astype(jnp.float32)
    o_ref[...] = out.astype(o_ref.dtype)


# ----------------------------------------------------------------------------
# Wrapper
# ----------------------------------------------------------------------------
def _toeplitz(w, pad, dilate, W, dtype):
    # w: (f, f, Cin, Cout) -> (f, W*Cin, W*Cout) with
    #   T[kh, q*Cin + c, wo*Cout + o] = w[kh, kw, c, o]  where q = wo + kw*dilate - pad,
    # entries with q outside [0, W) dropped (== zero padding along W).
    f, _, Ci, Co = w.shape
    ts = []
    for kh in range(f):
        t = jnp.zeros((W * Ci, W * Co), jnp.float32)
        for kw in range(f):
            shift = jnp.eye(W, W, k=-(kw * dilate - pad), dtype=jnp.float32)
            t = t + jnp.kron(shift, w[kh, kw].astype(jnp.float32))
        ts.append(t)
    return jnp.stack(ts).astype(dtype)


def _pick_block_n(N):
    # Amortize per-step overhead, but keep grid length >= 2 so both v7x TCs get work.
    for nb in (8, 4, 2):
        if N % nb == 0 and N // nb >= 2:
            return nb
    return 1


def residual_block_pallas(x_nchw, p, *, dilate=1, f_sz=3,
                          compute_dtype=jnp.bfloat16, block_n=None):
    N, Cin, H, W = x_nchw.shape
    KH, KW, _, f_ch = p["conv1_w"].shape
    assert (KH, KW) == (f_sz, f_sz)
    assert f_sz % 2 == 1, "odd kernel size required for PyTorch-parity 'same' padding"
    pad = f_sz // 2 + dilate - 1
    assert 2 * pad == dilate * (f_sz - 1), "residual add needs output size == input size"
    Cr = p["fc1_w"].shape[0]
    Hp = H + 2 * pad
    WCi, WCo = W * Cin, W * f_ch

    nb = block_n if block_n is not None else _pick_block_n(N)
    assert N % nb == 0

    # NCHW -> lane-dense (N, H, W*Cin) slab at the boundary (last dim is a multiple of 128).
    x = jnp.transpose(x_nchw, (0, 2, 3, 1)).reshape(N, H, WCi)

    # Column-Toeplitz conv weights (compute dtype) + lane-dense tiled biases (f32).
    t1 = _toeplitz(p["conv1_w"], pad, dilate, W, compute_dtype)   # (f, W*Cin, W*f_ch)
    t2 = _toeplitz(p["conv2_w"], pad, dilate, W, compute_dtype)   # (f, W*f_ch, W*Cin)
    b1t = jnp.tile(p["conv1_b"].astype(jnp.float32), W).reshape(1, WCo)
    b2t = jnp.tile(p["conv2_b"].astype(jnp.float32), W).reshape(1, WCi)
    f1w = p["fc1_w"].astype(jnp.float32)                 # (Cr, Cin)
    f1b = p["fc1_b"].reshape(1, Cr).astype(jnp.float32)
    f2w = p["fc2_w"].T.astype(jnp.float32)               # (Cr, Cin)
    f2b = p["fc2_b"].reshape(1, Cin).astype(jnp.float32)

    kernel = functools.partial(_residual_block_kernel, f_sz=f_sz, dilate=dilate,
                               pad=pad, inv_hw=1.0 / (H * W))

    cdt_bytes = jnp.dtype(compute_dtype).itemsize
    weight_bytes = (t1.size + t2.size) * cdt_bytes
    scratch_bytes = nb * Hp * (WCi + WCo) * cdt_bytes
    io_block_bytes = 2 * nb * H * WCi * x_nchw.dtype.itemsize
    vmem_limit = int(min(max(2 * (weight_bytes + io_block_bytes) + scratch_bytes + (8 << 20),
                             32 << 20), 64 << 20))
    flops = 2 * N * f_sz * H * (WCi * WCo + WCo * WCi)            # MXU flops (incl. Toeplitz)
    bytes_accessed = 2 * N * H * WCi * x_nchw.dtype.itemsize + weight_bytes

    out = pl.pallas_call(
        kernel,
        out_shape=jax.ShapeDtypeStruct((N, H, WCi), x_nchw.dtype),
        grid=(N // nb,),
        in_specs=[
            pl.BlockSpec((nb, H, WCi), lambda n: (n, 0, 0)),
            pl.BlockSpec((f_sz, WCi, WCo), lambda n: (0, 0, 0)),
            pl.BlockSpec((1, WCo), lambda n: (0, 0)),
            pl.BlockSpec((f_sz, WCo, WCi), lambda n: (0, 0, 0)),
            pl.BlockSpec((1, WCi), lambda n: (0, 0)),
            pl.BlockSpec((Cr, Cin), lambda n: (0, 0)),
            pl.BlockSpec((1, Cr), lambda n: (0, 0)),
            pl.BlockSpec((Cr, Cin), lambda n: (0, 0)),
            pl.BlockSpec((1, Cin), lambda n: (0, 0)),
        ],
        out_specs=pl.BlockSpec((nb, H, WCi), lambda n: (n, 0, 0)),
        scratch_shapes=[
            pltpu.VMEM((nb, Hp, WCi), compute_dtype),
            pltpu.VMEM((nb, Hp, WCo), compute_dtype),
        ],
        compiler_params=pltpu.CompilerParams(
            dimension_semantics=("parallel",),
            vmem_limit_bytes=vmem_limit),
        cost_estimate=pl.CostEstimate(flops=int(flops), transcendentals=int(N * Cin),
                                      bytes_accessed=int(bytes_accessed)),
    )(x, t1, b1t, t2, b2t, f1w, f1b, f2w, f2b)

    # lane-dense (N, H, W*C) slab -> NHWC -> NCHW
    return jnp.transpose(out.reshape(N, H, W, Cin), (0, 3, 1, 2))


# ----------------------------------------------------------------------------
# Parameter init (synthetic, deterministic)
# ----------------------------------------------------------------------------
def init_params(key, in_ch, f_ch, f_sz, reduction=16):
    ks = jax.random.split(key, 8)
    scale = 0.1
    red = max(in_ch // reduction, 1)
    return {
        "conv1_w": scale * jax.random.normal(ks[0], (f_sz, f_sz, in_ch, f_ch), jnp.float32),
        "conv1_b": scale * jax.random.normal(ks[1], (f_ch,), jnp.float32),
        "conv2_w": scale * jax.random.normal(ks[2], (f_sz, f_sz, f_ch, in_ch), jnp.float32),
        "conv2_b": scale * jax.random.normal(ks[3], (in_ch,), jnp.float32),
        "fc1_w": scale * jax.random.normal(ks[4], (red, in_ch), jnp.float32),   # (out, in)
        "fc1_b": scale * jax.random.normal(ks[5], (red,), jnp.float32),
        "fc2_w": scale * jax.random.normal(ks[6], (in_ch, red), jnp.float32),   # (out, in)
        "fc2_b": scale * jax.random.normal(ks[7], (in_ch,), jnp.float32),
    }


# ----------------------------------------------------------------------------
# Pure-JAX reference (mirrors the PyTorch module) for correctness checks
# ----------------------------------------------------------------------------
def residual_block_ref(x_nchw, p, *, dilate=1, f_sz=3):
    x = jnp.transpose(x_nchw, (0, 2, 3, 1))
    pad = f_sz // 2 + dilate - 1
    dn = ("NHWC", "HWIO", "NHWC")

    def conv(v, w, b):
        return lax.conv_general_dilated(
            v, w, window_strides=(1, 1), padding=[(pad, pad), (pad, pad)],
            rhs_dilation=(dilate, dilate), dimension_numbers=dn) + b[None, None, None, :]

    out = jnp.maximum(conv(x, p["conv1_w"], p["conv1_b"]), 0.0)
    out = conv(out, p["conv2_w"], p["conv2_b"])
    pooled = jnp.mean(out, axis=(1, 2))                            # (N, C)
    h = jnp.maximum(pooled @ p["fc1_w"].T + p["fc1_b"], 0.0)
    s = jax.nn.sigmoid(h @ p["fc2_w"].T + p["fc2_b"])              # (N, C)
    out = out * s[:, None, None, :] + x
    return jnp.transpose(out, (0, 3, 1, 2))


if __name__ == "__main__":
    # in_ch must be >= 16 so SELayer's channel // 16 >= 1 (as in the PyTorch module).
    N, in_ch, H, W = 2, 16, 16, 16
    f_ch, f_sz, dilate = 32, 3, 1

    key = jax.random.PRNGKey(0)
    kx, kp = jax.random.split(key)
    x = jax.random.normal(kx, (N, in_ch, H, W), jnp.float32)       # PyTorch NCHW input
    params = init_params(kp, in_ch, f_ch, f_sz)

    fwd = jax.jit(residual_block_pallas,
                  static_argnames=("dilate", "f_sz", "compute_dtype", "block_n"))
    ref = jax.block_until_ready(residual_block_ref(x, params, dilate=dilate, f_sz=f_sz))

    # f32 MXU operands: tight check against the XLA reference.
    out = jax.block_until_ready(
        fwd(x, params, dilate=dilate, f_sz=f_sz, compute_dtype=jnp.float32))
    assert out.shape == x.shape and out.dtype == x.dtype
    assert jnp.allclose(out, ref, atol=1e-3, rtol=1e-3), float(jnp.max(jnp.abs(out - ref)))

    # bf16 MXU operands + bf16 scratch (v6e/v7x fast path): f32 accumulation bounds the error.
    out_bf16 = jax.block_until_ready(
        fwd(x, params, dilate=dilate, f_sz=f_sz, compute_dtype=jnp.bfloat16))
    assert jnp.allclose(out_bf16, ref, atol=1e-1, rtol=1e-1), \
        float(jnp.max(jnp.abs(out_bf16 - ref)))

    print("KERNEL_OK")
</pallas_src>

<mosaic_0001>
module attributes {stable_mosaic.version = 11 : i64} {
  func.func @_residual_block_kernel(%arg0: i32, %arg1: memref<1x16x256xf32, #tpu.memory_space<vmem>>, %arg2: memref<3x256x512xf32, #tpu.memory_space<vmem>>, %arg3: memref<1x512xf32, #tpu.memory_space<vmem>>, %arg4: memref<3x512x256xf32, #tpu.memory_space<vmem>>, %arg5: memref<1x256xf32, #tpu.memory_space<vmem>>, %arg6: memref<1x16xf32, #tpu.memory_space<vmem>>, %arg7: memref<1x1xf32, #tpu.memory_space<vmem>>, %arg8: memref<1x16xf32, #tpu.memory_space<vmem>>, %arg9: memref<1x16xf32, #tpu.memory_space<vmem>>, %arg10: memref<1x16x256xf32, #tpu.memory_space<vmem>>, %arg11: memref<1x18x256xf32, #tpu.memory_space<vmem>>, %arg12: memref<1x18x512xf32, #tpu.memory_space<vmem>>) attributes {dimension_semantics = [#tpu.dimension_semantics<parallel>], iteration_bounds = array<i64: 2>, scalar_prefetch = 0 : i64, scratch_operands = 2 : i64, tpu.core_type = #tpu.core_type<tc>, window_params = [{transform_indices = @transform_0, window_bounds = array<i64: 1, 16, 256>}, {pipeline_mode = #tpu.pipeline_mode<synchronous>, transform_indices = @transform_1, window_bounds = array<i64: 3, 256, 512>}, {pipeline_mode = #tpu.pipeline_mode<synchronous>, transform_indices = @transform_2, window_bounds = array<i64: 1, 512>}, {pipeline_mode = #tpu.pipeline_mode<synchronous>, transform_indices = @transform_3, window_bounds = array<i64: 3, 512, 256>}, {pipeline_mode = #tpu.pipeline_mode<synchronous>, transform_indices = @transform_4, window_bounds = array<i64: 1, 256>}, {pipeline_mode = #tpu.pipeline_mode<synchronous>, transform_indices = @transform_5, window_bounds = array<i64: 1, 16>}, {pipeline_mode = #tpu.pipeline_mode<synchronous>, transform_indices = @transform_6, window_bounds = array<i64: 1, 1>}, {pipeline_mode = #tpu.pipeline_mode<synchronous>, transform_indices = @transform_7, window_bounds = array<i64: 1, 16>}, {pipeline_mode = #tpu.pipeline_mode<synchronous>, transform_indices = @transform_8, window_bounds = array<i64: 1, 16>}, {transform_indices = @transform_9, window_bounds = array<i64: 1, 16, 256>}]} {
    %cst = arith.constant 0.000000e+00 : f32
    %0 = vector.broadcast %cst : f32 to vector<1x1x256xf32>
    %c0 = arith.constant 0 : index
    %c0_0 = arith.constant 0 : index
    %c0_1 = arith.constant 0 : index
    %1 = vector.load %arg11[%c0, %c0_0, %c0_1] : memref<1x18x256xf32, #tpu.memory_space<vmem>>, vector<1x1x256xf32>
    tpu.vector_store %arg11[%c0, %c0_0, %c0_1], %0 {strides = array<i32>} : memref<1x18x256xf32, #tpu.memory_space<vmem>>, vector<1x1x256xf32>,
    %c0_2 = arith.constant 0 : index
    %c17 = arith.constant 17 : index
    %c0_3 = arith.constant 0 : index
    %2 = vector.load %arg11[%c0_2, %c17, %c0_3] : memref<1x18x256xf32, #tpu.memory_space<vmem>>, vector<1x1x256xf32>
    tpu.vector_store %arg11[%c0_2, %c17, %c0_3], %0 {strides = array<i32>} : memref<1x18x256xf32, #tpu.memory_space<vmem>>, vector<1x1x256xf32>,
    %c0_4 = arith.constant 0 : index
    %c0_5 = arith.constant 0 : index
    %c0_6 = arith.constant 0 : index
    %3 = vector.load %arg1[%c0_4, %c0_5, %c0_6] : memref<1x16x256xf32, #tpu.memory_space<vmem>>, vector<1x16x256xf32>
    %c0_7 = arith.constant 0 : index
    %c1 = arith.constant 1 : index
    %c0_8 = arith.constant 0 : index
    %4 = vector.load %arg11[%c0_7, %c1, %c0_8] : memref<1x18x256xf32, #tpu.memory_space<vmem>>, vector<1x16x256xf32>
    tpu.vector_store %arg11[%c0_7, %c1, %c0_8], %3 {strides = array<i32>} : memref<1x18x256xf32, #tpu.memory_space<vmem>>, vector<1x16x256xf32>,
    %c0_9 = arith.constant 0 : index
    %c0_10 = arith.constant 0 : index
    %5 = vector.load %arg3[%c0_9, %c0_10] : memref<1x512xf32, #tpu.memory_space<vmem>>, vector<1x512xf32>
    %cst_11 = arith.constant 0.000000e+00 : f32
    %6 = vector.broadcast %cst_11 : f32 to vector<16x512xf32>
    %c0_12 = arith.constant 0 : index
    %c0_13 = arith.constant 0 : index
    %c0_14 = arith.constant 0 : index
    %7 = vector.load %arg11[%c0_12, %c0_13, %c0_14] : memref<1x18x256xf32, #tpu.memory_space<vmem>>, vector<1x16x256xf32>
    %8 = vector.shape_cast %7 : vector<1x16x256xf32> to vector<16x256xf32>
    %c0_15 = arith.constant 0 : index
    %c0_16 = arith.constant 0 : index
    %c0_17 = arith.constant 0 : index
    %9 = vector.load %arg2[%c0_15, %c0_16, %c0_17] : memref<3x256x512xf32, #tpu.memory_space<vmem>>, vector<1x256x512xf32>
    %10 = vector.shape_cast %9 : vector<1x256x512xf32> to vector<256x512xf32>
    %cst_18 = arith.constant dense<0.000000e+00> : vector<16x512xf32>
    %11 = tpu.matmul %8, %10, %cst_18 {dimension_numbers = #tpu.dot_dimension_numbers<[1], [0], [0], [1], [0, 0, 1, 1], [], []>} : vector<16x256xf32>, vector<256x512xf32>, vector<16x512xf32> -> vector<16x512xf32>
    %12 = arith.addf %6, %11 : vector<16x512xf32>
    %c0_19 = arith.constant 0 : index
    %c1_20 = arith.constant 1 : index
    %c0_21 = arith.constant 0 : index
    %13 = vector.load %arg11[%c0_19, %c1_20, %c0_21] : memref<1x18x256xf32, #tpu.memory_space<vmem>>, vector<1x16x256xf32>
    %14 = vector.shape_cast %13 : vector<1x16x256xf32> to vector<16x256xf32>
    %c1_22 = arith.constant 1 : index
    %c0_23 = arith.constant 0 : index
    %c0_24 = arith.constant 0 : index
    %15 = vector.load %arg2[%c1_22, %c0_23, %c0_24] : memref<3x256x512xf32, #tpu.memory_space<vmem>>, vector<1x256x512xf32>
    %16 = vector.shape_cast %15 : vector<1x256x512xf32> to vector<256x512xf32>
    %cst_25 = arith.constant dense<0.000000e+00> : vector<16x512xf32>
    %17 = tpu.matmul %14, %16, %cst_25 {dimension_numbers = #tpu.dot_dimension_numbers<[1], [0], [0], [1], [0, 0, 1, 1], [], []>} : vector<16x256xf32>, vector<256x512xf32>, vector<16x512xf32> -> vector<16x512xf32>
    %18 = arith.addf %12, %17 : vector<16x512xf32>
    %c0_26 = arith.constant 0 : index
    %c2 = arith.constant 2 : index
    %c0_27 = arith.constant 0 : index
    %19 = vector.load %arg11[%c0_26, %c2, %c0_27] : memref<1x18x256xf32, #tpu.memory_space<vmem>>, vector<1x16x256xf32>
    %20 = vector.shape_cast %19 : vector<1x16x256xf32> to vector<16x256xf32>
    %c2_28 = arith.constant 2 : index
    %c0_29 = arith.constant 0 : index
    %c0_30 = arith.constant 0 : index
    %21 = vector.load %arg2[%c2_28, %c0_29, %c0_30] : memref<3x256x512xf32, #tpu.memory_space<vmem>>, vector<1x256x512xf32>
    %22 = vector.shape_cast %21 : vector<1x256x512xf32> to vector<256x512xf32>
    %cst_31 = arith.constant dense<0.000000e+00> : vector<16x512xf32>
    %23 = tpu.matmul %20, %22, %cst_31 {dimension_numbers = #tpu.dot_dimension_numbers<[1], [0], [0], [1], [0, 0, 1, 1], [], []>} : vector<16x256xf32>, vector<256x512xf32>, vector<16x512xf32> -> vector<16x512xf32>
    %24 = arith.addf %18, %23 : vector<16x512xf32>
    %25 = vector.broadcast %5 : vector<1x512xf32> to vector<16x512xf32>
    %26 = arith.addf %24, %25 : vector<16x512xf32>
    %cst_32 = arith.constant 0.000000e+00 : f32
    %27 = vector.broadcast %cst_32 : f32 to vector<16x512xf32>
    %28 = arith.maximumf %26, %27 : vector<16x512xf32>
    %cst_33 = arith.constant 0.000000e+00 : f32
    %29 = vector.broadcast %cst_33 : f32 to vector<1x1x512xf32>
    %c0_34 = arith.constant 0 : index
    %c0_35 = arith.constant 0 : index
    %c0_36 = arith.constant 0 : index
    %30 = vector.load %arg12[%c0_34, %c0_35, %c0_36] : memref<1x18x512xf32, #tpu.memory_space<vmem>>, vector<1x1x512xf32>
    tpu.vector_store %arg12[%c0_34, %c0_35, %c0_36], %29 {strides = array<i32>} : memref<1x18x512xf32, #tpu.memory_space<vmem>>, vector<1x1x512xf32>,
    %c0_37 = arith.constant 0 : index
    %c17_38 = arith.constant 17 : index
    %c0_39 = arith.constant 0 : index
    %31 = vector.load %arg12[%c0_37, %c17_38, %c0_39] : memref<1x18x512xf32, #tpu.memory_space<vmem>>, vector<1x1x512xf32>
    tpu.vector_store %arg12[%c0_37, %c17_38, %c0_39], %29 {strides = array<i32>} : memref<1x18x512xf32, #tpu.memory_space<vmem>>, vector<1x1x512xf32>,
    %32 = vector.shape_cast %28 : vector<16x512xf32> to vector<1x16x512xf32>
    %c0_40 = arith.constant 0 : index
    %c1_41 = arith.constant 1 : index
    %c0_42 = arith.constant 0 : index
    %33 = vector.load %arg12[%c0_40, %c1_41, %c0_42] : memref<1x18x512xf32, #tpu.memory_space<vmem>>, vector<1x16x512xf32>
    tpu.vector_store %arg12[%c0_40, %c1_41, %c0_42], %32 {strides = array<i32>} : memref<1x18x512xf32, #tpu.memory_space<vmem>>, vector<1x16x512xf32>,
    %c0_43 = arith.constant 0 : index
    %c0_44 = arith.constant 0 : index
    %34 = vector.load %arg5[%c0_43, %c0_44] : memref<1x256xf32, #tpu.memory_space<vmem>>, vector<1x256xf32>
    %cst_45 = arith.constant 0.000000e+00 : f32
    %35 = vector.broadcast %cst_45 : f32 to vector<16x256xf32>
    %c0_46 = arith.constant 0 : index
    %c0_47 = arith.constant 0 : index
    %c0_48 = arith.constant 0 : index
    %36 = vector.load %arg12[%c0_46, %c0_47, %c0_48] : memref<1x18x512xf32, #tpu.memory_space<vmem>>, vector<1x16x512xf32>
    %37 = vector.shape_cast %36 : vector<1x16x512xf32> to vector<16x512xf32>
    %c0_49 = arith.constant 0 : index
    %c0_50 = arith.constant 0 : index
    %c0_51 = arith.constant 0 : index
    %38 = vector.load %arg4[%c0_49, %c0_50, %c0_51] : memref<3x512x256xf32, #tpu.memory_space<vmem>>, vector<1x512x256xf32>
    %39 = vector.shape_cast %38 : vector<1x512x256xf32> to vector<512x256xf32>
    %cst_52 = arith.constant dense<0.000000e+00> : vector<16x256xf32>
    %40 = tpu.matmul %37, %39, %cst_52 {dimension_numbers = #tpu.dot_dimension_numbers<[1], [0], [0], [1], [0, 0, 1, 1], [], []>} : vector<16x512xf32>, vector<512x256xf32>, vector<16x256xf32> -> vector<16x256xf32>
    %41 = arith.addf %35, %40 : vector<16x256xf32>
    %c0_53 = arith.constant 0 : index
    %c1_54 = arith.constant 1 : index
    %c0_55 = arith.constant 0 : index
    %42 = vector.load %arg12[%c0_53, %c1_54, %c0_55] : memref<1x18x512xf32, #tpu.memory_space<vmem>>, vector<1x16x512xf32>
    %43 = vector.shape_cast %42 : vector<1x16x512xf32> to vector<16x512xf32>
    %c1_56 = arith.constant 1 : index
    %c0_57 = arith.constant 0 : index
    %c0_58 = arith.constant 0 : index
    %44 = vector.load %arg4[%c1_56, %c0_57, %c0_58] : memref<3x512x256xf32, #tpu.memory_space<vmem>>, vector<1x512x256xf32>
    %45 = vector.shape_cast %44 : vector<1x512x256xf32> to vector<512x256xf32>
    %cst_59 = arith.constant dense<0.000000e+00> : vector<16x256xf32>
    %46 = tpu.matmul %43, %45, %cst_59 {dimension_numbers = #tpu.dot_dimension_numbers<[1], [0], [0], [1], [0, 0, 1, 1], [], []>} : vector<16x512xf32>, vector<512x256xf32>, vector<16x256xf32> -> vector<16x256xf32>
    %47 = arith.addf %41, %46 : vector<16x256xf32>
    %c0_60 = arith.constant 0 : index
    %c2_61 = arith.constant 2 : index
    %c0_62 = arith.constant 0 : index
    %48 = vector.load %arg12[%c0_60, %c2_61, %c0_62] : memref<1x18x512xf32, #tpu.memory_space<vmem>>, vector<1x16x512xf32>
    %49 = vector.shape_cast %48 : vector<1x16x512xf32> to vector<16x512xf32>
    %c2_63 = arith.constant 2 : index
    %c0_64 = arith.constant 0 : index
    %c0_65 = arith.constant 0 : index
    %50 = vector.load %arg4[%c2_63, %c0_64, %c0_65] : memref<3x512x256xf32, #tpu.memory_space<vmem>>, vector<1x512x256xf32>
    %51 = vector.shape_cast %50 : vector<1x512x256xf32> to vector<512x256xf32>
    %cst_66 = arith.constant dense<0.000000e+00> : vector<16x256xf32>
    %52 = tpu.matmul %49, %51, %cst_66 {dimension_numbers = #tpu.dot_dimension_numbers<[1], [0], [0], [1], [0, 0, 1, 1], [], []>} : vector<16x512xf32>, vector<512x256xf32>, vector<16x256xf32> -> vector<16x256xf32>
    %53 = arith.addf %47, %52 : vector<16x256xf32>
    %54 = vector.broadcast %34 : vector<1x256xf32> to vector<16x256xf32>
    %55 = arith.addf %53, %54 : vector<16x256xf32>
    %56 = vector.shape_cast %55 : vector<16x256xf32> to vector<1x16x256xf32>
    %cst_67 = arith.constant dense<0.000000e+00> : vector<1x256xf32>
    %57 = vector.multi_reduction <add>, %56, %cst_67 [1] : vector<1x16x256xf32> to vector<1x256xf32>
    %58 = vector.shape_cast %57 : vector<1x256xf32> to vector<1x16x16xf32>
    %cst_68 = arith.constant dense<0.000000e+00> : vector<1x16xf32>
    %59 = vector.multi_reduction <add>, %58, %cst_68 [1] : vector<1x16x16xf32> to vector<1x16xf32>
    %cst_69 = arith.constant 3.906250e-03 : f32
    %60 = vector.broadcast %cst_69 : f32 to vector<1x16xf32>
    %61 = arith.mulf %59, %60 : vector<1x16xf32>
    %62 = vector.shape_cast %61 : vector<1x16xf32> to vector<1x1x16xf32>
    %c0_70 = arith.constant 0 : index
    %c0_71 = arith.constant 0 : index
    %63 = vector.load %arg6[%c0_70, %c0_71] : memref<1x16xf32, #tpu.memory_space<vmem>>, vector<1x16xf32>
    %64 = vector.shape_cast %63 : vector<1x16xf32> to vector<1x1x16xf32>
    %65 = arith.mulf %62, %64 : vector<1x1x16xf32>
    %cst_72 = arith.constant dense<0.000000e+00> : vector<1x1xf32>
    %66 = vector.multi_reduction <add>, %65, %cst_72 [2] : vector<1x1x16xf32> to vector<1x1xf32>
    %c0_73 = arith.constant 0 : index
    %c0_74 = arith.constant 0 : index
    %67 = vector.load %arg7[%c0_73, %c0_74] : memref<1x1xf32, #tpu.memory_space<vmem>>, vector<1x1xf32>
    %68 = arith.addf %66, %67 : vector<1x1xf32>
    %cst_75 = arith.constant 0.000000e+00 : f32
    %69 = vector.broadcast %cst_75 : f32 to vector<1x1xf32>
    %70 = arith.maximumf %68, %69 : vector<1x1xf32>
    %71 = vector.shape_cast %70 : vector<1x1xf32> to vector<1x1x1xf32>
    %c0_76 = arith.constant 0 : index
    %c0_77 = arith.constant 0 : index
    %72 = vector.load %arg8[%c0_76, %c0_77] : memref<1x16xf32, #tpu.memory_space<vmem>>, vector<1x16xf32>
    %73 = vector.shape_cast %72 : vector<1x16xf32> to vector<1x1x16xf32>
    %74 = vector.broadcast %71 : vector<1x1x1xf32> to vector<1x1x16xf32>
    %75 = arith.mulf %74, %73 : vector<1x1x16xf32>
    %cst_78 = arith.constant dense<0.000000e+00> : vector<1x16xf32>
    %76 = vector.multi_reduction <add>, %75, %cst_78 [1] : vector<1x1x16xf32> to vector<1x16xf32>
    %c0_79 = arith.constant 0 : index
    %c0_80 = arith.constant 0 : index
    %77 = vector.load %arg9[%c0_79, %c0_80] : memref<1x16xf32, #tpu.memory_space<vmem>>, vector<1x16xf32>
    %78 = arith.addf %76, %77 : vector<1x16xf32>
    %79 = arith.negf %78 : vector<1x16xf32>
    %80 = math.exp %79 : vector<1x16xf32>
    %cst_81 = arith.constant 1.000000e+00 : f32
    %81 = vector.broadcast %cst_81 : f32 to vector<1x16xf32>
    %82 = arith.addf %81, %80 : vector<1x16xf32>
    %83 = arith.divf %81, %82 : vector<1x16xf32>
    %84 = tpu.concatenate %83, %83, %83, %83, %83, %83, %83, %83, %83, %83, %83, %83, %83, %83, %83, %83 in 1 : vector<1x16xf32>, vector<1x16xf32>, vector<1x16xf32>, vector<1x16xf32>, vector<1x16xf32>, vector<1x16xf32>, vector<1x16xf32>, vector<1x16xf32>, vector<1x16xf32>, vector<1x16xf32>, vector<1x16xf32>, vector<1x16xf32>, vector<1x16xf32>, vector<1x16xf32>, vector<1x16xf32>, vector<1x16xf32> -> vector<1x256xf32>
    %85 = vector.shape_cast %84 : vector<1x256xf32> to vector<1x1x256xf32>
    %86 = vector.broadcast %85 : vector<1x1x256xf32> to vector<1x16x256xf32>
    %87 = arith.mulf %56, %86 : vector<1x16x256xf32>
    %c0_82 = arith.constant 0 : index
    %c0_83 = arith.constant 0 : index
    %c0_84 = arith.constant 0 : index
    %88 = vector.load %arg1[%c0_82, %c0_83, %c0_84] : memref<1x16x256xf32, #tpu.memory_space<vmem>>, vector<1x16x256xf32>
    %89 = arith.addf %87, %88 : vector<1x16x256xf32>
    %c0_85 = arith.constant 0 : index
    %c0_86 = arith.constant 0 : index
    %c0_87 = arith.constant 0 : index
    %90 = vector.load %arg10[%c0_85, %c0_86, %c0_87] : memref<1x16x256xf32, #tpu.memory_space<vmem>>, vector<1x16x256xf32>
    tpu.vector_store %arg10[%c0_85, %c0_86, %c0_87], %89 {strides = array<i32>} : memref<1x16x256xf32, #tpu.memory_space<vmem>>, vector<1x16x256xf32>,
    return
  }
  func.func @transform_0(%arg0: i32) -> (i32, i32, i32) {
    %c0_i32 = arith.constant 0 : i32
    %c0_i32_0 = arith.constant 0 : i32
    %c0_i32_1 = arith.constant 0 : i32
    return %arg0, %c0_i32, %c0_i32_0 : i32, i32, i32
  }
  func.func @transform_1(%arg0: i32) -> (i32, i32, i32) {
    %c0_i32 = arith.constant 0 : i32
    %c0_i32_0 = arith.constant 0 : i32
    %c0_i32_1 = arith.constant 0 : i32
    %c0_i32_2 = arith.constant 0 : i32
    return %c0_i32, %c0_i32_0, %c0_i32_1 : i32, i32, i32
  }
  func.func @transform_2(%arg0: i32) -> (i32, i32) {
    %c0_i32 = arith.constant 0 : i32
    %c0_i32_0 = arith.constant 0 : i32
    %c0_i32_1 = arith.constant 0 : i32
    return %c0_i32, %c0_i32_0 : i32, i32
  }
  func.func @transform_3(%arg0: i32) -> (i32, i32, i32) {
    %c0_i32 = arith.constant 0 : i32
    %c0_i32_0 = arith.constant 0 : i32
    %c0_i32_1 = arith.constant 0 : i32
    %c0_i32_2 = arith.constant 0 : i32
    return %c0_i32, %c0_i32_0, %c0_i32_1 : i32, i32, i32
  }
  func.func @transform_4(%arg0: i32) -> (i32, i32) {
    %c0_i32 = arith.constant 0 : i32
    %c0_i32_0 = arith.constant 0 : i32
    %c0_i32_1 = arith.constant 0 : i32
    return %c0_i32, %c0_i32_0 : i32, i32
  }
  func.func @transform_5(%arg0: i32) -> (i32, i32) {
    %c0_i32 = arith.constant 0 : i32
    %c0_i32_0 = arith.constant 0 : i32
    %c0_i32_1 = arith.constant 0 : i32
    return %c0_i32, %c0_i32_0 : i32, i32
  }
  func.func @transform_6(%arg0: i32) -> (i32, i32) {
    %c0_i32 = arith.constant 0 : i32
    %c0_i32_0 = arith.constant 0 : i32
    %c0_i32_1 = arith.constant 0 : i32
    return %c0_i32, %c0_i32_0 : i32, i32
  }
  func.func @transform_7(%arg0: i32) -> (i32, i32) {
    %c0_i32 = arith.constant 0 : i32
    %c0_i32_0 = arith.constant 0 : i32
    %c0_i32_1 = arith.constant 0 : i32
    return %c0_i32, %c0_i32_0 : i32, i32
  }
  func.func @transform_8(%arg0: i32) -> (i32, i32) {
    %c0_i32 = arith.constant 0 : i32
    %c0_i32_0 = arith.constant 0 : i32
    %c0_i32_1 = arith.constant 0 : i32
    return %c0_i32, %c0_i32_0 : i32, i32
  }
  func.func @transform_9(%arg0: i32) -> (i32, i32, i32) {
    %c0_i32 = arith.constant 0 : i32
    %c0_i32_0 = arith.constant 0 : i32
    %c0_i32_1 = arith.constant 0 : i32
    return %arg0, %c0_i32, %c0_i32_0 : i32, i32, i32
  }
}

</mosaic_0001>

<llo_original>
// kernel: tile.13
$region0: #{tile.13}
  #allocation0 [shape = 's32[1]{0}', space=sflag, size = 0x4, scoped, tag = 'scoped memory for tile.13']
  %s0 = inlined_call_operand.vmem [shape: f32[32], index: 0, kind: input, shape index: {}]
  %s1 = inlined_call_operand.vmem [shape: f32[16,32], index: 1, kind: output, shape index: {}]
  // Predicated region
  $region2: #{tile.13} parent=0 // pred_check
    _
  $region3: #{tile.13} parent=0 // pred_check_branch
    %3 = sbr.rel (0) target = $region5
  $region4: #{tile.13} parent=0 // pred_region
    _
  $region5: #{tile.13} parent=0 // pred_fallthru
    _
  %v4 = vld [vmem:[%s0] ss:$0 sm:$0xff]
  %5 = vst [vmem:[%s1] sm:$0xff] %v4
  %s6 = scalar_lea.vmem %s1, 8
  %7 = vst [vmem:[%s6] sm:$0xff] %v4

// kernel: tile.14
$region0: #{tile.14}
  %s0 = inlined_call_operand.vmem [shape: f32[16,32], index: 0, kind: input, shape index: {}]
  %s1 = inlined_call_operand.vmem [shape: f32[1,512], index: 1, kind: output, shape index: {}]
  $region1: #{tile.14} parent=0
    #allocation0 [shape = 'u8[16384]{0}', space=vmem, size = 0x4000, scoped, tag = 'scoped mem for output reshape']
    %v2 = vld [vmem:[%s0] ss:$4 sm:$0xf]
    %vm3 = vcmask 261120
    %4 = vst.msk [vmem:[#allocation0] ss:$8 sm:$0xf] %vm3, %v2
    %s5 = scalar_lea.vmem %s0, 3
    %v6 = vld [vmem:[%s5] ss:$4 sm:$0xf]
    %7 = vrot.lane.b32.xlu0 %v6, 96
    %v8 = vpop.permute.xlu0 %7
    %vm9 = vcmask 1048320
    %10 = vst.msk [vmem:[#allocation0] ss:$8 sm:$0xf] %vm9, %v8
    %s11 = scalar_lea.vmem %s0, 2
    %v12 = vld [vmem:[%s11] ss:$4 sm:$0xf]
    %13 = vrot.lane.b32.xlu0 %v12, 64
    %v14 = vpop.permute.xlu0 %13
    %vm15 = vcmask 785920
    %16 = vst.msk [vmem:[#allocation0] ss:$8 sm:$0xf] %vm15, %v14
    %s17 = scalar_lea.vmem %s0, 1
    %v18 = vld [vmem:[%s17] ss:$4 sm:$0xf]
    %19 = vrot.lane.b32.xlu0 %v18, 32
    %v20 = vpop.permute.xlu0 %19
    %vm21 = vcmask 523520
    %22 = vst.msk [vmem:[#allocation0] ss:$8 sm:$0xf] %vm21, %v20
    %s24 = sshllo.u32 0, 1
    %v26 = vld [vmem:[#allocation0] sm:%s24]
    %s27 = sshllo.u32 0, 1
    %28 = vst [vmem:[%s1] sm:%s27] %v26
    %s29 = scalar_lea.vmem [#allocation0], 8
    %v30 = vld [vmem:[%s29] sm:%s24]
    %s31 = sshllo.u32 0, 1
    %s32 = scalar_lea.vmem %s1, 1
    %33 = vst [vmem:[%s32] sm:%s31] %v30
    %s34 = scalar_lea.vmem [#allocation0], 16
    %v35 = vld [vmem:[%s34] sm:%s24]
    %s36 = sshllo.u32 0, 1
    %s37 = smul.addr 1, 2
    %s38 = scalar_lea.vmem %s1, %s37
    %39 = vst [vmem:[%s38] sm:%s36] %v35
    %s40 = scalar_lea.vmem [#allocation0], 24
    %v41 = vld [vmem:[%s40] sm:%s24]
    %s42 = sshllo.u32 0, 1
    %s43 = smul.addr 1, 3
    %s44 = scalar_lea.vmem %s1, %s43
    %45 = vst [vmem:[%s44] sm:%s42] %v41

// kernel: tile.18
$region0: #{tile.18}
  #allocation0 [shape = 's32[1]{0}', space=sflag, size = 0x4, scoped, tag = 'scoped memory for tile.18']
  %s0 = inlined_call_operand.vmem [shape: f32[16], index: 0, kind: input, shape index: {}]
  %s1 = inlined_call_operand.vmem [shape: f32[16,16], index: 1, kind: output, shape index: {}]
  // Predicated region
  $region2: #{tile.18} parent=0 // pred_check
    _
  $region3: #{tile.18} parent=0 // pred_check_branch
    %3 = sbr.rel (0) target = $region5
  $region4: #{tile.18} parent=0 // pred_region
    _
  $region5: #{tile.18} parent=0 // pred_fallthru
    _
  %v4 = vld [vmem:[%s0] ss:$0 sm:$0xff]
  %5 = vst [vmem:[%s1] sm:$0xff] %v4
  %s6 = scalar_lea.vmem %s1, 8
  %7 = vst [vmem:[%s6] sm:$0xff] %v4

// kernel: tile.19
$region0: #{tile.19}
  %s0 = inlined_call_operand.vmem [shape: f32[16,16], index: 0, kind: input, shape index: {}]
  %s1 = inlined_call_operand.vmem [shape: f32[1,256], index: 1, kind: output, shape index: {}]
  $region1: #{tile.19} parent=0
    #allocation0 [shape = 'u8[8192]{0}', space=vmem, size = 0x2000, scoped, tag = 'scoped mem for output reshape']
    %s2 = smov 3
    %v3 = vld [vmem:[%s0] ss:$8 sm:%s2]
    %vm4 = vcmask 130048
    %5 = vst.msk [vmem:[#allocation0] ss:$8 sm:$0x3] %vm4, %v3
    %s6 = scalar_lea.vmem %s0, 7
    %s7 = smov 3
    %v8 = vld [vmem:[%s6] ss:$8 sm:%s7]
    %9 = vrot.lane.b32.xlu0 %v8, 112
    %v10 = vpop.permute.xlu0 %9
    %vm11 = vcmask 1048448
    %12 = vst.msk [vmem:[#allocation0] ss:$8 sm:$0x3] %vm11, %v10
    %s13 = scalar_lea.vmem %s0, 6
    %s14 = smov 3
    %v15 = vld [vmem:[%s13] ss:$8 sm:%s14]
    %16 = vrot.lane.b32.xlu0 %v15, 96
    %v17 = vpop.permute.xlu0 %16
    %vm18 = vcmask 917248
    %19 = vst.msk [vmem:[#allocation0] ss:$8 sm:$0x3] %vm18, %v17
    %s20 = scalar_lea.vmem %s0, 5
    %s21 = smov 3
    %v22 = vld [vmem:[%s20] ss:$8 sm:%s21]
    %23 = vrot.lane.b32.xlu0 %v22, 80
    %v24 = vpop.permute.xlu0 %23
    %vm25 = vcmask 786048
    %26 = vst.msk [vmem:[#allocation0] ss:$8 sm:$0x3] %vm25, %v24
    %s27 = scalar_lea.vmem %s0, 4
    %s28 = smov 3
    %v29 = vld [vmem:[%s27] ss:$8 sm:%s28]
    %30 = vrot.lane.b32.xlu0 %v29, 64
    %v31 = vpop.permute.xlu0 %30
    %vm32 = vcmask 654848
    %33 = vst.msk [vmem:[#allocation0] ss:$8 sm:$0x3] %vm32, %v31
    %s34 = scalar_lea.vmem %s0, 3
    %s35 = smov 3
    %v36 = vld [vmem:[%s34] ss:$8 sm:%s35]
    %37 = vrot.lane.b32.xlu0 %v36, 48
    %v38 = vpop.permute.xlu0 %37
    %vm39 = vcmask 523648
    %40 = vst.msk [vmem:[#allocation0] ss:$8 sm:$0x3] %vm39, %v38
    %s41 = scalar_lea.vmem %s0, 2
    %s42 = smov 3
    %v43 = vld [vmem:[%s41] ss:$8 sm:%s42]
    %44 = vrot.lane.b32.xlu0 %v43, 32
    %v45 = vpop.permute.xlu0 %44
    %vm46 = vcmask 392448
    %47 = vst.msk [vmem:[#allocation0] ss:$8 sm:$0x3] %vm46, %v45
    %s48 = scalar_lea.vmem %s0, 1
    %s49 = smov 3
    %v50 = vld [vmem:[%s48] ss:$8 sm:%s49]
    %51 = vrot.lane.b32.xlu0 %v50, 16
    %v52 = vpop.permute.xlu0 %51
    %vm53 = vcmask 261248
    %54 = vst.msk [vmem:[#allocation0] ss:$8 sm:$0x3] %vm53, %v52
    %s56 = sshllo.u32 0, 1
    %v58 = vld [vmem:[#allocation0] sm:%s56]
    %s59 = sshllo.u32 0, 1
    %60 = vst [vmem:[%s1] sm:%s59] %v58
    %s61 = scalar_lea.vmem [#allocation0], 8
    %v62 = vld [vmem:[%s61] sm:%s56]
    %s63 = sshllo.u32 0, 1
    %s64 = scalar_lea.vmem %s1, 1
    %65 = vst [vmem:[%s64] sm:%s63] %v62

// kernel: residual_block_pallas.1
$region0: #{residual_block_pallas.1}
  #allocation0 [shape = 'u32[]', space=smem, size = 0x4, offset = 0x4, fixed_abs, tag = 'smem constant byte address 0x4 - core index']
  #allocation1 [shape = 'u32[144,128]{1,0:T(1,128)}', space=vmem, size = 0x12000, scoped, tag = 'internal scratch']
  #allocation2 [shape = 'f32[1,18,256]{2,1,0:T(8,128)}', space=vmem, size = 0x6000, scoped, tag = 'scratch operand']
  #allocation3 [shape = 'f32[1,18,512]{2,1,0:T(8,128)}', space=vmem, size = 0xc000, scoped, tag = 'scratch operand']
  #allocation4 [shape = 'f32[1,1]{1,0:T(1,128)S(1)}', space=vmem, size = 0x200, scoped, tag = 'scoped memory for residual_block_pallas.1']
  %s0 = inlined_call_operand.vmem [shape: f32[2,16,256], index: 0, kind: input, shape index: {}]
  %s1 = inlined_call_operand.vmem [shape: f32[3,256,512], index: 1, kind: input, shape index: {}]
  %s2 = inlined_call_operand.vmem [shape: f32[1,512], index: 2, kind: input, shape index: {}]
  %s3 = inlined_call_operand.vmem [shape: f32[3,512,256], index: 3, kind: input, shape index: {}]
  %s4 = inlined_call_operand.vmem [shape: f32[1,256], index: 4, kind: input, shape index: {}]
  %s5 = inlined_call_operand.vmem [shape: f32[1,16], index: 5, kind: input, shape index: {}]
  %s6 = inlined_call_operand.<no memory space> [shape: f32[1,1], index: 6, kind: input, shape index: {}]
  %s7 = inlined_call_operand.vmem [shape: f32[1,16], index: 7, kind: input, shape index: {}]
  %s8 = inlined_call_operand.vmem [shape: f32[1,16], index: 8, kind: input, shape index: {}]
  %s9 = inlined_call_operand.vmem [shape: f32[2,16,256], index: 9, kind: output, shape index: {}]
  %s10 = sld [smem:[#allocation0]]
  $region69: #{residual_block_pallas.1} parent=0
    _
  %s12 = ssub.s32 1, %s10
  %s13 = scalar_select 0, %s12, %s10
  %v14 = vstv %s6
  %15 = vst [vmem:[#allocation4] sm:$0x1] %v14
  loop: start=0, step=1, limit=4
  $region2: #{residual_block_pallas.1} parent=0 // loop_pre_header
    _
  $region3: #{residual_block_pallas.1} parent=0 // loop_header
    %s17 = sphi 0, %s21
    %p18 = scmp.ge.s32.totalorder %s17, 4
    %s27 = sphi 0, %s29
    %s30 = sphi 0, %s27
    %s31 = sphi 0, %s30
    %s47 = sphi 0, %s31
    %s51 = sphi 0, %s51
    %s53 = sphi 0, %s51
    %s54 = sphi 0, %s53
    %s68 = sphi 0, %s54
    %s72 = sphi 0, %s72
    %s74 = sphi 0, %s72
    %s75 = sphi 0, %s74
    %s89 = sphi 0, %s75
    %s93 = sphi 0, %s93
    %s95 = sphi 0, %s93
    %s96 = sphi 0, %s95
    %s110 = sphi 0, %s96
    %s114 = sphi 0, %s114
    %s116 = sphi 0, %s114
    %s117 = sphi 0, %s116
    %s131 = sphi 0, %s117
    %s135 = sphi 0, %s135
    %s137 = sphi 0, %s135
    %s138 = sphi 0, %s137
    %s152 = sphi 0, %s138
    %s156 = sphi 0, %s156
    %s158 = sphi 0, %s156
    %s159 = sphi 0, %s158
    %s173 = sphi 0, %s159
    %s177 = sphi 0, %s177
    %s179 = sphi 0, %s177
    %s180 = sphi 0, %s179
    %s194 = sphi 0, %s180
    %s198 = sphi 0, %s198
    %s200 = sphi 0, %s198
    %s201 = sphi 0, %s200
    %s215 = sphi 0, %s201
    %s221 = sphi 0, %s223
    %s224 = sphi 0, %s221
    %s225 = sphi 0, %s224
    %s241 = sphi 0, %s225
  $region4: #{residual_block_pallas.1} parent=0 // loop_header_branch
    %20 = sbr.rel (%p18) target = $region8
  $region5: #{residual_block_pallas.1} parent=0 // loop_body
    %s22 = ssub.s32 %s17, 1
    %s23 = ssub.s32 %s17, 2
    %s24 = sadd.s32 %s17, 1
    %s25 = ssub.s32 %s17, %s24
    %p26 = scmp.eq.s32.totalorder %s25, 0
    %s28 = sadd.s32 %s27, 1
    %s29 = scalar_select %p26, %s27, %s28
    %p32 = pneg %p26
    %p33 = scmp.eq.s32.totalorder %s17, 1
    %p34 = por %p32, %p33
    %p35 = scmp.ne.s32.totalorder %s27, %s30
    %p36 = scmp.eq.s32.totalorder %s17, 0
    %p37 = por %p35, %p36
    %p38 = scmp.ne.s32.totalorder %s27, %s30
    %p39 = scmp.eq.s32.totalorder %s22, 1
    %p40 = por %p38, %p39
    %p41 = scmp.ne.s32.totalorder %s30, %s31
    %p42 = scmp.eq.s32.totalorder %s22, 0
    %p43 = por %p41, %p42
    %p44 = scmp.ne.s32.totalorder %s30, %s31
    %p45 = scmp.eq.s32.totalorder %s23, 1
    %p46 = por %p44, %p45
    %p48 = scmp.ne.s32.totalorder %s31, %s47
    %p49 = scmp.eq.s32.totalorder %s23, 0
    %p50 = por %p48, %p49
    %s52 = sadd.s32 %s51, 1
    %p55 = scmp.eq.s32.totalorder %s17, 1
    %p56 = scmp.ne.s32.totalorder %s51, %s53
    %p57 = scmp.eq.s32.totalorder %s17, 0
    %p58 = por %p56, %p57
    %p59 = scmp.ne.s32.totalorder %s51, %s53
    %p60 = scmp.eq.s32.totalorder %s22, 1
    %p61 = por %p59, %p60
    %p62 = scmp.ne.s32.totalorder %s53, %s54
    %p63 = scmp.eq.s32.totalorder %s22, 0
    %p64 = por %p62, %p63
    %p65 = scmp.ne.s32.totalorder %s53, %s54
    %p66 = scmp.eq.s32.totalorder %s23, 1
    %p67 = por %p65, %p66
    %p69 = scmp.ne.s32.totalorder %s54, %s68
    %p70 = scmp.eq.s32.totalorder %s23, 0
    %p71 = por %p69, %p70
    %s73 = sadd.s32 %s72, 1
    %p76 = scmp.eq.s32.totalorder %s17, 1
    %p77 = scmp.ne.s32.totalorder %s72, %s74
    %p78 = scmp.eq.s32.totalorder %s17, 0
    %p79 = por %p77, %p78
    %p80 = scmp.ne.s32.totalorder %s72, %s74
    %p81 = scmp.eq.s32.totalorder %s22, 1
    %p82 = por %p80, %p81
    %p83 = scmp.ne.s32.totalorder %s74, %s75
    %p84 = scmp.eq.s32.totalorder %s22, 0
    %p85 = por %p83, %p84
    %p86 = scmp.ne.s32.totalorder %s74, %s75
    %p87 = scmp.eq.s32.totalorder %s23, 1
    %p88 = por %p86, %p87
    %p90 = scmp.ne.s32.totalorder %s75, %s89
    %p91 = scmp.eq.s32.totalorder %s23, 0
    %p92 = por %p90, %p91
    %s94 = sadd.s32 %s93, 1
    %p97 = scmp.eq.s32.totalorder %s17, 1
    %p98 = scmp.ne.s32.totalorder %s93, %s95
    %p99 = scmp.eq.s32.totalorder %s17, 0
    %p100 = por %p98, %p99
    %p101 = scmp.ne.s32.totalorder %s93, %s95
    %p102 = scmp.eq.s32.totalorder %s22, 1
    %p103 = por %p101, %p102
    %p104 = scmp.ne.s32.totalorder %s95, %s96
    %p105 = scmp.eq.s32.totalorder %s22, 0
    %p106 = por %p104, %p105
    %p107 = scmp.ne.s32.totalorder %s95, %s96
    %p108 = scmp.eq.s32.totalorder %s23, 1
    %p109 = por %p107, %p108
    %p111 = scmp.ne.s32.totalorder %s96, %s110
    %p112 = scmp.eq.s32.totalorder %s23, 0
    %p113 = por %p111, %p112
    %s115 = sadd.s32 %s114, 1
    %p118 = scmp.eq.s32.totalorder %s17, 1
    %p119 = scmp.ne.s32.totalorder %s114, %s116
    %p120 = scmp.eq.s32.totalorder %s17, 0
    %p121 = por %p119, %p120
    %p122 = scmp.ne.s32.totalorder %s114, %s116
    %p123 = scmp.eq.s32.totalorder %s22, 1
    %p124 = por %p122, %p123
    %p125 = scmp.ne.s32.totalorder %s116, %s117
    %p126 = scmp.eq.s32.totalorder %s22, 0
    %p127 = por %p125, %p126
    %p128 = scmp.ne.s32.totalorder %s116, %s117
    %p129 = scmp.eq.s32.totalorder %s23, 1
    %p130 = por %p128, %p129
    %p132 = scmp.ne.s32.totalorder %s117, %s131
    %p133 = scmp.eq.s32.totalorder %s23, 0
    %p134 = por %p132, %p133
    %s136 = sadd.s32 %s135, 1
    %p139 = scmp.eq.s32.totalorder %s17, 1
    %p140 = scmp.ne.s32.totalorder %s135, %s137
    %p141 = scmp.eq.s32.totalorder %s17, 0
    %p142 = por %p140, %p141
    %p143 = scmp.ne.s32.totalorder %s135, %s137
    %p144 = scmp.eq.s32.totalorder %s22, 1
    %p145 = por %p143, %p144
    %p146 = scmp.ne.s32.totalorder %s137, %s138
    %p147 = scmp.eq.s32.totalorder %s22, 0
    %p148 = por %p146, %p147
    %p149 = scmp.ne.s32.totalorder %s137, %s138
    %p150 = scmp.eq.s32.totalorder %s23, 1
    %p151 = por %p149, %p150
    %p153 = scmp.ne.s32.totalorder %s138, %s152
    %p154 = scmp.eq.s32.totalorder %s23, 0
    %p155 = por %p153, %p154
    %s157 = sadd.s32 %s156, 1
    %p160 = scmp.eq.s32.totalorder %s17, 1
    %p161 = scmp.ne.s32.totalorder %s156, %s158
    %p162 = scmp.eq.s32.totalorder %s17, 0
    %p163 = por %p161, %p162
    %p164 = scmp.ne.s32.totalorder %s156, %s158
    %p165 = scmp.eq.s32.totalorder %s22, 1
    %p166 = por %p164, %p165
    %p167 = scmp.ne.s32.totalorder %s158, %s159
    %p168 = scmp.eq.s32.totalorder %s22, 0
    %p169 = por %p167, %p168
    %p170 = scmp.ne.s32.totalorder %s158, %s159
    %p171 = scmp.eq.s32.totalorder %s23, 1
    %p172 = por %p170, %p171
    %p174 = scmp.ne.s32.totalorder %s159, %s173
    %p175 = scmp.eq.s32.totalorder %s23, 0
    %p176 = por %p174, %p175
    %s178 = sadd.s32 %s177, 1
    %p181 = scmp.eq.s32.totalorder %s17, 1
    %p182 = scmp.ne.s32.totalorder %s177, %s179
    %p183 = scmp.eq.s32.totalorder %s17, 0
    %p184 = por %p182, %p183
    %p185 = scmp.ne.s32.totalorder %s177, %s179
    %p186 = scmp.eq.s32.totalorder %s22, 1
    %p187 = por %p185, %p186
    %p188 = scmp.ne.s32.totalorder %s179, %s180
    %p189 = scmp.eq.s32.totalorder %s22, 0
    %p190 = por %p188, %p189
    %p191 = scmp.ne.s32.totalorder %s179, %s180
    %p192 = scmp.eq.s32.totalorder %s23, 1
    %p193 = por %p191, %p192
    %p195 = scmp.ne.s32.totalorder %s180, %s194
    %p196 = scmp.eq.s32.totalorder %s23, 0
    %p197 = por %p195, %p196
    %s199 = sadd.s32 %s198, 1
    %p202 = scmp.eq.s32.totalorder %s17, 1
    %p203 = scmp.ne.s32.totalorder %s198, %s200
    %p204 = scmp.eq.s32.totalorder %s17, 0
    %p205 = por %p203, %p204
    %p206 = scmp.ne.s32.totalorder %s198, %s200
    %p207 = scmp.eq.s32.totalorder %s22, 1
    %p208 = por %p206, %p207
    %p209 = scmp.ne.s32.totalorder %s200, %s201
    %p210 = scmp.eq.s32.totalorder %s22, 0
    %p211 = por %p209, %p210
    %p212 = scmp.ne.s32.totalorder %s200, %s201
    %p213 = scmp.eq.s32.totalorder %s23, 1
    %p214 = por %p212, %p213
    %p216 = scmp.ne.s32.totalorder %s201, %s215
    %p217 = scmp.eq.s32.totalorder %s23, 0
    %p218 = por %p216, %p217
    %s219 = ssub.s32 %s17, %s24
    %p220 = scmp.eq.s32.totalorder %s219, 0
    %s222 = sadd.s32 %s221, 1
    %s223 = scalar_select %p220, %s221, %s222
    %p226 = pneg %p220
    %p227 = scmp.eq.s32.totalorder %s17, 1
    %p228 = por %p226, %p227
    %p229 = scmp.ne.s32.totalorder %s221, %s224
    %p230 = scmp.eq.s32.totalorder %s17, 0
    %p231 = por %p229, %p230
    %p232 = scmp.ne.s32.totalorder %s221, %s224
    %p233 = scmp.eq.s32.totalorder %s22, 1
    %p234 = por %p232, %p233
    %p235 = scmp.ne.s32.totalorder %s224, %s225
    %p236 = scmp.eq.s32.totalorder %s22, 0
    %p237 = por %p235, %p236
    %p238 = scmp.ne.s32.totalorder %s224, %s225
    %p239 = scmp.eq.s32.totalorder %s23, 1
    %p240 = por %p238, %p239
    %p242 = scmp.ne.s32.totalorder %s225, %s241
    %p243 = scmp.eq.s32.totalorder %s23, 0
    %p244 = por %p242, %p243
    %p245 = scmp.le.s32.totalorder 1, %s17
    %p246 = scmp.lt.s32.totalorder %s17, 3
    %p247 = pnand %p245, %p246
    %p248 = pneg %p247
    // Predicated region
    $region9: #{residual_block_pallas.1} parent=5 // pred_check
      _
    $region10: #{residual_block_pallas.1} parent=5 // pred_check_branch
      %250 = sbr.rel (%p247) target = $region12
    $region11: #{residual_block_pallas.1} parent=5 // pred_region
      %s251 = ssub.s32 %s17, 1
      // Predicated region
      $region13: #{residual_block_pallas.1} parent=11 // pred_check
        %p252 = pneg %p64
      $region14: #{residual_block_pallas.1} parent=11 // pred_check_branch
        %254 = sbr.rel (%p252) target = $region16
      $region15: #{residual_block_pallas.1} parent=11 // pred_region
        _
      $region16: #{residual_block_pallas.1} parent=11 // pred_fallthru
        _
      // Predicated region
      $region17: #{residual_block_pallas.1} parent=11 // pred_check
        %p255 = pneg %p85
      $region18: #{residual_block_pallas.1} parent=11 // pred_check_branch
        %257 = sbr.rel (%p255) target = $region20
      $region19: #{residual_block_pallas.1} parent=11 // pred_region
        _
      $region20: #{residual_block_pallas.1} parent=11 // pred_fallthru
        _
      // Predicated region
      $region21: #{residual_block_pallas.1} parent=11 // pred_check
        %p258 = pneg %p106
      $region22: #{residual_block_pallas.1} parent=11 // pred_check_branch
        %260 = sbr.rel (%p258) target = $region24
      $region23: #{residual_block_pallas.1} parent=11 // pred_region
        _
      $region24: #{residual_block_pallas.1} parent=11 // pred_fallthru
        _
      // Predicated region
      $region25: #{residual_block_pallas.1} parent=11 // pred_check
        %p261 = pneg %p127
      $region26: #{residual_block_pallas.1} parent=11 // pred_check_branch
        %263 = sbr.rel (%p261) target = $region28
      $region27: #{residual_block_pallas.1} parent=11 // pred_region
        _
      $region28: #{residual_block_pallas.1} parent=11 // pred_fallthru
        _
      // Predicated region
      $region29: #{residual_block_pallas.1} parent=11 // pred_check
        %p264 = pneg %p148
      $region30: #{residual_block_pallas.1} parent=11 // pred_check_branch
        %266 = sbr.rel (%p264) target = $region32
      $region31: #{residual_block_pallas.1} parent=11 // pred_region
        _
      $region32: #{residual_block_pallas.1} parent=11 // pred_fallthru
        _
      // Predicated region
      $region33: #{residual_block_pallas.1} parent=11 // pred_check
        %p267 = pneg %p169
      $region34: #{residual_block_pallas.1} parent=11 // pred_check_branch
        %269 = sbr.rel (%p267) target = $region36
      $region35: #{residual_block_pallas.1} parent=11 // pred_region
        _
      $region36: #{residual_block_pallas.1} parent=11 // pred_fallthru
        _
      // Predicated region
      $region37: #{residual_block_pallas.1} parent=11 // pred_check
        %p270 = pneg %p190
      $region38: #{residual_block_pallas.1} parent=11 // pred_check_branch
        %272 = sbr.rel (%p270) target = $region40
      $region39: #{residual_block_pallas.1} parent=11 // pred_region
        _
      $region40: #{residual_block_pallas.1} parent=11 // pred_fallthru
        _
      // Predicated region
      $region41: #{residual_block_pallas.1} parent=11 // pred_check
        %p273 = pneg %p211
      $region42: #{residual_block_pallas.1} parent=11 // pred_check_branch
        %275 = sbr.rel (%p273) target = $region44
      $region43: #{residual_block_pallas.1} parent=11 // pred_region
        _
      $region44: #{residual_block_pallas.1} parent=11 // pred_fallthru
        _
    $region12: #{residual_block_pallas.1} parent=5 // pred_fallthru
      _
    %p276 = scmp.lt.s32.totalorder %s17, 2
    // Predicated region
    $region45: #{residual_block_pallas.1} parent=5 // pred_check
      %p277 = pneg %p276
    $region46: #{residual_block_pallas.1} parent=5 // pred_check_branch
      %279 = sbr.rel (%p277) target = $region48
    $region47: #{residual_block_pallas.1} parent=5 // pred_region
      // Predicated region
      $region49: #{residual_block_pallas.1} parent=47 // pred_check
        %p280 = pneg %p37
      $region50: #{residual_block_pallas.1} parent=47 // pred_check_branch
        %282 = sbr.rel (%p280) target = $region52
      $region51: #{residual_block_pallas.1} parent=47 // pred_region
        %p283 = scmp.lt.s32.totalorder %s17, 1
        %s284 = scalar_select %p283, %s17, 1
        %s285 = smul.addr %s284, 4
        %s286 = smul.addr %s285, 8
        %s287 = scalar_lea.vmem %s0, %s286
      $region52: #{residual_block_pallas.1} parent=47 // pred_fallthru
        _
    $region48: #{residual_block_pallas.1} parent=5 // pred_fallthru
      _
    %p288 = scmp.le.s32.totalorder 1, %s17
    %p289 = scmp.lt.s32.totalorder %s17, 3
    %p290 = pnand %p288, %p289
    %p291 = pneg %p290
    // Predicated region
    $region53: #{residual_block_pallas.1} parent=5 // pred_check
      _
    $region54: #{residual_block_pallas.1} parent=5 // pred_check_branch
      %293 = sbr.rel (%p290) target = $region56
    $region55: #{residual_block_pallas.1} parent=5 // pred_region
      %s294 = ssub.s32 %s17, 1
      %p295 = scmp.lt.s32.totalorder %s22, 1
      %s296 = scalar_select %p295, %s22, 1
      %s297 = smul.addr %s296, 4
      %s298 = smul.addr %s297, 8
      %s299 = scalar_lea.vmem %s0, %s298
      %p300 = pneg %p43
      %p301 = pneg %p40
      %p302 = pneg %p64
      %p303 = pneg %p61
      %p304 = pneg %p85
      %p305 = pneg %p82
      %p306 = pneg %p106
      %p307 = pneg %p103
      %p308 = pneg %p127
      %p309 = pneg %p124
      %p310 = pneg %p148
      %p311 = pneg %p145
      %p312 = pneg %p169
      %p313 = pneg %p166
      %p314 = pneg %p190
      %p315 = pneg %p187
      %p316 = pneg %p211
      %p317 = pneg %p208
      %p318 = pneg %p237
      %p319 = pneg %p234
      %p320 = scmp.lt.s32.totalorder %s22, 1
      %s321 = scalar_select %p320, %s22, 1
      %s322 = smul.addr %s321, 4
      %s323 = smul.addr %s322, 8
      %s324 = scalar_lea.vmem %s9, %s323
      %p325 = scmp.lt.s32.totalorder %s22, 1
      %s326 = scalar_select %p325, %s22, 1
      %s327 = smul.addr %s326, 4
      %s328 = smul.addr %s327, 8
      %s329 = scalar_lea.vmem %s0, %s328
      %p330 = scmp.lt.s32.totalorder %s22, 1
      %s331 = scalar_select %p330, %s22, 1
      %s332 = smul.addr %s331, 4
      %s333 = smul.addr %s332, 8
      %s334 = scalar_lea.vmem %s9, %s333
      %v335 = vlaneseq
      %vm336 = vcmp.ge.s32.totalorder %v335, 0
      %vm337 = vcmp.lt.s32.totalorder %v335, 256
      %vm338 = vmand %vm336, %vm337
      %339 = vst.msk [vmem:[#allocation2] ss:$8 sm:$0x3] %vm338, 0.0
      %340 = vst.msk [vmem:[#allocation2] ss:$8 sm:$0x0] %vm338, 0.0
      %s341 = scalar_lea.vmem [#allocation2], 33
      %342 = vst.msk [vmem:[%s341] ss:$8 sm:$0x3] %vm338, 0.0
      %343 = vst.msk [vmem:[%s341] ss:$8 sm:$0x0] %vm338, 0.0
      %v344 = vld [vmem:[%s329] sm:$0xff]
      %v345 = vld [vmem:[%s329 + $0x8] sm:$0xff]
      %v346 = vld [vmem:[%s329 + $0x10] sm:$0xff]
      %v347 = vld [vmem:[%s329 + $0x18] sm:$0xff]
      %vm352 = vcmask 1040384
      %v353 = vrot.slane %v344, 7
      %v354 = vrot.slane %v345, 7
      %v355 = vrot.slane %v346, 7
      %v356 = vsel %vm352, %v353, %v355
      %v357 = vrot.slane %v347, 7
      %v358 = vsel %vm352, %v354, %v357
      %365 = vst [vmem:[#allocation2] sm:$0xfe] %v353
      %366 = vst [vmem:[#allocation2 + $0x8] sm:$0xfe] %v354
      %367 = vst [vmem:[#allocation2 + $0x10] sm:$0xff] %v356
      %368 = vst [vmem:[#allocation2 + $0x18] sm:$0xff] %v358
      %369 = vst [vmem:[#allocation2 + $0x20] sm:$0x1] %v355
      %370 = vst [vmem:[#allocation2 + $0x28] sm:$0x1] %v357
      %v371 = vld [vmem:[%s2] sm:$0xf]
      %v372 = vld [vmem:[#allocation2] sm:$0xff]
      %v373 = vld [vmem:[#allocation2 + $0x8] sm:$0xff]
      %v374 = vld [vmem:[#allocation2 + $0x10] sm:$0xff]
      %v375 = vld [vmem:[#allocation2 + $0x18] sm:$0xff]
      %v376 = vld [vmem:[%s1] sm:$0xff]
      %v377 = vld [vmem:[%s1 + $0x8] sm:$0xff]
      %v378 = vld [vmem:[%s1 + $0x10] sm:$0xff]
      %v379 = vld [vmem:[%s1 + $0x18] sm:$0xff]
      %v380 = vld [vmem:[%s1 + $0x20] sm:$0xff]
      %v381 = vld [vmem:[%s1 + $0x28] sm:$0xff]
      %v382 = vld [vmem:[%s1 + $0x30] sm:$0xff]
      %v383 = vld [vmem:[%s1 + $0x38] sm:$0xff]
      %v384 = vld [vmem:[%s1 + $0x40] sm:$0xff]
      %v385 = vld [vmem:[%s1 + $0x48] sm:$0xff]
      %v386 = vld [vmem:[%s1 + $0x50] sm:$0xff]
      %v387 = vld [vmem:[%s1 + $0x58] sm:$0xff]
      %v388 = vld [vmem:[%s1 + $0x60] sm:$0xff]
      %v389 = vld [vmem:[%s1 + $0x68] sm:$0xff]
      %v390 = vld [vmem:[%s1 + $0x70] sm:$0xff]
      %v391 = vld [vmem:[%s1 + $0x78] sm:$0xff]
      %v392 = vld [vmem:[%s1 + $0x80] sm:$0xff]
      %v393 = vld [vmem:[%s1 + $0x88] sm:$0xff]
      %v394 = vld [vmem:[%s1 + $0x90] sm:$0xff]
      %v395 = vld [vmem:[%s1 + $0x98] sm:$0xff]
      %v396 = vld [vmem:[%s1 + $0xa0] sm:$0xff]
      %v397 = vld [vmem:[%s1 + $0xa8] sm:$0xff]
      %v398 = vld [vmem:[%s1 + $0xb0] sm:$0xff]
      %v399 = vld [vmem:[%s1 + $0xb8] sm:$0xff]
      %v400 = vld [vmem:[%s1 + $0xc0] sm:$0xff]
      %v401 = vld [vmem:[%s1 + $0xc8] sm:$0xff]
      %v402 = vld [vmem:[%s1 + $0xd0] sm:$0xff]
      %v403 = vld [vmem:[%s1 + $0xd8] sm:$0xff]
      %v404 = vld [vmem:[%s1 + $0xe0] sm:$0xff]
      %v405 = vld [vmem:[%s1 + $0xe8] sm:$0xff]
      %v406 = vld [vmem:[%s1 + $0xf0] sm:$0xff]
      %v407 = vld [vmem:[%s1 + $0xf8] sm:$0xff]
      %v408 = vld [vmem:[%s1 + $0x100] sm:$0xff]
      %v409 = vld [vmem:[%s1 + $0x108] sm:$0xff]
      %v410 = vld [vmem:[%s1 + $0x110] sm:$0xff]
      %v411 = vld [vmem:[%s1 + $0x118] sm:$0xff]
      %v412 = vld [vmem:[%s1 + $0x120] sm:$0xff]
      %v413 = vld [vmem:[%s1 + $0x128] sm:$0xff]
      %v414 = vld [vmem:[%s1 + $0x130] sm:$0xff]
      %v415 = vld [vmem:[%s1 + $0x138] sm:$0xff]
      %v416 = vld [vmem:[%s1 + $0x140] sm:$0xff]
      %v417 = vld [vmem:[%s1 + $0x148] sm:$0xff]
      %v418 = vld [vmem:[%s1 + $0x150] sm:$0xff]
      %v419 = vld [vmem:[%s1 + $0x158] sm:$0xff]
      %v420 = vld [vmem:[%s1 + $0x160] sm:$0xff]
      %v421 = vld [vmem:[%s1 + $0x168] sm:$0xff]
      %v422 = vld [vmem:[%s1 + $0x170] sm:$0xff]
      %v423 = vld [vmem:[%s1 + $0x178] sm:$0xff]
      %v424 = vld [vmem:[%s1 + $0x180] sm:$0xff]
      %v425 = vld [vmem:[%s1 + $0x188] sm:$0xff]
      %v426 = vld [vmem:[%s1 + $0x190] sm:$0xff]
      %v427 = vld [vmem:[%s1 + $0x198] sm:$0xff]
      %v428 = vld [vmem:[%s1 + $0x1a0] sm:$0xff]
      %v429 = vld [vmem:[%s1 + $0x1a8] sm:$0xff]
      %v430 = vld [vmem:[%s1 + $0x1b0] sm:$0xff]
      %v431 = vld [vmem:[%s1 + $0x1b8] sm:$0xff]
      %v432 = vld [vmem:[%s1 + $0x1c0] sm:$0xff]
      %v433 = vld [vmem:[%s1 + $0x1c8] sm:$0xff]
      %v434 = vld [vmem:[%s1 + $0x1d0] sm:$0xff]
      %v435 = vld [vmem:[%s1 + $0x1d8] sm:$0xff]
      %v436 = vld [vmem:[%s1 + $0x1e0] sm:$0xff]
      %v437 = vld [vmem:[%s1 + $0x1e8] sm:$0xff]
      %v438 = vld [vmem:[%s1 + $0x1f0] sm:$0xff]
      %v439 = vld [vmem:[%s1 + $0x1f8] sm:$0xff]
      %v440 = vld [vmem:[%s1 + $0x200] sm:$0xff]
      %v441 = vld [vmem:[%s1 + $0x208] sm:$0xff]
      %v442 = vld [vmem:[%s1 + $0x210] sm:$0xff]
      %v443 = vld [vmem:[%s1 + $0x218] sm:$0xff]
      %v444 = vld [vmem:[%s1 + $0x220] sm:$0xff]
      %v445 = vld [vmem:[%s1 + $0x228] sm:$0xff]
      %v446 = vld [vmem:[%s1 + $0x230] sm:$0xff]
      %v447 = vld [vmem:[%s1 + $0x238] sm:$0xff]
      %v448 = vld [vmem:[%s1 + $0x240] sm:$0xff]
      %v449 = vld [vmem:[%s1 + $0x248] sm:$0xff]
      %v450 = vld [vmem:[%s1 + $0x250] sm:$0xff]
      %v451 = vld [vmem:[%s1 + $0x258] sm:$0xff]
      %v452 = vld [vmem:[%s1 + $0x260] sm:$0xff]
      %v453 = vld [vmem:[%s1 + $0x268] sm:$0xff]
      %v454 = vld [vmem:[%s1 + $0x270] sm:$0xff]
      %v455 = vld [vmem:[%s1 + $0x278] sm:$0xff]
      %v456 = vld [vmem:[%s1 + $0x280] sm:$0xff]
      %v457 = vld [vmem:[%s1 + $0x288] sm:$0xff]
      %v458 = vld [vmem:[%s1 + $0x290] sm:$0xff]
      %v459 = vld [vmem:[%s1 + $0x298] sm:$0xff]
      %v460 = vld [vmem:[%s1 + $0x2a0] sm:$0xff]
      %v461 = vld [vmem:[%s1 + $0x2a8] sm:$0xff]
      %v462 = vld [vmem:[%s1 + $0x2b0] sm:$0xff]
      %v463 = vld [vmem:[%s1 + $0x2b8] sm:$0xff]
      %v464 = vld [vmem:[%s1 + $0x2c0] sm:$0xff]
      %v465 = vld [vmem:[%s1 + $0x2c8] sm:$0xff]
      %v466 = vld [vmem:[%s1 + $0x2d0] sm:$0xff]
      %v467 = vld [vmem:[%s1 + $0x2d8] sm:$0xff]
      %v468 = vld [vmem:[%s1 + $0x2e0] sm:$0xff]
      %v469 = vld [vmem:[%s1 + $0x2e8] sm:$0xff]
      %v470 = vld [vmem:[%s1 + $0x2f0] sm:$0xff]
      %v471 = vld [vmem:[%s1 + $0x2f8] sm:$0xff]
      %v472 = vld [vmem:[%s1 + $0x300] sm:$0xff]
      %v473 = vld [vmem:[%s1 + $0x308] sm:$0xff]
      %v474 = vld [vmem:[%s1 + $0x310] sm:$0xff]
      %v475 = vld [vmem:[%s1 + $0x318] sm:$0xff]
      %v476 = vld [vmem:[%s1 + $0x320] sm:$0xff]
      %v477 = vld [vmem:[%s1 + $0x328] sm:$0xff]
      %v478 = vld [vmem:[%s1 + $0x330] sm:$0xff]
      %v479 = vld [vmem:[%s1 + $0x338] sm:$0xff]
      %v480 = vld [vmem:[%s1 + $0x340] sm:$0xff]
      %v481 = vld [vmem:[%s1 + $0x348] sm:$0xff]
      %v482 = vld [vmem:[%s1 + $0x350] sm:$0xff]
      %v483 = vld [vmem:[%s1 + $0x358] sm:$0xff]
      %v484 = vld [vmem:[%s1 + $0x360] sm:$0xff]
      %v485 = vld [vmem:[%s1 + $0x368] sm:$0xff]
      %v486 = vld [vmem:[%s1 + $0x370] sm:$0xff]
      %v487 = vld [vmem:[%s1 + $0x378] sm:$0xff]
      %v488 = vld [vmem:[%s1 + $0x380] sm:$0xff]
      %v489 = vld [vmem:[%s1 + $0x388] sm:$0xff]
      %v490 = vld [vmem:[%s1 + $0x390] sm:$0xff]
      %v491 = vld [vmem:[%s1 + $0x398] sm:$0xff]
      %v492 = vld [vmem:[%s1 + $0x3a0] sm:$0xff]
      %v493 = vld [vmem:[%s1 + $0x3a8] sm:$0xff]
      %v494 = vld [vmem:[%s1 + $0x3b0] sm:$0xff]
      %v495 = vld [vmem:[%s1 + $0x3b8] sm:$0xff]
      %v496 = vld [vmem:[%s1 + $0x3c0] sm:$0xff]
      %v497 = vld [vmem:[%s1 + $0x3c8] sm:$0xff]
      %v498 = vld [vmem:[%s1 + $0x3d0] sm:$0xff]
      %v499 = vld [vmem:[%s1 + $0x3d8] sm:$0xff]
      %v500 = vld [vmem:[%s1 + $0x3e0] sm:$0xff]
      %v501 = vld [vmem:[%s1 + $0x3e8] sm:$0xff]
      %v502 = vld [vmem:[%s1 + $0x3f0] sm:$0xff]
      %v503 = vld [vmem:[%s1 + $0x3f8] sm:$0xff]
      %v504 = vld [vmem:[#allocation2] sm:$0xfe]
      %v505 = vld [vmem:[#allocation2 + $0x8] sm:$0xfe]
      %v506 = vld [vmem:[#allocation2 + $0x20] sm:$0x1]
      %v507 = vld [vmem:[#allocation2 + $0x28] sm:$0x1]
      %s508 = scalar_lea.vmem %s1, 1024
      %v509 = vld [vmem:[%s508] sm:$0xff]
      %v510 = vld [vmem:[%s508 + $0x8] sm:$0xff]
      %v511 = vld [vmem:[%s508 + $0x10] sm:$0xff]
      %v512 = vld [vmem:[%s508 + $0x18] sm:$0xff]
      %v513 = vld [vmem:[%s508 + $0x20] sm:$0xff]
      %v514 = vld [vmem:[%s508 + $0x28] sm:$0xff]
      %v515 = vld [vmem:[%s508 + $0x30] sm:$0xff]
      %v516 = vld [vmem:[%s508 + $0x38] sm:$0xff]
      %v517 = vld [vmem:[%s508 + $0x40] sm:$0xff]
      %v518 = vld [vmem:[%s508 + $0x48] sm:$0xff]
      %v519 = vld [vmem:[%s508 + $0x50] sm:$0xff]
      %v520 = vld [vmem:[%s508 + $0x58] sm:$0xff]
      %v521 = vld [vmem:[%s508 + $0x60] sm:$0xff]
      %v522 = vld [vmem:[%s508 + $0x68] sm:$0xff]
      %v523 = vld [vmem:[%s508 + $0x70] sm:$0xff]
      %v524 = vld [vmem:[%s508 + $0x78] sm:$0xff]
      %v525 = vld [vmem:[%s508 + $0x80] sm:$0xff]
      %v526 = vld [vmem:[%s508 + $0x88] sm:$0xff]
      %v527 = vld [vmem:[%s508 + $0x90] sm:$0xff]
      %v528 = vld [vmem:[%s508 + $0x98] sm:$0xff]
      %v529 = vld [vmem:[%s508 + $0xa0] sm:$0xff]
      %v530 = vld [vmem:[%s508 + $0xa8] sm:$0xff]
      %v531 = vld [vmem:[%s508 + $0xb0] sm:$0xff]
      %v532 = vld [vmem:[%s508 + $0xb8] sm:$0xff]
      %v533 = vld [vmem:[%s508 + $0xc0] sm:$0xff]
      %v534 = vld [vmem:[%s508 + $0xc8] sm:$0xff]
      %v535 = vld [vmem:[%s508 + $0xd0] sm:$0xff]
      %v536 = vld [vmem:[%s508 + $0xd8] sm:$0xff]
      %v537 = vld [vmem:[%s508 + $0xe0] sm:$0xff]
      %v538 = vld [vmem:[%s508 + $0xe8] sm:$0xff]
      %v539 = vld [vmem:[%s508 + $0xf0] sm:$0xff]
      %v540 = vld [vmem:[%s508 + $0xf8] sm:$0xff]
      %v541 = vld [vmem:[%s508 + $0x100] sm:$0xff]
      %v542 = vld [vmem:[%s508 + $0x108] sm:$0xff]
      %v543 = vld [vmem:[%s508 + $0x110] sm:$0xff]
      %v544 = vld [vmem:[%s508 + $0x118] sm:$0xff]
      %v545 = vld [vmem:[%s508 + $0x120] sm:$0xff]
      %v546 = vld [vmem:[%s508 + $0x128] sm:$0xff]
      %v547 = vld [vmem:[%s508 + $0x130] sm:$0xff]
      %v548 = vld [vmem:[%s508 + $0x138] sm:$0xff]
      %v549 = vld [vmem:[%s508 + $0x140] sm:$0xff]
      %v550 = vld [vmem:[%s508 + $0x148] sm:$0xff]
      %v551 = vld [vmem:[%s508 + $0x150] sm:$0xff]
      %v552 = vld [vmem:[%s508 + $0x158] sm:$0xff]
      %v553 = vld [vmem:[%s508 + $0x160] sm:$0xff]
      %v554 = vld [vmem:[%s508 + $0x168] sm:$0xff]
      %v555 = vld [vmem:[%s508 + $0x170] sm:$0xff]
      %v556 = vld [vmem:[%s508 + $0x178] sm:$0xff]
      %v557 = vld [vmem:[%s508 + $0x180] sm:$0xff]
      %v558 = vld [vmem:[%s508 + $0x188] sm:$0xff]
      %v559 = vld [vmem:[%s508 + $0x190] sm:$0xff]
      %v560 = vld [vmem:[%s508 + $0x198] sm:$0xff]
      %v561 = vld [vmem:[%s508 + $0x1a0] sm:$0xff]
      %v562 = vld [vmem:[%s508 + $0x1a8] sm:$0xff]
      %v563 = vld [vmem:[%s508 + $0x1b0] sm:$0xff]
      %v564 = vld [vmem:[%s508 + $0x1b8] sm:$0xff]
      %v565 = vld [vmem:[%s508 + $0x1c0] sm:$0xff]
      %v566 = vld [vmem:[%s508 + $0x1c8] sm:$0xff]
      %v567 = vld [vmem:[%s508 + $0x1d0] sm:$0xff]
      %v568 = vld [vmem:[%s508 + $0x1d8] sm:$0xff]
      %v569 = vld [vmem:[%s508 + $0x1e0] sm:$0xff]
      %v570 = vld [vmem:[%s508 + $0x1e8] sm:$0xff]
      %v571 = vld [vmem:[%s508 + $0x1f0] sm:$0xff]
      %v572 = vld [vmem:[%s508 + $0x1f8] sm:$0xff]
      %v573 = vld [vmem:[%s508 + $0x200] sm:$0xff]
      %v574 = vld [vmem:[%s508 + $0x208] sm:$0xff]
      %v575 = vld [vmem:[%s508 + $0x210] sm:$0xff]
      %v576 = vld [vmem:[%s508 + $0x218] sm:$0xff]
      %v577 = vld [vmem:[%s508 + $0x220] sm:$0xff]
      %v578 = vld [vmem:[%s508 + $0x228] sm:$0xff]
      %v579 = vld [vmem:[%s508 + $0x230] sm:$0xff]
      %v580 = vld [vmem:[%s508 + $0x238] sm:$0xff]
      %v581 = vld [vmem:[%s508 + $0x240] sm:$0xff]
      %v582 = vld [vmem:[%s508 + $0x248] sm:$0xff]
      %v583 = vld [vmem:[%s508 + $0x250] sm:$0xff]
      %v584 = vld [vmem:[%s508 + $0x258] sm:$0xff]
      %v585 = vld [vmem:[%s508 + $0x260] sm:$0xff]
      %v586 = vld [vmem:[%s508 + $0x268] sm:$0xff]
      %v587 = vld [vmem:[%s508 + $0x270] sm:$0xff]
      %v588 = vld [vmem:[%s508 + $0x278] sm:$0xff]
      %v589 = vld [vmem:[%s508 + $0x280] sm:$0xff]
      %v590 = vld [vmem:[%s508 + $0x288] sm:$0xff]
      %v591 = vld [vmem:[%s508 + $0x290] sm:$0xff]
      %v592 = vld [vmem:[%s508 + $0x298] sm:$0xff]
      %v593 = vld [vmem:[%s508 + $0x2a0] sm:$0xff]
      %v594 = vld [vmem:[%s508 + $0x2a8] sm:$0xff]
      %v595 = vld [vmem:[%s508 + $0x2b0] sm:$0xff]
      %v596 = vld [vmem:[%s508 + $0x2b8] sm:$0xff]
      %v597 = vld [vmem:[%s508 + $0x2c0] sm:$0xff]
      %v598 = vld [vmem:[%s508 + $0x2c8] sm:$0xff]
      %v599 = vld [vmem:[%s508 + $0x2d0] sm:$0xff]
      %v600 = vld [vmem:[%s508 + $0x2d8] sm:$0xff]
      %v601 = vld [vmem:[%s508 + $0x2e0] sm:$0xff]
      %v602 = vld [vmem:[%s508 + $0x2e8] sm:$0xff]
      %v603 = vld [vmem:[%s508 + $0x2f0] sm:$0xff]
      %v604 = vld [vmem:[%s508 + $0x2f8] sm:$0xff]
      %v605 = vld [vmem:[%s508 + $0x300] sm:$0xff]
      %v606 = vld [vmem:[%s508 + $0x308] sm:$0xff]
      %v607 = vld [vmem:[%s508 + $0x310] sm:$0xff]
      %v608 = vld [vmem:[%s508 + $0x318] sm:$0xff]
      %v609 = vld [vmem:[%s508 + $0x320] sm:$0xff]
      %v610 = vld [vmem:[%s508 + $0x328] sm:$0xff]
      %v611 = vld [vmem:[%s508 + $0x330] sm:$0xff]
      %v612 = vld [vmem:[%s508 + $0x338] sm:$0xff]
      %v613 = vld [vmem:[%s508 + $0x340] sm:$0xff]
      %v614 = vld [vmem:[%s508 + $0x348] sm:$0xff]
      %v615 = vld [vmem:[%s508 + $0x350] sm:$0xff]
      %v616 = vld [vmem:[%s508 + $0x358] sm:$0xff]
      %v617 = vld [vmem:[%s508 + $0x360] sm:$0xff]
      %v618 = vld [vmem:[%s508 + $0x368] sm:$0xff]
      %v619 = vld [vmem:[%s508 + $0x370] sm:$0xff]
      %v620 = vld [vmem:[%s508 + $0x378] sm:$0xff]
      %v621 = vld [vmem:[%s508 + $0x380] sm:$0xff]
      %v622 = vld [vmem:[%s508 + $0x388] sm:$0xff]
      %v623 = vld [vmem:[%s508 + $0x390] sm:$0xff]
      %v624 = vld [vmem:[%s508 + $0x398] sm:$0xff]
      %v625 = vld [vmem:[%s508 + $0x3a0] sm:$0xff]
      %v626 = vld [vmem:[%s508 + $0x3a8] sm:$0xff]
      %v627 = vld [vmem:[%s508 + $0x3b0] sm:$0xff]
      %v628 = vld [vmem:[%s508 + $0x3b8] sm:$0xff]
      %v629 = vld [vmem:[%s508 + $0x3c0] sm:$0xff]
      %v630 = vld [vmem:[%s508 + $0x3c8] sm:$0xff]
      %v631 = vld [vmem:[%s508 + $0x3d0] sm:$0xff]
      %v632 = vld [vmem:[%s508 + $0x3d8] sm:$0xff]
      %v633 = vld [vmem:[%s508 + $0x3e0] sm:$0xff]
      %v634 = vld [vmem:[%s508 + $0x3e8] sm:$0xff]
      %v635 = vld [vmem:[%s508 + $0x3f0] sm:$0xff]
      %v636 = vld [vmem:[%s508 + $0x3f8] sm:$0xff]
      %vm643 = vcmask 1046528
      %v644 = vrot.slane %v504, 1
      %v645 = vrot.slane %v374, 1
      %v646 = vsel %vm643, %v644, %v645
      %v647 = vrot.slane %v505, 1
      %v648 = vrot.slane %v375, 1
      %v649 = vsel %vm643, %v647, %v648
      %v650 = vrot.slane %v506, 1
      %v651 = vsel %vm643, %v645, %v650
      %v652 = vrot.slane %v507, 1
      %v653 = vsel %vm643, %v648, %v652
      %658 = vmatprep.subr.mxu0 %v510
      %659 = vmatpush1.msra.mxu0 %v509
      %660 = vmatprep.subr.mxu0 %v514
      %661 = vmatpush1.msra.mxu0 %v513
      %662 = vmatprep.subr.mxu0 %v518
      %663 = vmatpush1.msra.mxu0 %v517
      %664 = vmatprep.subr.mxu0 %v522
      %665 = vmatpush1.msra.mxu0 %v521
      %666 = vmatprep.subr.mxu0 %v526
      %667 = vmatpush1.msra.mxu0 %v525
      %668 = vmatprep.subr.mxu0 %v530
      %669 = vmatpush1.msra.mxu0 %v529
      %670 = vmatprep.subr.mxu0 %v534
      %671 = vmatpush1.msra.mxu0 %v533
      %672 = vmatprep.subr.mxu0 %v538
      %673 = vmatpush1.msra.mxu0 %v537
      %674 = vmatprep.subr.mxu0 %v542
      %675 = vmatpush1.msra.mxu0 %v541
      %676 = vmatprep.subr.mxu0 %v546
      %677 = vmatpush1.msra.mxu0 %v545
      %678 = vmatprep.subr.mxu0 %v550
      %679 = vmatpush1.msra.mxu0 %v549
      %680 = vmatprep.subr.mxu0 %v554
      %681 = vmatpush1.msra.mxu0 %v553
      %682 = vmatprep.subr.mxu0 %v558
      %683 = vmatpush1.msra.mxu0 %v557
      %684 = vmatprep.subr.mxu0 %v562
      %685 = vmatpush1.msra.mxu0 %v561
      %686 = vmatprep.subr.mxu0 %v566
      %687 = vmatpush1.msra.mxu0 %v565
      %688 = vmatprep.subr.mxu0 %v570
      %689 = vmatpush1.msra.mxu0 %v569
      %690 = vmatprep.subr.mxu0 %v574
      %691 = vmatpush1.msra.mxu0 %v573
      %692 = vmatprep.subr.mxu0 %v578
      %693 = vmatpush1.msra.mxu0 %v577
      %694 = vmatprep.subr.mxu0 %v582
      %695 = vmatpush1.msra.mxu0 %v581
      %696 = vmatprep.subr.mxu0 %v586
      %697 = vmatpush1.msra.mxu0 %v585
      %698 = vmatprep.subr.mxu0 %v590
      %699 = vmatpush1.msra.mxu0 %v589
      %700 = vmatprep.subr.mxu0 %v594
      %701 = vmatpush1.msra.mxu0 %v593
      %702 = vmatprep.subr.mxu0 %v598
      %703 = vmatpush1.msra.mxu0 %v597
      %704 = vmatprep.subr.mxu0 %v602
      %705 = vmatpush1.msra.mxu0 %v601
      %706 = vmatprep.subr.mxu0 %v606
      %707 = vmatpush1.msra.mxu0 %v605
      %708 = vmatprep.subr.mxu0 %v610
      %709 = vmatpush1.msra.mxu0 %v609
      %710 = vmatprep.subr.mxu0 %v614
      %711 = vmatpush1.msra.mxu0 %v613
      %712 = vmatprep.subr.mxu0 %v618
      %713 = vmatpush1.msra.mxu0 %v617
      %714 = vmatprep.subr.mxu0 %v622
      %715 = vmatpush1.msra.mxu0 %v621
      %716 = vmatprep.subr.mxu0 %v626
      %717 = vmatpush1.msra.mxu0 %v625
      %718 = vmatprep.subr.mxu0 %v630
      %719 = vmatpush1.msra.mxu0 %v629
      %720 = vmatprep.subr.mxu0 %v634
      %721 = vmatpush1.msra.mxu0 %v633
      %722 = vmatprep.mubr.f32.mxu0 %v649
      %723 = vmatmul.mubr.f32.gmra.mrb[0].mxu0 %v646
      %v724 = vpop.f32.mrb[0].mxu0
      %v725 = vadd.f32 0.0, %v724
      %v726 = vpop.f32.mrb[0].mxu0
      %v727 = vadd.f32 0.0, %v726
      %728 = vmatprep.mubr.f32.mxu0 %v653
      %729 = vmatmul.mubr.f32.gmra.mrb[0].mxu0 %v651
      %v730 = vpop.f32.mrb[0].mxu0
      %v731 = vadd.f32 0.0, %v730
      %v732 = vpop.f32.mrb[0].mxu0
      %v733 = vadd.f32 0.0, %v732
      %734 = vdwg.mxu0
      %735 = vmatprep.subr.mxu0 %v512
      %736 = vmatpush1.msra.mxu0 %v511
      %737 = vmatprep.subr.mxu0 %v516
      %738 = vmatpush1.msra.mxu0 %v515
      %739 = vmatprep.subr.mxu0 %v520
      %740 = vmatpush1.msra.mxu0 %v519
      %741 = vmatprep.subr.mxu0 %v524
      %742 = vmatpush1.msra.mxu0 %v523
      %743 = vmatprep.subr.mxu0 %v528
      %744 = vmatpush1.msra.mxu0 %v527
      %745 = vmatprep.subr.mxu0 %v532
      %746 = vmatpush1.msra.mxu0 %v531
      %747 = vmatprep.subr.mxu0 %v536
      %748 = vmatpush1.msra.mxu0 %v535
      %749 = vmatprep.subr.mxu0 %v540
      %750 = vmatpush1.msra.mxu0 %v539
      %751 = vmatprep.subr.mxu0 %v544
      %752 = vmatpush1.msra.mxu0 %v543
      %753 = vmatprep.subr.mxu0 %v548
      %754 = vmatpush1.msra.mxu0 %v547
      %755 = vmatprep.subr.mxu0 %v552
      %756 = vmatpush1.msra.mxu0 %v551
      %757 = vmatprep.subr.mxu0 %v556
      %758 = vmatpush1.msra.mxu0 %v555
      %759 = vmatprep.subr.mxu0 %v560
      %760 = vmatpush1.msra.mxu0 %v559
      %761 = vmatprep.subr.mxu0 %v564
      %762 = vmatpush1.msra.mxu0 %v563
      %763 = vmatprep.subr.mxu0 %v568
      %764 = vmatpush1.msra.mxu0 %v567
      %765 = vmatprep.subr.mxu0 %v572
      %766 = vmatpush1.msra.mxu0 %v571
      %767 = vmatprep.subr.mxu0 %v576
      %768 = vmatpush1.msra.mxu0 %v575
      %769 = vmatprep.subr.mxu0 %v580
      %770 = vmatpush1.msra.mxu0 %v579
      %771 = vmatprep.subr.mxu0 %v584
      %772 = vmatpush1.msra.mxu0 %v583
      %773 = vmatprep.subr.mxu0 %v588
      %774 = vmatpush1.msra.mxu0 %v587
      %775 = vmatprep.subr.mxu0 %v592
      %776 = vmatpush1.msra.mxu0 %v591
      %777 = vmatprep.subr.mxu0 %v596
      %778 = vmatpush1.msra.mxu0 %v595
      %779 = vmatprep.subr.mxu0 %v600
      %780 = vmatpush1.msra.mxu0 %v599
      %781 = vmatprep.subr.mxu0 %v604
      %782 = vmatpush1.msra.mxu0 %v603
      %783 = vmatprep.subr.mxu0 %v608
      %784 = vmatpush1.msra.mxu0 %v607
      %785 = vmatprep.subr.mxu0 %v612
      %786 = vmatpush1.msra.mxu0 %v611
      %787 = vmatprep.subr.mxu0 %v616
      %788 = vmatpush1.msra.mxu0 %v615
      %789 = vmatprep.subr.mxu0 %v620
      %790 = vmatpush1.msra.mxu0 %v619
      %791 = vmatprep.subr.mxu0 %v624
      %792 = vmatpush1.msra.mxu0 %v623
      %793 = vmatprep.subr.mxu0 %v628
      %794 = vmatpush1.msra.mxu0 %v627
      %795 = vmatprep.subr.mxu0 %v632
      %796 = vmatpush1.msra.mxu0 %v631
      %797 = vmatprep.subr.mxu0 %v636
      %798 = vmatpush1.msra.mxu0 %v635
      %799 = vmatprep.mubr.f32.mxu0 %v649
      %800 = vmatmul.mubr.f32.gmra.mrb[0].mxu0 %v646
      %v801 = vpop.f32.mrb[0].mxu0
      %v802 = vadd.f32 0.0, %v801
      %v803 = vpop.f32.mrb[0].mxu0
      %v804 = vadd.f32 0.0, %v803
      %805 = vmatprep.mubr.f32.mxu0 %v653
      %806 = vmatmul.mubr.f32.gmra.mrb[0].mxu0 %v651
      %v807 = vpop.f32.mrb[0].mxu0
      %v808 = vadd.f32 0.0, %v807
      %v809 = vpop.f32.mrb[0].mxu0
      %v810 = vadd.f32 0.0, %v809
      %811 = vdwg.mxu0
      %812 = vmatprep.subr.mxu0 %v377
      %813 = vmatpush1.msra.mxu0 %v376
      %814 = vmatprep.subr.mxu0 %v381
      %815 = vmatpush1.msra.mxu0 %v380
      %816 = vmatprep.subr.mxu0 %v385
      %817 = vmatpush1.msra.mxu0 %v384
      %818 = vmatprep.subr.mxu0 %v389
      %819 = vmatpush1.msra.mxu0 %v388
      %820 = vmatprep.subr.mxu0 %v393
      %821 = vmatpush1.msra.mxu0 %v392
      %822 = vmatprep.subr.mxu0 %v397
      %823 = vmatpush1.msra.mxu0 %v396
      %824 = vmatprep.subr.mxu0 %v401
      %825 = vmatpush1.msra.mxu0 %v400
      %826 = vmatprep.subr.mxu0 %v405
      %827 = vmatpush1.msra.mxu0 %v404
      %828 = vmatprep.subr.mxu0 %v409
      %829 = vmatpush1.msra.mxu0 %v408
      %830 = vmatprep.subr.mxu0 %v413
      %831 = vmatpush1.msra.mxu0 %v412
      %832 = vmatprep.subr.mxu0 %v417
      %833 = vmatpush1.msra.mxu0 %v416
      %834 = vmatprep.subr.mxu0 %v421
      %835 = vmatpush1.msra.mxu0 %v420
      %836 = vmatprep.subr.mxu0 %v425
      %837 = vmatpush1.msra.mxu0 %v424
      %838 = vmatprep.subr.mxu0 %v429
      %839 = vmatpush1.msra.mxu0 %v428
      %840 = vmatprep.subr.mxu0 %v433
      %841 = vmatpush1.msra.mxu0 %v432
      %842 = vmatprep.subr.mxu0 %v437
      %843 = vmatpush1.msra.mxu0 %v436
      %844 = vmatprep.subr.mxu0 %v441
      %845 = vmatpush1.msra.mxu0 %v440
      %846 = vmatprep.subr.mxu0 %v445
      %847 = vmatpush1.msra.mxu0 %v444
      %848 = vmatprep.subr.mxu0 %v449
      %849 = vmatpush1.msra.mxu0 %v448
      %850 = vmatprep.subr.mxu0 %v453
      %851 = vmatpush1.msra.mxu0 %v452
      %852 = vmatprep.subr.mxu0 %v457
      %853 = vmatpush1.msra.mxu0 %v456
      %854 = vmatprep.subr.mxu0 %v461
      %855 = vmatpush1.msra.mxu0 %v460
      %856 = vmatprep.subr.mxu0 %v465
      %857 = vmatpush1.msra.mxu0 %v464
      %858 = vmatprep.subr.mxu0 %v469
      %859 = vmatpush1.msra.mxu0 %v468
      %860 = vmatprep.subr.mxu0 %v473
      %861 = vmatpush1.msra.mxu0 %v472
      %862 = vmatprep.subr.mxu0 %v477
      %863 = vmatpush1.msra.mxu0 %v476
      %864 = vmatprep.subr.mxu0 %v481
      %865 = vmatpush1.msra.mxu0 %v480
      %866 = vmatprep.subr.mxu0 %v485
      %867 = vmatpush1.msra.mxu0 %v484
      %868 = vmatprep.subr.mxu0 %v489
      %869 = vmatpush1.msra.mxu0 %v488
      %870 = vmatprep.subr.mxu0 %v493
      %871 = vmatpush1.msra.mxu0 %v492
      %872 = vmatprep.subr.mxu0 %v497
      %873 = vmatpush1.msra.mxu0 %v496
      %874 = vmatprep.subr.mxu0 %v501
      %875 = vmatpush1.msra.mxu0 %v500
      %876 = vmatprep.mubr.f32.mxu0 %v373
      %877 = vmatmul.mubr.f32.gmra.mrb[0].mxu0 %v372
      %v878 = vpop.f32.mrb[0].mxu0
      %v879 = vadd.f32 %v725, %v878
      %v880 = vpop.f32.mrb[0].mxu0
      %v881 = vadd.f32 %v727, %v880
      %882 = vmatprep.mubr.f32.mxu0 %v375
      %883 = vmatmul.mubr.f32.gmra.mrb[0].mxu0 %v374
      %v884 = vpop.f32.mrb[0].mxu0
      %v885 = vadd.f32 %v731, %v884
      %v886 = vpop.f32.mrb[0].mxu0
      %v887 = vadd.f32 %v733, %v886
      %888 = vdwg.mxu0
      %889 = vmatprep.subr.mxu0 %v379
      %890 = vmatpush1.msra.mxu0 %v378
      %891 = vmatprep.subr.mxu0 %v383
      %892 = vmatpush1.msra.mxu0 %v382
      %893 = vmatprep.subr.mxu0 %v387
      %894 = vmatpush1.msra.mxu0 %v386
      %895 = vmatprep.subr.mxu0 %v391
      %896 = vmatpush1.msra.mxu0 %v390
      %897 = vmatprep.subr.mxu0 %v395
      %898 = vmatpush1.msra.mxu0 %v394
      %899 = vmatprep.subr.mxu0 %v399
      %900 = vmatpush1.msra.mxu0 %v398
      %901 = vmatprep.subr.mxu0 %v403
      %902 = vmatpush1.msra.mxu0 %v402
      %903 = vmatprep.subr.mxu0 %v407
      %904 = vmatpush1.msra.mxu0 %v406
      %905 = vmatprep.subr.mxu0 %v411
      %906 = vmatpush1.msra.mxu0 %v410
      %907 = vmatprep.subr.mxu0 %v415
      %908 = vmatpush1.msra.mxu0 %v414
      %909 = vmatprep.subr.mxu0 %v419
      %910 = vmatpush1.msra.mxu0 %v418
      %911 = vmatprep.subr.mxu0 %v423
      %912 = vmatpush1.msra.mxu0 %v422
      %913 = vmatprep.subr.mxu0 %v427
      %914 = vmatpush1.msra.mxu0 %v426
      %915 = vmatprep.subr.mxu0 %v431
      %916 = vmatpush1.msra.mxu0 %v430
      %917 = vmatprep.subr.mxu0 %v435
      %918 = vmatpush1.msra.mxu0 %v434
      %919 = vmatprep.subr.mxu0 %v439
      %920 = vmatpush1.msra.mxu0 %v438
      %921 = vmatprep.subr.mxu0 %v443
      %922 = vmatpush1.msra.mxu0 %v442
      %923 = vmatprep.subr.mxu0 %v447
      %924 = vmatpush1.msra.mxu0 %v446
      %925 = vmatprep.subr.mxu0 %v451
      %926 = vmatpush1.msra.mxu0 %v450
      %927 = vmatprep.subr.mxu0 %v455
      %928 = vmatpush1.msra.mxu0 %v454
      %929 = vmatprep.subr.mxu0 %v459
      %930 = vmatpush1.msra.mxu0 %v458
      %931 = vmatprep.subr.mxu0 %v463
      %932 = vmatpush1.msra.mxu0 %v462
      %933 = vmatprep.subr.mxu0 %v467
      %934 = vmatpush1.msra.mxu0 %v466
      %935 = vmatprep.subr.mxu0 %v471
      %936 = vmatpush1.msra.mxu0 %v470
      %937 = vmatprep.subr.mxu0 %v475
      %938 = vmatpush1.msra.mxu0 %v474
      %939 = vmatprep.subr.mxu0 %v479
      %940 = vmatpush1.msra.mxu0 %v478
      %941 = vmatprep.subr.mxu0 %v483
      %942 = vmatpush1.msra.mxu0 %v482
      %943 = vmatprep.subr.mxu0 %v487
      %944 = vmatpush1.msra.mxu0 %v486
      %945 = vmatprep.subr.mxu0 %v491
      %946 = vmatpush1.msra.mxu0 %v490
      %947 = vmatprep.subr.mxu0 %v495
      %948 = vmatpush1.msra.mxu0 %v494
      %949 = vmatprep.subr.mxu0 %v499
      %950 = vmatpush1.msra.mxu0 %v498
      %951 = vmatprep.subr.mxu0 %v503
      %952 = vmatpush1.msra.mxu0 %v502
      %953 = vmatprep.mubr.f32.mxu0 %v373
      %954 = vmatmul.mubr.f32.gmra.mrb[0].mxu0 %v372
      %v955 = vpop.f32.mrb[0].mxu0
      %v956 = vadd.f32 %v802, %v955
      %v957 = vpop.f32.mrb[0].mxu0
      %v958 = vadd.f32 %v804, %v957
      %959 = vmatprep.mubr.f32.mxu0 %v375
      %960 = vmatmul.mubr.f32.gmra.mrb[0].mxu0 %v374
      %v961 = vpop.f32.mrb[0].mxu0
      %v962 = vadd.f32 %v808, %v961
      %v963 = vpop.f32.mrb[0].mxu0
      %v964 = vadd.f32 %v810, %v963
      %965 = vdwg.mxu0
      %v966 = vld [vmem:[#allocation2] sm:$0xfc]
      %v967 = vld [vmem:[#allocation2 + $0x8] sm:$0xfc]
      %v968 = vld [vmem:[#allocation2 + $0x20] sm:$0x3]
      %v969 = vld [vmem:[#allocation2 + $0x28] sm:$0x3]
      %s970 = scalar_lea.vmem %s1, 2048
      %v971 = vld [vmem:[%s970] sm:$0xff]
      %v972 = vld [vmem:[%s970 + $0x8] sm:$0xff]
      %v973 = vld [vmem:[%s970 + $0x10] sm:$0xff]
      %v974 = vld [vmem:[%s970 + $0x18] sm:$0xff]
      %v975 = vld [vmem:[%s970 + $0x20] sm:$0xff]
      %v976 = vld [vmem:[%s970 + $0x28] sm:$0xff]
      %v977 = vld [vmem:[%s970 + $0x30] sm:$0xff]
      %v978 = vld [vmem:[%s970 + $0x38] sm:$0xff]
      %v979 = vld [vmem:[%s970 + $0x40] sm:$0xff]
      %v980 = vld [vmem:[%s970 + $0x48] sm:$0xff]
      %v981 = vld [vmem:[%s970 + $0x50] sm:$0xff]
      %v982 = vld [vmem:[%s970 + $0x58] sm:$0xff]
      %v983 = vld [vmem:[%s970 + $0x60] sm:$0xff]
      %v984 = vld [vmem:[%s970 + $0x68] sm:$0xff]
      %v985 = vld [vmem:[%s970 + $0x70] sm:$0xff]
      %v986 = vld [vmem:[%s970 + $0x78] sm:$0xff]
      %v987 = vld [vmem:[%s970 + $0x80] sm:$0xff]
      %v988 = vld [vmem:[%s970 + $0x88] sm:$0xff]
      %v989 = vld [vmem:[%s970 + $0x90] sm:$0xff]
      %v990 = vld [vmem:[%s970 + $0x98] sm:$0xff]
      %v991 = vld [vmem:[%s970 + $0xa0] sm:$0xff]
      %v992 = vld [vmem:[%s970 + $0xa8] sm:$0xff]
      %v993 = vld [vmem:[%s970 + $0xb0] sm:$0xff]
      %v994 = vld [vmem:[%s970 + $0xb8] sm:$0xff]
      %v995 = vld [vmem:[%s970 + $0xc0] sm:$0xff]
      %v996 = vld [vmem:[%s970 + $0xc8] sm:$0xff]
      %v997 = vld [vmem:[%s970 + $0xd0] sm:$0xff]
      %v998 = vld [vmem:[%s970 + $0xd8] sm:$0xff]
      %v999 = vld [vmem:[%s970 + $0xe0] sm:$0xff]
      %v1000 = vld [vmem:[%s970 + $0xe8] sm:$0xff]
      %v1001 = vld [vmem:[%s970 + $0xf0] sm:$0xff]
      %v1002 = vld [vmem:[%s970 + $0xf8] sm:$0xff]
      %v1003 = vld [vmem:[%s970 + $0x100] sm:$0xff]
      %v1004 = vld [vmem:[%s970 + $0x108] sm:$0xff]
      %v1005 = vld [vmem:[%s970 + $0x110] sm:$0xff]
      %v1006 = vld [vmem:[%s970 + $0x118] sm:$0xff]
      %v1007 = vld [vmem:[%s970 + $0x120] sm:$0xff]
      %v1008 = vld [vmem:[%s970 + $0x128] sm:$0xff]
      %v1009 = vld [vmem:[%s970 + $0x130] sm:$0xff]
      %v1010 = vld [vmem:[%s970 + $0x138] sm:$0xff]
      %v1011 = vld [vmem:[%s970 + $0x140] sm:$0xff]
      %v1012 = vld [vmem:[%s970 + $0x148] sm:$0xff]
      %v1013 = vld [vmem:[%s970 + $0x150] sm:$0xff]
      %v1014 = vld [vmem:[%s970 + $0x158] sm:$0xff]
      %v1015 = vld [vmem:[%s970 + $0x160] sm:$0xff]
      %v1016 = vld [vmem:[%s970 + $0x168] sm:$0xff]
      %v1017 = vld [vmem:[%s970 + $0x170] sm:$0xff]
      %v1018 = vld [vmem:[%s970 + $0x178] sm:$0xff]
      %v1019 = vld [vmem:[%s970 + $0x180] sm:$0xff]
      %v1020 = vld [vmem:[%s970 + $0x188] sm:$0xff]
      %v1021 = vld [vmem:[%s970 + $0x190] sm:$0xff]
      %v1022 = vld [vmem:[%s970 + $0x198] sm:$0xff]
      %v1023 = vld [vmem:[%s970 + $0x1a0] sm:$0xff]
      %v1024 = vld [vmem:[%s970 + $0x1a8] sm:$0xff]
      %v1025 = vld [vmem:[%s970 + $0x1b0] sm:$0xff]
      %v1026 = vld [vmem:[%s970 + $0x1b8] sm:$0xff]
      %v1027 = vld [vmem:[%s970 + $0x1c0] sm:$0xff]
      %v1028 = vld [vmem:[%s970 + $0x1c8] sm:$0xff]
      %v1029 = vld [vmem:[%s970 + $0x1d0] sm:$0xff]
      %v1030 = vld [vmem:[%s970 + $0x1d8] sm:$0xff]
      %v1031 = vld [vmem:[%s970 + $0x1e0] sm:$0xff]
      %v1032 = vld [vmem:[%s970 + $0x1e8] sm:$0xff]
      %v1033 = vld [vmem:[%s970 + $0x1f0] sm:$0xff]
      %v1034 = vld [vmem:[%s970 + $0x1f8] sm:$0xff]
      %v1035 = vld [vmem:[%s970 + $0x200] sm:$0xff]
      %v1036 = vld [vmem:[%s970 + $0x208] sm:$0xff]
      %v1037 = vld [vmem:[%s970 + $0x210] sm:$0xff]
      %v1038 = vld [vmem:[%s970 + $0x218] sm:$0xff]
      %v1039 = vld [vmem:[%s970 + $0x220] sm:$0xff]
      %v1040 = vld [vmem:[%s970 + $0x228] sm:$0xff]
      %v1041 = vld [vmem:[%s970 + $0x230] sm:$0xff]
      %v1042 = vld [vmem:[%s970 + $0x238] sm:$0xff]
      %v1043 = vld [vmem:[%s970 + $0x240] sm:$0xff]
      %v1044 = vld [vmem:[%s970 + $0x248] sm:$0xff]
      %v1045 = vld [vmem:[%s970 + $0x250] sm:$0xff]
      %v1046 = vld [vmem:[%s970 + $0x258] sm:$0xff]
      %v1047 = vld [vmem:[%s970 + $0x260] sm:$0xff]
      %v1048 = vld [vmem:[%s970 + $0x268] sm:$0xff]
      %v1049 = vld [vmem:[%s970 + $0x270] sm:$0xff]
      %v1050 = vld [vmem:[%s970 + $0x278] sm:$0xff]
      %v1051 = vld [vmem:[%s970 + $0x280] sm:$0xff]
      %v1052 = vld [vmem:[%s970 + $0x288] sm:$0xff]
      %v1053 = vld [vmem:[%s970 + $0x290] sm:$0xff]
      %v1054 = vld [vmem:[%s970 + $0x298] sm:$0xff]
      %v1055 = vld [vmem:[%s970 + $0x2a0] sm:$0xff]
      %v1056 = vld [vmem:[%s970 + $0x2a8] sm:$0xff]
      %v1057 = vld [vmem:[%s970 + $0x2b0] sm:$0xff]
      %v1058 = vld [vmem:[%s970 + $0x2b8] sm:$0xff]
      %v1059 = vld [vmem:[%s970 + $0x2c0] sm:$0xff]
      %v1060 = vld [vmem:[%s970 + $0x2c8] sm:$0xff]
      %v1061 = vld [vmem:[%s970 + $0x2d0] sm:$0xff]
      %v1062 = vld [vmem:[%s970 + $0x2d8] sm:$0xff]
      %v1063 = vld [vmem:[%s970 + $0x2e0] sm:$0xff]
      %v1064 = vld [vmem:[%s970 + $0x2e8] sm:$0xff]
      %v1065 = vld [vmem:[%s970 + $0x2f0] sm:$0xff]
      %v1066 = vld [vmem:[%s970 + $0x2f8] sm:$0xff]
      %v1067 = vld [vmem:[%s970 + $0x300] sm:$0xff]
      %v1068 = vld [vmem:[%s970 + $0x308] sm:$0xff]
      %v1069 = vld [vmem:[%s970 + $0x310] sm:$0xff]
      %v1070 = vld [vmem:[%s970 + $0x318] sm:$0xff]
      %v1071 = vld [vmem:[%s970 + $0x320] sm:$0xff]
      %v1072 = vld [vmem:[%s970 + $0x328] sm:$0xff]
      %v1073 = vld [vmem:[%s970 + $0x330] sm:$0xff]
      %v1074 = vld [vmem:[%s970 + $0x338] sm:$0xff]
      %v1075 = vld [vmem:[%s970 + $0x340] sm:$0xff]
      %v1076 = vld [vmem:[%s970 + $0x348] sm:$0xff]
      %v1077 = vld [vmem:[%s970 + $0x350] sm:$0xff]
      %v1078 = vld [vmem:[%s970 + $0x358] sm:$0xff]
      %v1079 = vld [vmem:[%s970 + $0x360] sm:$0xff]
      %v1080 = vld [vmem:[%s970 + $0x368] sm:$0xff]
      %v1081 = vld [vmem:[%s970 + $0x370] sm:$0xff]
      %v1082 = vld [vmem:[%s970 + $0x378] sm:$0xff]
      %v1083 = vld [vmem:[%s970 + $0x380] sm:$0xff]
      %v1084 = vld [vmem:[%s970 + $0x388] sm:$0xff]
      %v1085 = vld [vmem:[%s970 + $0x390] sm:$0xff]
      %v1086 = vld [vmem:[%s970 + $0x398] sm:$0xff]
      %v1087 = vld [vmem:[%s970 + $0x3a0] sm:$0xff]
      %v1088 = vld [vmem:[%s970 + $0x3a8] sm:$0xff]
      %v1089 = vld [vmem:[%s970 + $0x3b0] sm:$0xff]
      %v1090 = vld [vmem:[%s970 + $0x3b8] sm:$0xff]
      %v1091 = vld [vmem:[%s970 + $0x3c0] sm:$0xff]
      %v1092 = vld [vmem:[%s970 + $0x3c8] sm:$0xff]
      %v1093 = vld [vmem:[%s970 + $0x3d0] sm:$0xff]
      %v1094 = vld [vmem:[%s970 + $0x3d8] sm:$0xff]
      %v1095 = vld [vmem:[%s970 + $0x3e0] sm:$0xff]
      %v1096 = vld [vmem:[%s970 + $0x3e8] sm:$0xff]
      %v1097 = vld [vmem:[%s970 + $0x3f0] sm:$0xff]
      %v1098 = vld [vmem:[%s970 + $0x3f8] sm:$0xff]
      %vm1103 = vcmask 1045504
      %v1104 = vrot.slane %v966, 2
      %v1105 = vrot.slane %v374, 2
      %v1106 = vsel %vm1103, %v1104, %v1105
      %v1107 = vrot.slane %v967, 2
      %v1108 = vrot.slane %v375, 2
      %v1109 = vsel %vm1103, %v1107, %v1108
      %v1110 = vrot.slane %v968, 2
      %v1111 = vsel %vm1103, %v1105, %v1110
      %v1112 = vrot.slane %v969, 2
      %v1113 = vsel %vm1103, %v1108, %v1112
      %1118 = vmatprep.subr.mxu0 %v972
      %1119 = vmatpush1.msra.mxu0 %v971
      %1120 = vmatprep.subr.mxu0 %v976
      %1121 = vmatpush1.msra.mxu0 %v975
      %1122 = vmatprep.subr.mxu0 %v980
      %1123 = vmatpush1.msra.mxu0 %v979
      %1124 = vmatprep.subr.mxu0 %v984
      %1125 = vmatpush1.msra.mxu0 %v983
      %1126 = vmatprep.subr.mxu0 %v988
      %1127 = vmatpush1.msra.mxu0 %v987
      %1128 = vmatprep.subr.mxu0 %v992
      %1129 = vmatpush1.msra.mxu0 %v991
      %1130 = vmatprep.subr.mxu0 %v996
      %1131 = vmatpush1.msra.mxu0 %v995
      %1132 = vmatprep.subr.mxu0 %v1000
      %1133 = vmatpush1.msra.mxu0 %v999
      %1134 = vmatprep.subr.mxu0 %v1004
      %1135 = vmatpush1.msra.mxu0 %v1003
      %1136 = vmatprep.subr.mxu0 %v1008
      %1137 = vmatpush1.msra.mxu0 %v1007
      %1138 = vmatprep.subr.mxu0 %v1012
      %1139 = vmatpush1.msra.mxu0 %v1011
      %1140 = vmatprep.subr.mxu0 %v1016
      %1141 = vmatpush1.msra.mxu0 %v1015
      %1142 = vmatprep.subr.mxu0 %v1020
      %1143 = vmatpush1.msra.mxu0 %v1019
      %1144 = vmatprep.subr.mxu0 %v1024
      %1145 = vmatpush1.msra.mxu0 %v1023
      %1146 = vmatprep.subr.mxu0 %v1028
      %1147 = vmatpush1.msra.mxu0 %v1027
      %1148 = vmatprep.subr.mxu0 %v1032
      %1149 = vmatpush1.msra.mxu0 %v1031
      %1150 = vmatprep.subr.mxu0 %v1036
      %1151 = vmatpush1.msra.mxu0 %v1035
      %1152 = vmatprep.subr.mxu0 %v1040
      %1153 = vmatpush1.msra.mxu0 %v1039
      %1154 = vmatprep.subr.mxu0 %v1044
      %1155 = vmatpush1.msra.mxu0 %v1043
      %1156 = vmatprep.subr.mxu0 %v1048
      %1157 = vmatpush1.msra.mxu0 %v1047
      %1158 = vmatprep.subr.mxu0 %v1052
      %1159 = vmatpush1.msra.mxu0 %v1051
      %1160 = vmatprep.subr.mxu0 %v1056
      %1161 = vmatpush1.msra.mxu0 %v1055
      %1162 = vmatprep.subr.mxu0 %v1060
      %1163 = vmatpush1.msra.mxu0 %v1059
      %1164 = vmatprep.subr.mxu0 %v1064
      %1165 = vmatpush1.msra.mxu0 %v1063
      %1166 = vmatprep.subr.mxu0 %v1068
      %1167 = vmatpush1.msra.mxu0 %v1067
      %1168 = vmatprep.subr.mxu0 %v1072
      %1169 = vmatpush1.msra.mxu0 %v1071
      %1170 = vmatprep.subr.mxu0 %v1076
      %1171 = vmatpush1.msra.mxu0 %v1075
      %1172 = vmatprep.subr.mxu0 %v1080
      %1173 = vmatpush1.msra.mxu0 %v1079
      %1174 = vmatprep.subr.mxu0 %v1084
      %1175 = vmatpush1.msra.mxu0 %v1083
      %1176 = vmatprep.subr.mxu0 %v1088
      %1177 = vmatpush1.msra.mxu0 %v1087
      %1178 = vmatprep.subr.mxu0 %v1092
      %1179 = vmatpush1.msra.mxu0 %v1091
      %1180 = vmatprep.subr.mxu0 %v1096
      %1181 = vmatpush1.msra.mxu0 %v1095
      %1182 = vmatprep.mubr.f32.mxu0 %v1109
      %1183 = vmatmul.mubr.f32.gmra.mrb[0].mxu0 %v1106
      %v1184 = vpop.f32.mrb[0].mxu0
      %v1185 = vadd.f32 0.0, %v1184
      %v1186 = vpop.f32.mrb[0].mxu0
      %v1187 = vadd.f32 0.0, %v1186
      %1188 = vmatprep.mubr.f32.mxu0 %v1113
      %1189 = vmatmul.mubr.f32.gmra.mrb[0].mxu0 %v1111
      %v1190 = vpop.f32.mrb[0].mxu0
      %v1191 = vadd.f32 0.0, %v1190
      %v1192 = vpop.f32.mrb[0].mxu0
      %v1193 = vadd.f32 0.0, %v1192
      %1194 = vdwg.mxu0
      %1195 = vmatprep.subr.mxu0 %v974
      %1196 = vmatpush1.msra.mxu0 %v973
      %1197 = vmatprep.subr.mxu0 %v978
      %1198 = vmatpush1.msra.mxu0 %v977
      %1199 = vmatprep.subr.mxu0 %v982
      %1200 = vmatpush1.msra.mxu0 %v981
      %1201 = vmatprep.subr.mxu0 %v986
      %1202 = vmatpush1.msra.mxu0 %v985
      %1203 = vmatprep.subr.mxu0 %v990
      %1204 = vmatpush1.msra.mxu0 %v989
      %1205 = vmatprep.subr.mxu0 %v994
      %1206 = vmatpush1.msra.mxu0 %v993
      %1207 = vmatprep.subr.mxu0 %v998
      %1208 = vmatpush1.msra.mxu0 %v997
      %1209 = vmatprep.subr.mxu0 %v1002
      %1210 = vmatpush1.msra.mxu0 %v1001
      %1211 = vmatprep.subr.mxu0 %v1006
      %1212 = vmatpush1.msra.mxu0 %v1005
      %1213 = vmatprep.subr.mxu0 %v1010
      %1214 = vmatpush1.msra.mxu0 %v1009
      %1215 = vmatprep.subr.mxu0 %v1014
      %1216 = vmatpush1.msra.mxu0 %v1013
      %1217 = vmatprep.subr.mxu0 %v1018
      %1218 = vmatpush1.msra.mxu0 %v1017
      %1219 = vmatprep.subr.mxu0 %v1022
      %1220 = vmatpush1.msra.mxu0 %v1021
      %1221 = vmatprep.subr.mxu0 %v1026
      %1222 = vmatpush1.msra.mxu0 %v1025
      %1223 = vmatprep.subr.mxu0 %v1030
      %1224 = vmatpush1.msra.mxu0 %v1029
      %1225 = vmatprep.subr.mxu0 %v1034
      %1226 = vmatpush1.msra.mxu0 %v1033
      %1227 = vmatprep.subr.mxu0 %v1038
      %1228 = vmatpush1.msra.mxu0 %v1037
      %1229 = vmatprep.subr.mxu0 %v1042
      %1230 = vmatpush1.msra.mxu0 %v1041
      %1231 = vmatprep.subr.mxu0 %v1046
      %1232 = vmatpush1.msra.mxu0 %v1045
      %1233 = vmatprep.subr.mxu0 %v1050
      %1234 = vmatpush1.msra.mxu0 %v1049
      %1235 = vmatprep.subr.mxu0 %v1054
      %1236 = vmatpush1.msra.mxu0 %v1053
      %1237 = vmatprep.subr.mxu0 %v1058
      %1238 = vmatpush1.msra.mxu0 %v1057
      %1239 = vmatprep.subr.mxu0 %v1062
      %1240 = vmatpush1.msra.mxu0 %v1061
      %1241 = vmatprep.subr.mxu0 %v1066
      %1242 = vmatpush1.msra.mxu0 %v1065
      %1243 = vmatprep.subr.mxu0 %v1070
      %1244 = vmatpush1.msra.mxu0 %v1069
      %1245 = vmatprep.subr.mxu0 %v1074
      %1246 = vmatpush1.msra.mxu0 %v1073
      %1247 = vmatprep.subr.mxu0 %v1078
      %1248 = vmatpush1.msra.mxu0 %v1077
      %1249 = vmatprep.subr.mxu0 %v1082
      %1250 = vmatpush1.msra.mxu0 %v1081
      %1251 = vmatprep.subr.mxu0 %v1086
      %1252 = vmatpush1.msra.mxu0 %v1085
      %1253 = vmatprep.subr.mxu0 %v1090
      %1254 = vmatpush1.msra.mxu0 %v1089
      %1255 = vmatprep.subr.mxu0 %v1094
      %1256 = vmatpush1.msra.mxu0 %v1093
      %1257 = vmatprep.subr.mxu0 %v1098
      %1258 = vmatpush1.msra.mxu0 %v1097
      %1259 = vmatprep.mubr.f32.mxu0 %v1109
      %1260 = vmatmul.mubr.f32.gmra.mrb[0].mxu0 %v1106
      %v1261 = vpop.f32.mrb[0].mxu0
      %v1262 = vadd.f32 0.0, %v1261
      %v1263 = vpop.f32.mrb[0].mxu0
      %v1264 = vadd.f32 0.0, %v1263
      %1265 = vmatprep.mubr.f32.mxu0 %v1113
      %1266 = vmatmul.mubr.f32.gmra.mrb[0].mxu0 %v1111
      %v1267 = vpop.f32.mrb[0].mxu0
      %v1268 = vadd.f32 0.0, %v1267
      %v1269 = vpop.f32.mrb[0].mxu0
      %v1270 = vadd.f32 0.0, %v1269
      %1271 = vdwg.mxu0
      %v1272 = vadd.f32 %v879, %v1185
      %v1273 = vadd.f32 %v881, %v1187
      %v1274 = vadd.f32 %v956, %v1262
      %v1275 = vadd.f32 %v958, %v1264
      %v1276 = vadd.f32 %v885, %v1191
      %v1277 = vadd.f32 %v887, %v1193
      %v1278 = vadd.f32 %v962, %v1268
      %v1279 = vadd.f32 %v964, %v1270
      %v1281 = vlaneseq
      %v1282 = vshrl.u32 %v1281, 7
      %v1283 = vsub.s32 0, %v1282
      %v1284 = vrot.slane %v371, %v1283
      %v1285 = vlaneseq
      %v1286 = vshrl.u32 %v1285, 7
      %v1287 = vsub.s32 1, %v1286
      %v1288 = vrot.slane %v371, %v1287
      %v1289 = vlaneseq
      %v1290 = vshrl.u32 %v1289, 7
      %v1291 = vsub.s32 2, %v1290
      %v1292 = vrot.slane %v371, %v1291
      %v1293 = vlaneseq
      %v1294 = vshrl.u32 %v1293, 7
      %v1295 = vsub.s32 3, %v1294
      %v1296 = vrot.slane %v371, %v1295
      %v1301 = vadd.f32 %v1272, %v1284
      %v1302 = vadd.f32 %v1273, %v1288
      %v1303 = vadd.f32 %v1274, %v1292
      %v1304 = vadd.f32 %v1275, %v1296
      %v1305 = vadd.f32 %v1276, %v1284
      %v1306 = vadd.f32 %v1277, %v1288
      %v1307 = vadd.f32 %v1278, %v1292
      %v1308 = vadd.f32 %v1279, %v1296
      %v1309 = vmax.f32 %v1301, 0.0
      %v1310 = vmax.f32 %v1302, 0.0
      %v1311 = vmax.f32 %v1303, 0.0
      %v1312 = vmax.f32 %v1304, 0.0
      %v1313 = vmax.f32 %v1305, 0.0
      %v1314 = vmax.f32 %v1306, 0.0
      %v1315 = vmax.f32 %v1307, 0.0
      %v1316 = vmax.f32 %v1308, 0.0
      %vm1317 = vcmp.lt.s32.totalorder %v335, 512
      %vm1318 = vmand %vm336, %vm1317
      %1319 = vst.msk [vmem:[#allocation3] ss:$8 sm:$0xf] %vm1318, 0.0
      %1320 = vst.msk [vmem:[#allocation3] ss:$8 sm:$0x0] %vm1318, 0.0
      %s1321 = scalar_lea.vmem [#allocation3], 65
      %1322 = vst.msk [vmem:[%s1321] ss:$8 sm:$0xf] %vm1318, 0.0
      %1323 = vst.msk [vmem:[%s1321] ss:$8 sm:$0x0] %vm1318, 0.0
      %v1332 = vrot.slane %v1309, 7
      %v1333 = vrot.slane %v1310, 7
      %v1334 = vrot.slane %v1311, 7
      %v1335 = vrot.slane %v1312, 7
      %v1336 = vrot.slane %v1313, 7
      %v1337 = vsel %vm352, %v1332, %v1336
      %v1338 = vrot.slane %v1314, 7
      %v1339 = vsel %vm352, %v1333, %v1338
      %v1340 = vrot.slane %v1315, 7
      %v1341 = vsel %vm352, %v1334, %v1340
      %v1342 = vrot.slane %v1316, 7
      %v1343 = vsel %vm352, %v1335, %v1342
      %1356 = vst [vmem:[#allocation3] sm:$0xfe] %v1332
      %1357 = vst [vmem:[#allocation3 + $0x8] sm:$0xfe] %v1333
      %1358 = vst [vmem:[#allocation3 + $0x10] sm:$0xfe] %v1334
      %1359 = vst [vmem:[#allocation3 + $0x18] sm:$0xfe] %v1335
      %1360 = vst [vmem:[#allocation3 + $0x20] sm:$0xff] %v1337
      %1361 = vst [vmem:[#allocation3 + $0x28] sm:$0xff] %v1339
      %1362 = vst [vmem:[#allocation3 + $0x30] sm:$0xff] %v1341
      %1363 = vst [vmem:[#allocation3 + $0x38] sm:$0xff] %v1343
      %1364 = vst [vmem:[#allocation3 + $0x40] sm:$0x1] %v1336
      %1365 = vst [vmem:[#allocation3 + $0x48] sm:$0x1] %v1338
      %1366 = vst [vmem:[#allocation3 + $0x50] sm:$0x1] %v1340
      %1367 = vst [vmem:[#allocation3 + $0x58] sm:$0x1] %v1342
      %v1368 = vld [vmem:[%s4] sm:$0x3]
      %v1369 = vld [vmem:[#allocation3] sm:$0xff]
      %v1370 = vld [vmem:[#allocation3 + $0x8] sm:$0xff]
      %v1371 = vld [vmem:[#allocation3 + $0x10] sm:$0xff]
      %v1372 = vld [vmem:[#allocation3 + $0x18] sm:$0xff]
      %v1373 = vld [vmem:[#allocation3 + $0x20] sm:$0xff]
      %v1374 = vld [vmem:[#allocation3 + $0x28] sm:$0xff]
      %v1375 = vld [vmem:[#allocation3 + $0x30] sm:$0xff]
      %v1376 = vld [vmem:[#allocation3 + $0x38] sm:$0xff]
      %v1377 = vld [vmem:[%s3] sm:$0xff]
      %v1378 = vld [vmem:[%s3 + $0x8] sm:$0xff]
      %v1379 = vld [vmem:[%s3 + $0x10] sm:$0xff]
      %v1380 = vld [vmem:[%s3 + $0x18] sm:$0xff]
      %v1381 = vld [vmem:[%s3 + $0x20] sm:$0xff]
      %v1382 = vld [vmem:[%s3 + $0x28] sm:$0xff]
      %v1383 = vld [vmem:[%s3 + $0x30] sm:$0xff]
      %v1384 = vld [vmem:[%s3 + $0x38] sm:$0xff]
      %v1385 = vld [vmem:[%s3 + $0x40] sm:$0xff]
      %v1386 = vld [vmem:[%s3 + $0x48] sm:$0xff]
      %v1387 = vld [vmem:[%s3 + $0x50] sm:$0xff]
      %v1388 = vld [vmem:[%s3 + $0x58] sm:$0xff]
      %v1389 = vld [vmem:[%s3 + $0x60] sm:$0xff]
      %v1390 = vld [vmem:[%s3 + $0x68] sm:$0xff]
      %v1391 = vld [vmem:[%s3 + $0x70] sm:$0xff]
      %v1392 = vld [vmem:[%s3 + $0x78] sm:$0xff]
      %v1393 = vld [vmem:[%s3 + $0x80] sm:$0xff]
      %v1394 = vld [vmem:[%s3 + $0x88] sm:$0xff]
      %v1395 = vld [vmem:[%s3 + $0x90] sm:$0xff]
      %v1396 = vld [vmem:[%s3 + $0x98] sm:$0xff]
      %v1397 = vld [vmem:[%s3 + $0xa0] sm:$0xff]
      %v1398 = vld [vmem:[%s3 + $0xa8] sm:$0xff]
      %v1399 = vld [vmem:[%s3 + $0xb0] sm:$0xff]
      %v1400 = vld [vmem:[%s3 + $0xb8] sm:$0xff]
      %v1401 = vld [vmem:[%s3 + $0xc0] sm:$0xff]
      %v1402 = vld [vmem:[%s3 + $0xc8] sm:$0xff]
      %v1403 = vld [vmem:[%s3 + $0xd0] sm:$0xff]
      %v1404 = vld [vmem:[%s3 + $0xd8] sm:$0xff]
      %v1405 = vld [vmem:[%s3 + $0xe0] sm:$0xff]
      %v1406 = vld [vmem:[%s3 + $0xe8] sm:$0xff]
      %v1407 = vld [vmem:[%s3 + $0xf0] sm:$0xff]
      %v1408 = vld [vmem:[%s3 + $0xf8] sm:$0xff]
      %v1409 = vld [vmem:[%s3 + $0x100] sm:$0xff]
      %v1410 = vld [vmem:[%s3 + $0x108] sm:$0xff]
      %v1411 = vld [vmem:[%s3 + $0x110] sm:$0xff]
      %v1412 = vld [vmem:[%s3 + $0x118] sm:$0xff]
      %v1413 = vld [vmem:[%s3 + $0x120] sm:$0xff]
      %v1414 = vld [vmem:[%s3 + $0x128] sm:$0xff]
      %v1415 = vld [vmem:[%s3 + $0x130] sm:$0xff]
      %v1416 = vld [vmem:[%s3 + $0x138] sm:$0xff]
      %v1417 = vld [vmem:[%s3 + $0x140] sm:$0xff]
      %v1418 = vld [vmem:[%s3 + $0x148] sm:$0xff]
      %v1419 = vld [vmem:[%s3 + $0x150] sm:$0xff]
      %v1420 = vld [vmem:[%s3 + $0x158] sm:$0xff]
      %v1421 = vld [vmem:[%s3 + $0x160] sm:$0xff]
      %v1422 = vld [vmem:[%s3 + $0x168] sm:$0xff]
      %v1423 = vld [vmem:[%s3 + $0x170] sm:$0xff]
      %v1424 = vld [vmem:[%s3 + $0x178] sm:$0xff]
      %v1425 = vld [vmem:[%s3 + $0x180] sm:$0xff]
      %v1426 = vld [vmem:[%s3 + $0x188] sm:$0xff]
      %v1427 = vld [vmem:[%s3 + $0x190] sm:$0xff]
      %v1428 = vld [vmem:[%s3 + $0x198] sm:$0xff]
      %v1429 = vld [vmem:[%s3 + $0x1a0] sm:$0xff]
      %v1430 = vld [vmem:[%s3 + $0x1a8] sm:$0xff]
      %v1431 = vld [vmem:[%s3 + $0x1b0] sm:$0xff]
      %v1432 = vld [vmem:[%s3 + $0x1b8] sm:$0xff]
      %v1433 = vld [vmem:[%s3 + $0x1c0] sm:$0xff]
      %v1434 = vld [vmem:[%s3 + $0x1c8] sm:$0xff]
      %v1435 = vld [vmem:[%s3 + $0x1d0] sm:$0xff]
      %v1436 = vld [vmem:[%s3 + $0x1d8] sm:$0xff]
      %v1437 = vld [vmem:[%s3 + $0x1e0] sm:$0xff]
      %v1438 = vld [vmem:[%s3 + $0x1e8] sm:$0xff]
      %v1439 = vld [vmem:[%s3 + $0x1f0] sm:$0xff]
      %v1440 = vld [vmem:[%s3 + $0x1f8] sm:$0xff]
      %v1441 = vld [vmem:[%s3 + $0x200] sm:$0xff]
      %v1442 = vld [vmem:[%s3 + $0x208] sm:$0xff]
      %v1443 = vld [vmem:[%s3 + $0x210] sm:$0xff]
      %v1444 = vld [vmem:[%s3 + $0x218] sm:$0xff]
      %v1445 = vld [vmem:[%s3 + $0x220] sm:$0xff]
      %v1446 = vld [vmem:[%s3 + $0x228] sm:$0xff]
      %v1447 = vld [vmem:[%s3 + $0x230] sm:$0xff]
      %v1448 = vld [vmem:[%s3 + $0x238] sm:$0xff]
      %v1449 = vld [vmem:[%s3 + $0x240] sm:$0xff]
      %v1450 = vld [vmem:[%s3 + $0x248] sm:$0xff]
      %v1451 = vld [vmem:[%s3 + $0x250] sm:$0xff]
      %v1452 = vld [vmem:[%s3 + $0x258] sm:$0xff]
      %v1453 = vld [vmem:[%s3 + $0x260] sm:$0xff]
      %v1454 = vld [vmem:[%s3 + $0x268] sm:$0xff]
      %v1455 = vld [vmem:[%s3 + $0x270] sm:$0xff]
      %v1456 = vld [vmem:[%s3 + $0x278] sm:$0xff]
      %v1457 = vld [vmem:[%s3 + $0x280] sm:$0xff]
      %v1458 = vld [vmem:[%s3 + $0x288] sm:$0xff]
      %v1459 = vld [vmem:[%s3 + $0x290] sm:$0xff]
      %v1460 = vld [vmem:[%s3 + $0x298] sm:$0xff]
      %v1461 = vld [vmem:[%s3 + $0x2a0] sm:$0xff]
      %v1462 = vld [vmem:[%s3 + $0x2a8] sm:$0xff]
      %v1463 = vld [vmem:[%s3 + $0x2b0] sm:$0xff]
      %v1464 = vld [vmem:[%s3 + $0x2b8] sm:$0xff]
      %v1465 = vld [vmem:[%s3 + $0x2c0] sm:$0xff]
      %v1466 = vld [vmem:[%s3 + $0x2c8] sm:$0xff]
      %v1467 = vld [vmem:[%s3 + $0x2d0] sm:$0xff]
      %v1468 = vld [vmem:[%s3 + $0x2d8] sm:$0xff]
      %v1469 = vld [vmem:[%s3 + $0x2e0] sm:$0xff]
      %v1470 = vld [vmem:[%s3 + $0x2e8] sm:$0xff]
      %v1471 = vld [vmem:[%s3 + $0x2f0] sm:$0xff]
      %v1472 = vld [vmem:[%s3 + $0x2f8] sm:$0xff]
      %v1473 = vld [vmem:[%s3 + $0x300] sm:$0xff]
      %v1474 = vld [vmem:[%s3 + $0x308] sm:$0xff]
      %v1475 = vld [vmem:[%s3 + $0x310] sm:$0xff]
      %v1476 = vld [vmem:[%s3 + $0x318] sm:$0xff]
      %v1477 = vld [vmem:[%s3 + $0x320] sm:$0xff]
      %v1478 = vld [vmem:[%s3 + $0x328] sm:$0xff]
      %v1479 = vld [vmem:[%s3 + $0x330] sm:$0xff]
      %v1480 = vld [vmem:[%s3 + $0x338] sm:$0xff]
      %v1481 = vld [vmem:[%s3 + $0x340] sm:$0xff]
      %v1482 = vld [vmem:[%s3 + $0x348] sm:$0xff]
      %v1483 = vld [vmem:[%s3 + $0x350] sm:$0xff]
      %v1484 = vld [vmem:[%s3 + $0x358] sm:$0xff]
      %v1485 = vld [vmem:[%s3 + $0x360] sm:$0xff]
      %v1486 = vld [vmem:[%s3 + $0x368] sm:$0xff]
      %v1487 = vld [vmem:[%s3 + $0x370] sm:$0xff]
      %v1488 = vld [vmem:[%s3 + $0x378] sm:$0xff]
      %v1489 = vld [vmem:[%s3 + $0x380] sm:$0xff]
      %v1490 = vld [vmem:[%s3 + $0x388] sm:$0xff]
      %v1491 = vld [vmem:[%s3 + $0x390] sm:$0xff]
      %v1492 = vld [vmem:[%s3 + $0x398] sm:$0xff]
      %v1493 = vld [vmem:[%s3 + $0x3a0] sm:$0xff]
      %v1494 = vld [vmem:[%s3 + $0x3a8] sm:$0xff]
      %v1495 = vld [vmem:[%s3 + $0x3b0] sm:$0xff]
      %v1496 = vld [vmem:[%s3 + $0x3b8] sm:$0xff]
      %v1497 = vld [vmem:[%s3 + $0x3c0] sm:$0xff]
      %v1498 = vld [vmem:[%s3 + $0x3c8] sm:$0xff]
      %v1499 = vld [vmem:[%s3 + $0x3d0] sm:$0xff]
      %v1500 = vld [vmem:[%s3 + $0x3d8] sm:$0xff]
      %v1501 = vld [vmem:[%s3 + $0x3e0] sm:$0xff]
      %v1502 = vld [vmem:[%s3 + $0x3e8] sm:$0xff]
      %v1503 = vld [vmem:[%s3 + $0x3f0] sm:$0xff]
      %v1504 = vld [vmem:[%s3 + $0x3f8] sm:$0xff]
      %v1505 = vld [vmem:[#allocation3] sm:$0xfe]
      %v1506 = vld [vmem:[#allocation3 + $0x8] sm:$0xfe]
      %v1507 = vld [vmem:[#allocation3 + $0x10] sm:$0xfe]
      %v1508 = vld [vmem:[#allocation3 + $0x18] sm:$0xfe]
      %v1509 = vld [vmem:[#allocation3 + $0x40] sm:$0x1]
      %v1510 = vld [vmem:[#allocation3 + $0x48] sm:$0x1]
      %v1511 = vld [vmem:[#allocation3 + $0x50] sm:$0x1]
      %v1512 = vld [vmem:[#allocation3 + $0x58] sm:$0x1]
      %s1513 = scalar_lea.vmem %s3, 1024
      %v1514 = vld [vmem:[%s1513] sm:$0xff]
      %v1515 = vld [vmem:[%s1513 + $0x8] sm:$0xff]
      %v1516 = vld [vmem:[%s1513 + $0x10] sm:$0xff]
      %v1517 = vld [vmem:[%s1513 + $0x18] sm:$0xff]
      %v1518 = vld [vmem:[%s1513 + $0x20] sm:$0xff]
      %v1519 = vld [vmem:[%s1513 + $0x28] sm:$0xff]
      %v1520 = vld [vmem:[%s1513 + $0x30] sm:$0xff]
      %v1521 = vld [vmem:[%s1513 + $0x38] sm:$0xff]
      %v1522 = vld [vmem:[%s1513 + $0x40] sm:$0xff]
      %v1523 = vld [vmem:[%s1513 + $0x48] sm:$0xff]
      %v1524 = vld [vmem:[%s1513 + $0x50] sm:$0xff]
      %v1525 = vld [vmem:[%s1513 + $0x58] sm:$0xff]
      %v1526 = vld [vmem:[%s1513 + $0x60] sm:$0xff]
      %v1527 = vld [vmem:[%s1513 + $0x68] sm:$0xff]
      %v1528 = vld [vmem:[%s1513 + $0x70] sm:$0xff]
      %v1529 = vld [vmem:[%s1513 + $0x78] sm:$0xff]
      %v1530 = vld [vmem:[%s1513 + $0x80] sm:$0xff]
      %v1531 = vld [vmem:[%s1513 + $0x88] sm:$0xff]
      %v1532 = vld [vmem:[%s1513 + $0x90] sm:$0xff]
      %v1533 = vld [vmem:[%s1513 + $0x98] sm:$0xff]
      %v1534 = vld [vmem:[%s1513 + $0xa0] sm:$0xff]
      %v1535 = vld [vmem:[%s1513 + $0xa8] sm:$0xff]
      %v1536 = vld [vmem:[%s1513 + $0xb0] sm:$0xff]
      %v1537 = vld [vmem:[%s1513 + $0xb8] sm:$0xff]
      %v1538 = vld [vmem:[%s1513 + $0xc0] sm:$0xff]
      %v1539 = vld [vmem:[%s1513 + $0xc8] sm:$0xff]
      %v1540 = vld [vmem:[%s1513 + $0xd0] sm:$0xff]
      %v1541 = vld [vmem:[%s1513 + $0xd8] sm:$0xff]
      %v1542 = vld [vmem:[%s1513 + $0xe0] sm:$0xff]
      %v1543 = vld [vmem:[%s1513 + $0xe8] sm:$0xff]
      %v1544 = vld [vmem:[%s1513 + $0xf0] sm:$0xff]
      %v1545 = vld [vmem:[%s1513 + $0xf8] sm:$0xff]
      %v1546 = vld [vmem:[%s1513 + $0x100] sm:$0xff]
      %v1547 = vld [vmem:[%s1513 + $0x108] sm:$0xff]
      %v1548 = vld [vmem:[%s1513 + $0x110] sm:$0xff]
      %v1549 = vld [vmem:[%s1513 + $0x118] sm:$0xff]
      %v1550 = vld [vmem:[%s1513 + $0x120] sm:$0xff]
      %v1551 = vld [vmem:[%s1513 + $0x128] sm:$0xff]
      %v1552 = vld [vmem:[%s1513 + $0x130] sm:$0xff]
      %v1553 = vld [vmem:[%s1513 + $0x138] sm:$0xff]
      %v1554 = vld [vmem:[%s1513 + $0x140] sm:$0xff]
      %v1555 = vld [vmem:[%s1513 + $0x148] sm:$0xff]
      %v1556 = vld [vmem:[%s1513 + $0x150] sm:$0xff]
      %v1557 = vld [vmem:[%s1513 + $0x158] sm:$0xff]
      %v1558 = vld [vmem:[%s1513 + $0x160] sm:$0xff]
      %v1559 = vld [vmem:[%s1513 + $0x168] sm:$0xff]
      %v1560 = vld [vmem:[%s1513 + $0x170] sm:$0xff]
      %v1561 = vld [vmem:[%s1513 + $0x178] sm:$0xff]
      %v1562 = vld [vmem:[%s1513 + $0x180] sm:$0xff]
      %v1563 = vld [vmem:[%s1513 + $0x188] sm:$0xff]
      %v1564 = vld [vmem:[%s1513 + $0x190] sm:$0xff]
      %v1565 = vld [vmem:[%s1513 + $0x198] sm:$0xff]
      %v1566 = vld [vmem:[%s1513 + $0x1a0] sm:$0xff]
      %v1567 = vld [vmem:[%s1513 + $0x1a8] sm:$0xff]
      %v1568 = vld [vmem:[%s1513 + $0x1b0] sm:$0xff]
      %v1569 = vld [vmem:[%s1513 + $0x1b8] sm:$0xff]
      %v1570 = vld [vmem:[%s1513 + $0x1c0] sm:$0xff]
      %v1571 = vld [vmem:[%s1513 + $0x1c8] sm:$0xff]
      %v1572 = vld [vmem:[%s1513 + $0x1d0] sm:$0xff]
      %v1573 = vld [vmem:[%s1513 + $0x1d8] sm:$0xff]
      %v1574 = vld [vmem:[%s1513 + $0x1e0] sm:$0xff]
      %v1575 = vld [vmem:[%s1513 + $0x1e8] sm:$0xff]
      %v1576 = vld [vmem:[%s1513 + $0x1f0] sm:$0xff]
      %v1577 = vld [vmem:[%s1513 + $0x1f8] sm:$0xff]
      %v1578 = vld [vmem:[%s1513 + $0x200] sm:$0xff]
      %v1579 = vld [vmem:[%s1513 + $0x208] sm:$0xff]
      %v1580 = vld [vmem:[%s1513 + $0x210] sm:$0xff]
      %v1581 = vld [vmem:[%s1513 + $0x218] sm:$0xff]
      %v1582 = vld [vmem:[%s1513 + $0x220] sm:$0xff]
      %v1583 = vld [vmem:[%s1513 + $0x228] sm:$0xff]
      %v1584 = vld [vmem:[%s1513 + $0x230] sm:$0xff]
      %v1585 = vld [vmem:[%s1513 + $0x238] sm:$0xff]
      %v1586 = vld [vmem:[%s1513 + $0x240] sm:$0xff]
      %v1587 = vld [vmem:[%s1513 + $0x248] sm:$0xff]
      %v1588 = vld [vmem:[%s1513 + $0x250] sm:$0xff]
      %v1589 = vld [vmem:[%s1513 + $0x258] sm:$0xff]
      %v1590 = vld [vmem:[%s1513 + $0x260] sm:$0xff]
      %v1591 = vld [vmem:[%s1513 + $0x268] sm:$0xff]
      %v1592 = vld [vmem:[%s1513 + $0x270] sm:$0xff]
      %v1593 = vld [vmem:[%s1513 + $0x278] sm:$0xff]
      %v1594 = vld [vmem:[%s1513 + $0x280] sm:$0xff]
      %v1595 = vld [vmem:[%s1513 + $0x288] sm:$0xff]
      %v1596 = vld [vmem:[%s1513 + $0x290] sm:$0xff]
      %v1597 = vld [vmem:[%s1513 + $0x298] sm:$0xff]
      %v1598 = vld [vmem:[%s1513 + $0x2a0] sm:$0xff]
      %v1599 = vld [vmem:[%s1513 + $0x2a8] sm:$0xff]
      %v1600 = vld [vmem:[%s1513 + $0x2b0] sm:$0xff]
      %v1601 = vld [vmem:[%s1513 + $0x2b8] sm:$0xff]
      %v1602 = vld [vmem:[%s1513 + $0x2c0] sm:$0xff]
      %v1603 = vld [vmem:[%s1513 + $0x2c8] sm:$0xff]
      %v1604 = vld [vmem:[%s1513 + $0x2d0] sm:$0xff]
      %v1605 = vld [vmem:[%s1513 + $0x2d8] sm:$0xff]
      %v1606 = vld [vmem:[%s1513 + $0x2e0] sm:$0xff]
      %v1607 = vld [vmem:[%s1513 + $0x2e8] sm:$0xff]
      %v1608 = vld [vmem:[%s1513 + $0x2f0] sm:$0xff]
      %v1609 = vld [vmem:[%s1513 + $0x2f8] sm:$0xff]
      %v1610 = vld [vmem:[%s1513 + $0x300] sm:$0xff]
      %v1611 = vld [vmem:[%s1513 + $0x308] sm:$0xff]
      %v1612 = vld [vmem:[%s1513 + $0x310] sm:$0xff]
      %v1613 = vld [vmem:[%s1513 + $0x318] sm:$0xff]
      %v1614 = vld [vmem:[%s1513 + $0x320] sm:$0xff]
      %v1615 = vld [vmem:[%s1513 + $0x328] sm:$0xff]
      %v1616 = vld [vmem:[%s1513 + $0x330] sm:$0xff]
      %v1617 = vld [vmem:[%s1513 + $0x338] sm:$0xff]
      %v1618 = vld [vmem:[%s1513 + $0x340] sm:$0xff]
      %v1619 = vld [vmem:[%s1513 + $0x348] sm:$0xff]
      %v1620 = vld [vmem:[%s1513 + $0x350] sm:$0xff]
      %v1621 = vld [vmem:[%s1513 + $0x358] sm:$0xff]
      %v1622 = vld [vmem:[%s1513 + $0x360] sm:$0xff]
      %v1623 = vld [vmem:[%s1513 + $0x368] sm:$0xff]
      %v1624 = vld [vmem:[%s1513 + $0x370] sm:$0xff]
      %v1625 = vld [vmem:[%s1513 + $0x378] sm:$0xff]
      %v1626 = vld [vmem:[%s1513 + $0x380] sm:$0xff]
      %v1627 = vld [vmem:[%s1513 + $0x388] sm:$0xff]
      %v1628 = vld [vmem:[%s1513 + $0x390] sm:$0xff]
      %v1629 = vld [vmem:[%s1513 + $0x398] sm:$0xff]
      %v1630 = vld [vmem:[%s1513 + $0x3a0] sm:$0xff]
      %v1631 = vld [vmem:[%s1513 + $0x3a8] sm:$0xff]
      %v1632 = vld [vmem:[%s1513 + $0x3b0] sm:$0xff]
      %v1633 = vld [vmem:[%s1513 + $0x3b8] sm:$0xff]
      %v1634 = vld [vmem:[%s1513 + $0x3c0] sm:$0xff]
      %v1635 = vld [vmem:[%s1513 + $0x3c8] sm:$0xff]
      %v1636 = vld [vmem:[%s1513 + $0x3d0] sm:$0xff]
      %v1637 = vld [vmem:[%s1513 + $0x3d8] sm:$0xff]
      %v1638 = vld [vmem:[%s1513 + $0x3e0] sm:$0xff]
      %v1639 = vld [vmem:[%s1513 + $0x3e8] sm:$0xff]
      %v1640 = vld [vmem:[%s1513 + $0x3f0] sm:$0xff]
      %v1641 = vld [vmem:[%s1513 + $0x3f8] sm:$0xff]
      %v1654 = vrot.slane %v1505, 1
      %v1655 = vrot.slane %v1373, 1
      %v1656 = vsel %vm643, %v1654, %v1655
      %v1657 = vrot.slane %v1506, 1
      %v1658 = vrot.slane %v1374, 1
      %v1659 = vsel %vm643, %v1657, %v1658
      %v1660 = vrot.slane %v1507, 1
      %v1661 = vrot.slane %v1375, 1
      %v1662 = vsel %vm643, %v1660, %v1661
      %v1663 = vrot.slane %v1508, 1
      %v1664 = vrot.slane %v1376, 1
      %v1665 = vsel %vm643, %v1663, %v1664
      %v1666 = vrot.slane %v1509, 1
      %v1667 = vsel %vm643, %v1655, %v1666
      %v1668 = vrot.slane %v1510, 1
      %v1669 = vsel %vm643, %v1658, %v1668
      %v1670 = vrot.slane %v1511, 1
      %v1671 = vsel %vm643, %v1661, %v1670
      %v1672 = vrot.slane %v1512, 1
      %v1673 = vsel %vm643, %v1664, %v1672
      %1682 = vmatprep.subr.mxu0 %v1515
      %1683 = vmatpush1.msra.mxu0 %v1514
      %1684 = vmatprep.subr.mxu0 %v1517
      %1685 = vmatpush1.msra.mxu0 %v1516
      %1686 = vmatprep.subr.mxu0 %v1519
      %1687 = vmatpush1.msra.mxu0 %v1518
      %1688 = vmatprep.subr.mxu0 %v1521
      %1689 = vmatpush1.msra.mxu0 %v1520
      %1690 = vmatprep.subr.mxu0 %v1523
      %1691 = vmatpush1.msra.mxu0 %v1522
      %1692 = vmatprep.subr.mxu0 %v1525
      %1693 = vmatpush1.msra.mxu0 %v1524
      %1694 = vmatprep.subr.mxu0 %v1527
      %1695 = vmatpush1.msra.mxu0 %v1526
      %1696 = vmatprep.subr.mxu0 %v1529
      %1697 = vmatpush1.msra.mxu0 %v1528
      %1698 = vmatprep.subr.mxu0 %v1531
      %1699 = vmatpush1.msra.mxu0 %v1530
      %1700 = vmatprep.subr.mxu0 %v1533
      %1701 = vmatpush1.msra.mxu0 %v1532
      %1702 = vmatprep.subr.mxu0 %v1535
      %1703 = vmatpush1.msra.mxu0 %v1534
      %1704 = vmatprep.subr.mxu0 %v1537
      %1705 = vmatpush1.msra.mxu0 %v1536
      %1706 = vmatprep.subr.mxu0 %v1539
      %1707 = vmatpush1.msra.mxu0 %v1538
      %1708 = vmatprep.subr.mxu0 %v1541
      %1709 = vmatpush1.msra.mxu0 %v1540
      %1710 = vmatprep.subr.mxu0 %v1543
      %1711 = vmatpush1.msra.mxu0 %v1542
      %1712 = vmatprep.subr.mxu0 %v1545
      %1713 = vmatpush1.msra.mxu0 %v1544
      %1714 = vmatprep.subr.mxu0 %v1547
      %1715 = vmatpush1.msra.mxu0 %v1546
      %1716 = vmatprep.subr.mxu0 %v1549
      %1717 = vmatpush1.msra.mxu0 %v1548
      %1718 = vmatprep.subr.mxu0 %v1551
      %1719 = vmatpush1.msra.mxu0 %v1550
      %1720 = vmatprep.subr.mxu0 %v1553
      %1721 = vmatpush1.msra.mxu0 %v1552
      %1722 = vmatprep.subr.mxu0 %v1555
      %1723 = vmatpush1.msra.mxu0 %v1554
      %1724 = vmatprep.subr.mxu0 %v1557
      %1725 = vmatpush1.msra.mxu0 %v1556
      %1726 = vmatprep.subr.mxu0 %v1559
      %1727 = vmatpush1.msra.mxu0 %v1558
      %1728 = vmatprep.subr.mxu0 %v1561
      %1729 = vmatpush1.msra.mxu0 %v1560
      %1730 = vmatprep.subr.mxu0 %v1563
      %1731 = vmatpush1.msra.mxu0 %v1562
      %1732 = vmatprep.subr.mxu0 %v1565
      %1733 = vmatpush1.msra.mxu0 %v1564
      %1734 = vmatprep.subr.mxu0 %v1567
      %1735 = vmatpush1.msra.mxu0 %v1566
      %1736 = vmatprep.subr.mxu0 %v1569
      %1737 = vmatpush1.msra.mxu0 %v1568
      %1738 = vmatprep.subr.mxu0 %v1571
      %1739 = vmatpush1.msra.mxu0 %v1570
      %1740 = vmatprep.subr.mxu0 %v1573
      %1741 = vmatpush1.msra.mxu0 %v1572
      %1742 = vmatprep.subr.mxu0 %v1575
      %1743 = vmatpush1.msra.mxu0 %v1574
      %1744 = vmatprep.subr.mxu0 %v1577
      %1745 = vmatpush1.msra.mxu0 %v1576
      %1746 = vmatprep.mubr.f32.mxu0 %v1659
      %1747 = vmatmul.mubr.f32.gmra.mrb[0].mxu0 %v1656
      %v1748 = vpop.f32.mrb[0].mxu0
      %v1749 = vadd.f32 0.0, %v1748
      %v1750 = vpop.f32.mrb[0].mxu0
      %v1751 = vadd.f32 0.0, %v1750
      %1752 = vmatprep.mubr.f32.mxu0 %v1669
      %1753 = vmatmul.mubr.f32.gmra.mrb[0].mxu0 %v1667
      %v1754 = vpop.f32.mrb[0].mxu0
      %v1755 = vadd.f32 0.0, %v1754
      %v1756 = vpop.f32.mrb[0].mxu0
      %v1757 = vadd.f32 0.0, %v1756
      %1758 = vdwg.mxu0
      %1759 = vmatprep.subr.mxu0 %v1579
      %1760 = vmatpush1.msra.mxu0 %v1578
      %1761 = vmatprep.subr.mxu0 %v1581
      %1762 = vmatpush1.msra.mxu0 %v1580
      %1763 = vmatprep.subr.mxu0 %v1583
      %1764 = vmatpush1.msra.mxu0 %v1582
      %1765 = vmatprep.subr.mxu0 %v1585
      %1766 = vmatpush1.msra.mxu0 %v1584
      %1767 = vmatprep.subr.mxu0 %v1587
      %1768 = vmatpush1.msra.mxu0 %v1586
      %1769 = vmatprep.subr.mxu0 %v1589
      %1770 = vmatpush1.msra.mxu0 %v1588
      %1771 = vmatprep.subr.mxu0 %v1591
      %1772 = vmatpush1.msra.mxu0 %v1590
      %1773 = vmatprep.subr.mxu0 %v1593
      %1774 = vmatpush1.msra.mxu0 %v1592
      %1775 = vmatprep.subr.mxu0 %v1595
      %1776 = vmatpush1.msra.mxu0 %v1594
      %1777 = vmatprep.subr.mxu0 %v1597
      %1778 = vmatpush1.msra.mxu0 %v1596
      %1779 = vmatprep.subr.mxu0 %v1599
      %1780 = vmatpush1.msra.mxu0 %v1598
      %1781 = vmatprep.subr.mxu0 %v1601
      %1782 = vmatpush1.msra.mxu0 %v1600
      %1783 = vmatprep.subr.mxu0 %v1603
      %1784 = vmatpush1.msra.mxu0 %v1602
      %1785 = vmatprep.subr.mxu0 %v1605
      %1786 = vmatpush1.msra.mxu0 %v1604
      %1787 = vmatprep.subr.mxu0 %v1607
      %1788 = vmatpush1.msra.mxu0 %v1606
      %1789 = vmatprep.subr.mxu0 %v1609
      %1790 = vmatpush1.msra.mxu0 %v1608
      %1791 = vmatprep.subr.mxu0 %v1611
      %1792 = vmatpush1.msra.mxu0 %v1610
      %1793 = vmatprep.subr.mxu0 %v1613
      %1794 = vmatpush1.msra.mxu0 %v1612
      %1795 = vmatprep.subr.mxu0 %v1615
      %1796 = vmatpush1.msra.mxu0 %v1614
      %1797 = vmatprep.subr.mxu0 %v1617
      %1798 = vmatpush1.msra.mxu0 %v1616
      %1799 = vmatprep.subr.mxu0 %v1619
      %1800 = vmatpush1.msra.mxu0 %v1618
      %1801 = vmatprep.subr.mxu0 %v1621
      %1802 = vmatpush1.msra.mxu0 %v1620
      %1803 = vmatprep.subr.mxu0 %v1623
      %1804 = vmatpush1.msra.mxu0 %v1622
      %1805 = vmatprep.subr.mxu0 %v1625
      %1806 = vmatpush1.msra.mxu0 %v1624
      %1807 = vmatprep.subr.mxu0 %v1627
      %1808 = vmatpush1.msra.mxu0 %v1626
      %1809 = vmatprep.subr.mxu0 %v1629
      %1810 = vmatpush1.msra.mxu0 %v1628
      %1811 = vmatprep.subr.mxu0 %v1631
      %1812 = vmatpush1.msra.mxu0 %v1630
      %1813 = vmatprep.subr.mxu0 %v1633
      %1814 = vmatpush1.msra.mxu0 %v1632
      %1815 = vmatprep.subr.mxu0 %v1635
      %1816 = vmatpush1.msra.mxu0 %v1634
      %1817 = vmatprep.subr.mxu0 %v1637
      %1818 = vmatpush1.msra.mxu0 %v1636
      %1819 = vmatprep.subr.mxu0 %v1639
      %1820 = vmatpush1.msra.mxu0 %v1638
      %1821 = vmatprep.subr.mxu0 %v1641
      %1822 = vmatpush1.msra.mxu0 %v1640
      %1823 = vmatprep.mubr.f32.mxu0 %v1665
      %1824 = vmatmul.mubr.f32.gmra.mrb[0].mxu0 %v1662
      %v1825 = vpop.f32.mrb[0].mxu0
      %v1826 = vadd.f32 %v1749, %v1825
      %v1827 = vpop.f32.mrb[0].mxu0
      %v1828 = vadd.f32 %v1751, %v1827
      %1829 = vmatprep.mubr.f32.mxu0 %v1673
      %1830 = vmatmul.mubr.f32.gmra.mrb[0].mxu0 %v1671
      %v1831 = vpop.f32.mrb[0].mxu0
      %v1832 = vadd.f32 %v1755, %v1831
      %v1833 = vpop.f32.mrb[0].mxu0
      %v1834 = vadd.f32 %v1757, %v1833
      %1835 = vdwg.mxu0
      %1836 = vmatprep.subr.mxu0 %v1378
      %1837 = vmatpush1.msra.mxu0 %v1377
      %1838 = vmatprep.subr.mxu0 %v1380
      %1839 = vmatpush1.msra.mxu0 %v1379
      %1840 = vmatprep.subr.mxu0 %v1382
      %1841 = vmatpush1.msra.mxu0 %v1381
      %1842 = vmatprep.subr.mxu0 %v1384
      %1843 = vmatpush1.msra.mxu0 %v1383
      %1844 = vmatprep.subr.mxu0 %v1386
      %1845 = vmatpush1.msra.mxu0 %v1385
      %1846 = vmatprep.subr.mxu0 %v1388
      %1847 = vmatpush1.msra.mxu0 %v1387
      %1848 = vmatprep.subr.mxu0 %v1390
      %1849 = vmatpush1.msra.mxu0 %v1389
      %1850 = vmatprep.subr.mxu0 %v1392
      %1851 = vmatpush1.msra.mxu0 %v1391
      %1852 = vmatprep.subr.mxu0 %v1394
      %1853 = vmatpush1.msra.mxu0 %v1393
      %1854 = vmatprep.subr.mxu0 %v1396
      %1855 = vmatpush1.msra.mxu0 %v1395
      %1856 = vmatprep.subr.mxu0 %v1398
      %1857 = vmatpush1.msra.mxu0 %v1397
      %1858 = vmatprep.subr.mxu0 %v1400
      %1859 = vmatpush1.msra.mxu0 %v1399
      %1860 = vmatprep.subr.mxu0 %v1402
      %1861 = vmatpush1.msra.mxu0 %v1401
      %1862 = vmatprep.subr.mxu0 %v1404
      %1863 = vmatpush1.msra.mxu0 %v1403
      %1864 = vmatprep.subr.mxu0 %v1406
      %1865 = vmatpush1.msra.mxu0 %v1405
      %1866 = vmatprep.subr.mxu0 %v1408
      %1867 = vmatpush1.msra.mxu0 %v1407
      %1868 = vmatprep.subr.mxu0 %v1410
      %1869 = vmatpush1.msra.mxu0 %v1409
      %1870 = vmatprep.subr.mxu0 %v1412
      %1871 = vmatpush1.msra.mxu0 %v1411
      %1872 = vmatprep.subr.mxu0 %v1414
      %1873 = vmatpush1.msra.mxu0 %v1413
      %1874 = vmatprep.subr.mxu0 %v1416
      %1875 = vmatpush1.msra.mxu0 %v1415
      %1876 = vmatprep.subr.mxu0 %v1418
      %1877 = vmatpush1.msra.mxu0 %v1417
      %1878 = vmatprep.subr.mxu0 %v1420
      %1879 = vmatpush1.msra.mxu0 %v1419
      %1880 = vmatprep.subr.mxu0 %v1422
      %1881 = vmatpush1.msra.mxu0 %v1421
      %1882 = vmatprep.subr.mxu0 %v1424
      %1883 = vmatpush1.msra.mxu0 %v1423
      %1884 = vmatprep.subr.mxu0 %v1426
      %1885 = vmatpush1.msra.mxu0 %v1425
      %1886 = vmatprep.subr.mxu0 %v1428
      %1887 = vmatpush1.msra.mxu0 %v1427
      %1888 = vmatprep.subr.mxu0 %v1430
      %1889 = vmatpush1.msra.mxu0 %v1429
      %1890 = vmatprep.subr.mxu0 %v1432
      %1891 = vmatpush1.msra.mxu0 %v1431
      %1892 = vmatprep.subr.mxu0 %v1434
      %1893 = vmatpush1.msra.mxu0 %v1433
      %1894 = vmatprep.subr.mxu0 %v1436
      %1895 = vmatpush1.msra.mxu0 %v1435
      %1896 = vmatprep.subr.mxu0 %v1438
      %1897 = vmatpush1.msra.mxu0 %v1437
      %1898 = vmatprep.subr.mxu0 %v1440
      %1899 = vmatpush1.msra.mxu0 %v1439
      %1900 = vmatprep.mubr.f32.mxu0 %v1370
      %1901 = vmatmul.mubr.f32.gmra.mrb[0].mxu0 %v1369
      %v1902 = vpop.f32.mrb[0].mxu0
      %v1903 = vadd.f32 %v1826, %v1902
      %v1904 = vpop.f32.mrb[0].mxu0
      %v1905 = vadd.f32 %v1828, %v1904
      %1906 = vmatprep.mubr.f32.mxu0 %v1374
      %1907 = vmatmul.mubr.f32.gmra.mrb[0].mxu0 %v1373
      %v1908 = vpop.f32.mrb[0].mxu0
      %v1909 = vadd.f32 %v1832, %v1908
      %v1910 = vpop.f32.mrb[0].mxu0
      %v1911 = vadd.f32 %v1834, %v1910
      %1912 = vdwg.mxu0
      %1913 = vmatprep.subr.mxu0 %v1442
      %1914 = vmatpush1.msra.mxu0 %v1441
      %1915 = vmatprep.subr.mxu0 %v1444
      %1916 = vmatpush1.msra.mxu0 %v1443
      %1917 = vmatprep.subr.mxu0 %v1446
      %1918 = vmatpush1.msra.mxu0 %v1445
      %1919 = vmatprep.subr.mxu0 %v1448
      %1920 = vmatpush1.msra.mxu0 %v1447
      %1921 = vmatprep.subr.mxu0 %v1450
      %1922 = vmatpush1.msra.mxu0 %v1449
      %1923 = vmatprep.subr.mxu0 %v1452
      %1924 = vmatpush1.msra.mxu0 %v1451
      %1925 = vmatprep.subr.mxu0 %v1454
      %1926 = vmatpush1.msra.mxu0 %v1453
      %1927 = vmatprep.subr.mxu0 %v1456
      %1928 = vmatpush1.msra.mxu0 %v1455
      %1929 = vmatprep.subr.mxu0 %v1458
      %1930 = vmatpush1.msra.mxu0 %v1457
      %1931 = vmatprep.subr.mxu0 %v1460
      %1932 = vmatpush1.msra.mxu0 %v1459
      %1933 = vmatprep.subr.mxu0 %v1462
      %1934 = vmatpush1.msra.mxu0 %v1461
      %1935 = vmatprep.subr.mxu0 %v1464
      %1936 = vmatpush1.msra.mxu0 %v1463
      %1937 = vmatprep.subr.mxu0 %v1466
      %1938 = vmatpush1.msra.mxu0 %v1465
      %1939 = vmatprep.subr.mxu0 %v1468
      %1940 = vmatpush1.msra.mxu0 %v1467
      %1941 = vmatprep.subr.mxu0 %v1470
      %1942 = vmatpush1.msra.mxu0 %v1469
      %1943 = vmatprep.subr.mxu0 %v1472
      %1944 = vmatpush1.msra.mxu0 %v1471
      %1945 = vmatprep.subr.mxu0 %v1474
      %1946 = vmatpush1.msra.mxu0 %v1473
      %1947 = vmatprep.subr.mxu0 %v1476
      %1948 = vmatpush1.msra.mxu0 %v1475
      %1949 = vmatprep.subr.mxu0 %v1478
      %1950 = vmatpush1.msra.mxu0 %v1477
      %1951 = vmatprep.subr.mxu0 %v1480
      %1952 = vmatpush1.msra.mxu0 %v1479
      %1953 = vmatprep.subr.mxu0 %v1482
      %1954 = vmatpush1.msra.mxu0 %v1481
      %1955 = vmatprep.subr.mxu0 %v1484
      %1956 = vmatpush1.msra.mxu0 %v1483
      %1957 = vmatprep.subr.mxu0 %v1486
      %1958 = vmatpush1.msra.mxu0 %v1485
      %1959 = vmatprep.subr.mxu0 %v1488
      %1960 = vmatpush1.msra.mxu0 %v1487
      %1961 = vmatprep.subr.mxu0 %v1490
      %1962 = vmatpush1.msra.mxu0 %v1489
      %1963 = vmatprep.subr.mxu0 %v1492
      %1964 = vmatpush1.msra.mxu0 %v1491
      %1965 = vmatprep.subr.mxu0 %v1494
      %1966 = vmatpush1.msra.mxu0 %v1493
      %1967 = vmatprep.subr.mxu0 %v1496
      %1968 = vmatpush1.msra.mxu0 %v1495
      %1969 = vmatprep.subr.mxu0 %v1498
      %1970 = vmatpush1.msra.mxu0 %v1497
      %1971 = vmatprep.subr.mxu0 %v1500
      %1972 = vmatpush1.msra.mxu0 %v1499
      %1973 = vmatprep.subr.mxu0 %v1502
      %1974 = vmatpush1.msra.mxu0 %v1501
      %1975 = vmatprep.subr.mxu0 %v1504
      %1976 = vmatpush1.msra.mxu0 %v1503
      %1977 = vmatprep.mubr.f32.mxu0 %v1372
      %1978 = vmatmul.mubr.f32.gmra.mrb[0].mxu0 %v1371
      %v1979 = vpop.f32.mrb[0].mxu0
      %v1980 = vadd.f32 %v1903, %v1979
      %v1981 = vpop.f32.mrb[0].mxu0
      %v1982 = vadd.f32 %v1905, %v1981
      %1983 = vmatprep.mubr.f32.mxu0 %v1376
      %1984 = vmatmul.mubr.f32.gmra.mrb[0].mxu0 %v1375
      %v1985 = vpop.f32.mrb[0].mxu0
      %v1986 = vadd.f32 %v1909, %v1985
      %v1987 = vpop.f32.mrb[0].mxu0
      %v1988 = vadd.f32 %v1911, %v1987
      %1989 = vdwg.mxu0
      %v1990 = vld [vmem:[#allocation3] sm:$0xfc]
      %v1991 = vld [vmem:[#allocation3 + $0x8] sm:$0xfc]
      %v1992 = vld [vmem:[#allocation3 + $0x10] sm:$0xfc]
      %v1993 = vld [vmem:[#allocation3 + $0x18] sm:$0xfc]
      %v1994 = vld [vmem:[#allocation3 + $0x40] sm:$0x3]
      %v1995 = vld [vmem:[#allocation3 + $0x48] sm:$0x3]
      %v1996 = vld [vmem:[#allocation3 + $0x50] sm:$0x3]
      %v1997 = vld [vmem:[#allocation3 + $0x58] sm:$0x3]
      %s1998 = scalar_lea.vmem %s3, 2048
      %v1999 = vld [vmem:[%s1998] sm:$0xff]
      %v2000 = vld [vmem:[%s1998 + $0x8] sm:$0xff]
      %v2001 = vld [vmem:[%s1998 + $0x10] sm:$0xff]
      %v2002 = vld [vmem:[%s1998 + $0x18] sm:$0xff]
      %v2003 = vld [vmem:[%s1998 + $0x20] sm:$0xff]
      %v2004 = vld [vmem:[%s1998 + $0x28] sm:$0xff]
      %v2005 = vld [vmem:[%s1998 + $0x30] sm:$0xff]
      %v2006 = vld [vmem:[%s1998 + $0x38] sm:$0xff]
      %v2007 = vld [vmem:[%s1998 + $0x40] sm:$0xff]
      %v2008 = vld [vmem:[%s1998 + $0x48] sm:$0xff]
      %v2009 = vld [vmem:[%s1998 + $0x50] sm:$0xff]
      %v2010 = vld [vmem:[%s1998 + $0x58] sm:$0xff]
      %v2011 = vld [vmem:[%s1998 + $0x60] sm:$0xff]
      %v2012 = vld [vmem:[%s1998 + $0x68] sm:$0xff]
      %v2013 = vld [vmem:[%s1998 + $0x70] sm:$0xff]
      %v2014 = vld [vmem:[%s1998 + $0x78] sm:$0xff]
      %v2015 = vld [vmem:[%s1998 + $0x80] sm:$0xff]
      %v2016 = vld [vmem:[%s1998 + $0x88] sm:$0xff]
      %v2017 = vld [vmem:[%s1998 + $0x90] sm:$0xff]
      %v2018 = vld [vmem:[%s1998 + $0x98] sm:$0xff]
      %v2019 = vld [vmem:[%s1998 + $0xa0] sm:$0xff]
      %v2020 = vld [vmem:[%s1998 + $0xa8] sm:$0xff]
      %v2021 = vld [vmem:[%s1998 + $0xb0] sm:$0xff]
      %v2022 = vld [vmem:[%s1998 + $0xb8] sm:$0xff]
      %v2023 = vld [vmem:[%s1998 + $0xc0] sm:$0xff]
      %v2024 = vld [vmem:[%s1998 + $0xc8] sm:$0xff]
      %v2025 = vld [vmem:[%s1998 + $0xd0] sm:$0xff]
      %v2026 = vld [vmem:[%s1998 + $0xd8] sm:$0xff]
      %v2027 = vld [vmem:[%s1998 + $0xe0] sm:$0xff]
      %v2028 = vld [vmem:[%s1998 + $0xe8] sm:$0xff]
      %v2029 = vld [vmem:[%s1998 + $0xf0] sm:$0xff]
      %v2030 = vld [vmem:[%s1998 + $0xf8] sm:$0xff]
      %v2031 = vld [vmem:[%s1998 + $0x100] sm:$0xff]
      %v2032 = vld [vmem:[%s1998 + $0x108] sm:$0xff]
      %v2033 = vld [vmem:[%s1998 + $0x110] sm:$0xff]
      %v2034 = vld [vmem:[%s1998 + $0x118] sm:$0xff]
      %v2035 = vld [vmem:[%s1998 + $0x120] sm:$0xff]
      %v2036 = vld [vmem:[%s1998 + $0x128] sm:$0xff]
      %v2037 = vld [vmem:[%s1998 + $0x130] sm:$0xff]
      %v2038 = vld [vmem:[%s1998 + $0x138] sm:$0xff]
      %v2039 = vld [vmem:[%s1998 + $0x140] sm:$0xff]
      %v2040 = vld [vmem:[%s1998 + $0x148] sm:$0xff]
      %v2041 = vld [vmem:[%s1998 + $0x150] sm:$0xff]
      %v2042 = vld [vmem:[%s1998 + $0x158] sm:$0xff]
      %v2043 = vld [vmem:[%s1998 + $0x160] sm:$0xff]
      %v2044 = vld [vmem:[%s1998 + $0x168] sm:$0xff]
      %v2045 = vld [vmem:[%s1998 + $0x170] sm:$0xff]
      %v2046 = vld [vmem:[%s1998 + $0x178] sm:$0xff]
      %v2047 = vld [vmem:[%s1998 + $0x180] sm:$0xff]
      %v2048 = vld [vmem:[%s1998 + $0x188] sm:$0xff]
      %v2049 = vld [vmem:[%s1998 + $0x190] sm:$0xff]
      %v2050 = vld [vmem:[%s1998 + $0x198] sm:$0xff]
      %v2051 = vld [vmem:[%s1998 + $0x1a0] sm:$0xff]
      %v2052 = vld [vmem:[%s1998 + $0x1a8] sm:$0xff]
      %v2053 = vld [vmem:[%s1998 + $0x1b0] sm:$0xff]
      %v2054 = vld [vmem:[%s1998 + $0x1b8] sm:$0xff]
      %v2055 = vld [vmem:[%s1998 + $0x1c0] sm:$0xff]
      %v2056 = vld [vmem:[%s1998 + $0x1c8] sm:$0xff]
      %v2057 = vld [vmem:[%s1998 + $0x1d0] sm:$0xff]
      %v2058 = vld [vmem:[%s1998 + $0x1d8] sm:$0xff]
      %v2059 = vld [vmem:[%s1998 + $0x1e0] sm:$0xff]
      %v2060 = vld [vmem:[%s1998 + $0x1e8] sm:$0xff]
      %v2061 = vld [vmem:[%s1998 + $0x1f0] sm:$0xff]
      %v2062 = vld [vmem:[%s1998 + $0x1f8] sm:$0xff]
      %v2063 = vld [vmem:[%s1998 + $0x200] sm:$0xff]
      %v2064 = vld [vmem:[%s1998 + $0x208] sm:$0xff]
      %v2065 = vld [vmem:[%s1998 + $0x210] sm:$0xff]
      %v2066 = vld [vmem:[%s1998 + $0x218] sm:$0xff]
      %v2067 = vld [vmem:[%s1998 + $0x220] sm:$0xff]
      %v2068 = vld [vmem:[%s1998 + $0x228] sm:$0xff]
      %v2069 = vld [vmem:[%s1998 + $0x230] sm:$0xff]
      %v2070 = vld [vmem:[%s1998 + $0x238] sm:$0xff]
      %v2071 = vld [vmem:[%s1998 + $0x240] sm:$0xff]
      %v2072 = vld [vmem:[%s1998 + $0x248] sm:$0xff]
      %v2073 = vld [vmem:[%s1998 + $0x250] sm:$0xff]
      %v2074 = vld [vmem:[%s1998 + $0x258] sm:$0xff]
      %v2075 = vld [vmem:[%s1998 + $0x260] sm:$0xff]
      %v2076 = vld [vmem:[%s1998 + $0x268] sm:$0xff]
      %v2077 = vld [vmem:[%s1998 + $0x270] sm:$0xff]
      %v2078 = vld [vmem:[%s1998 + $0x278] sm:$0xff]
      %v2079 = vld [vmem:[%s1998 + $0x280] sm:$0xff]
      %v2080 = vld [vmem:[%s1998 + $0x288] sm:$0xff]
      %v2081 = vld [vmem:[%s1998 + $0x290] sm:$0xff]
      %v2082 = vld [vmem:[%s1998 + $0x298] sm:$0xff]
      %v2083 = vld [vmem:[%s1998 + $0x2a0] sm:$0xff]
      %v2084 = vld [vmem:[%s1998 + $0x2a8] sm:$0xff]
      %v2085 = vld [vmem:[%s1998 + $0x2b0] sm:$0xff]
      %v2086 = vld [vmem:[%s1998 + $0x2b8] sm:$0xff]
      %v2087 = vld [vmem:[%s1998 + $0x2c0] sm:$0xff]
      %v2088 = vld [vmem:[%s1998 + $0x2c8] sm:$0xff]
      %v2089 = vld [vmem:[%s1998 + $0x2d0] sm:$0xff]
      %v2090 = vld [vmem:[%s1998 + $0x2d8] sm:$0xff]
      %v2091 = vld [vmem:[%s1998 + $0x2e0] sm:$0xff]
      %v2092 = vld [vmem:[%s1998 + $0x2e8] sm:$0xff]
      %v2093 = vld [vmem:[%s1998 + $0x2f0] sm:$0xff]
      %v2094 = vld [vmem:[%s1998 + $0x2f8] sm:$0xff]
      %v2095 = vld [vmem:[%s1998 + $0x300] sm:$0xff]
      %v2096 = vld [vmem:[%s1998 + $0x308] sm:$0xff]
      %v2097 = vld [vmem:[%s1998 + $0x310] sm:$0xff]
      %v2098 = vld [vmem:[%s1998 + $0x318] sm:$0xff]
      %v2099 = vld [vmem:[%s1998 + $0x320] sm:$0xff]
      %v2100 = vld [vmem:[%s1998 + $0x328] sm:$0xff]
      %v2101 = vld [vmem:[%s1998 + $0x330] sm:$0xff]
      %v2102 = vld [vmem:[%s1998 + $0x338] sm:$0xff]
      %v2103 = vld [vmem:[%s1998 + $0x340] sm:$0xff]
      %v2104 = vld [vmem:[%s1998 + $0x348] sm:$0xff]
      %v2105 = vld [vmem:[%s1998 + $0x350] sm:$0xff]
      %v2106 = vld [vmem:[%s1998 + $0x358] sm:$0xff]
      %v2107 = vld [vmem:[%s1998 + $0x360] sm:$0xff]
      %v2108 = vld [vmem:[%s1998 + $0x368] sm:$0xff]
      %v2109 = vld [vmem:[%s1998 + $0x370] sm:$0xff]
      %v2110 = vld [vmem:[%s1998 + $0x378] sm:$0xff]
      %v2111 = vld [vmem:[%s1998 + $0x380] sm:$0xff]
      %v2112 = vld [vmem:[%s1998 + $0x388] sm:$0xff]
      %v2113 = vld [vmem:[%s1998 + $0x390] sm:$0xff]
      %v2114 = vld [vmem:[%s1998 + $0x398] sm:$0xff]
      %v2115 = vld [vmem:[%s1998 + $0x3a0] sm:$0xff]
      %v2116 = vld [vmem:[%s1998 + $0x3a8] sm:$0xff]
      %v2117 = vld [vmem:[%s1998 + $0x3b0] sm:$0xff]
      %v2118 = vld [vmem:[%s1998 + $0x3b8] sm:$0xff]
      %v2119 = vld [vmem:[%s1998 + $0x3c0] sm:$0xff]
      %v2120 = vld [vmem:[%s1998 + $0x3c8] sm:$0xff]
      %v2121 = vld [vmem:[%s1998 + $0x3d0] sm:$0xff]
      %v2122 = vld [vmem:[%s1998 + $0x3d8] sm:$0xff]
      %v2123 = vld [vmem:[%s1998 + $0x3e0] sm:$0xff]
      %v2124 = vld [vmem:[%s1998 + $0x3e8] sm:$0xff]
      %v2125 = vld [vmem:[%s1998 + $0x3f0] sm:$0xff]
      %v2126 = vld [vmem:[%s1998 + $0x3f8] sm:$0xff]
      %v2135 = vrot.slane %v1990, 2
      %v2136 = vrot.slane %v1373, 2
      %v2137 = vsel %vm1103, %v2135, %v2136
      %v2138 = vrot.slane %v1991, 2
      %v2139 = vrot.slane %v1374, 2
      %v2140 = vsel %vm1103, %v2138, %v2139
      %v2141 = vrot.slane %v1992, 2
      %v2142 = vrot.slane %v1375, 2
      %v2143 = vsel %vm1103, %v2141, %v2142
      %v2144 = vrot.slane %v1993, 2
      %v2145 = vrot.slane %v1376, 2
      %v2146 = vsel %vm1103, %v2144, %v2145
      %v2147 = vrot.slane %v1994, 2
      %v2148 = vsel %vm1103, %v2136, %v2147
      %v2149 = vrot.slane %v1995, 2
      %v2150 = vsel %vm1103, %v2139, %v2149
      %v2151 = vrot.slane %v1996, 2
      %v2152 = vsel %vm1103, %v2142, %v2151
      %v2153 = vrot.slane %v1997, 2
      %v2154 = vsel %vm1103, %v2145, %v2153
      %2163 = vmatprep.subr.mxu0 %v2000
      %2164 = vmatpush1.msra.mxu0 %v1999
      %2165 = vmatprep.subr.mxu0 %v2002
      %2166 = vmatpush1.msra.mxu0 %v2001
      %2167 = vmatprep.subr.mxu0 %v2004
      %2168 = vmatpush1.msra.mxu0 %v2003
      %2169 = vmatprep.subr.mxu0 %v2006
      %2170 = vmatpush1.msra.mxu0 %v2005
      %2171 = vmatprep.subr.mxu0 %v2008
      %2172 = vmatpush1.msra.mxu0 %v2007
      %2173 = vmatprep.subr.mxu0 %v2010
      %2174 = vmatpush1.msra.mxu0 %v2009
      %2175 = vmatprep.subr.mxu0 %v2012
      %2176 = vmatpush1.msra.mxu0 %v2011
      %2177 = vmatprep.subr.mxu0 %v2014
      %2178 = vmatpush1.msra.mxu0 %v2013
      %2179 = vmatprep.subr.mxu0 %v2016
      %2180 = vmatpush1.msra.mxu0 %v2015
      %2181 = vmatprep.subr.mxu0 %v2018
      %2182 = vmatpush1.msra.mxu0 %v2017
      %2183 = vmatprep.subr.mxu0 %v2020
      %2184 = vmatpush1.msra.mxu0 %v2019
      %2185 = vmatprep.subr.mxu0 %v2022
      %2186 = vmatpush1.msra.mxu0 %v2021
      %2187 = vmatprep.subr.mxu0 %v2024
      %2188 = vmatpush1.msra.mxu0 %v2023
      %2189 = vmatprep.subr.mxu0 %v2026
      %2190 = vmatpush1.msra.mxu0 %v2025
      %2191 = vmatprep.subr.mxu0 %v2028
      %2192 = vmatpush1.msra.mxu0 %v2027
      %2193 = vmatprep.subr.mxu0 %v2030
      %2194 = vmatpush1.msra.mxu0 %v2029
      %2195 = vmatprep.subr.mxu0 %v2032
      %2196 = vmatpush1.msra.mxu0 %v2031
      %2197 = vmatprep.subr.mxu0 %v2034
      %2198 = vmatpush1.msra.mxu0 %v2033
      %2199 = vmatprep.subr.mxu0 %v2036
      %2200 = vmatpush1.msra.mxu0 %v2035
      %2201 = vmatprep.subr.mxu0 %v2038
      %2202 = vmatpush1.msra.mxu0 %v2037
      %2203 = vmatprep.subr.mxu0 %v2040
      %2204 = vmatpush1.msra.mxu0 %v2039
      %2205 = vmatprep.subr.mxu0 %v2042
      %2206 = vmatpush1.msra.mxu0 %v2041
      %2207 = vmatprep.subr.mxu0 %v2044
      %2208 = vmatpush1.msra.mxu0 %v2043
      %2209 = vmatprep.subr.mxu0 %v2046
      %2210 = vmatpush1.msra.mxu0 %v2045
      %2211 = vmatprep.subr.mxu0 %v2048
      %2212 = vmatpush1.msra.mxu0 %v2047
      %2213 = vmatprep.subr.mxu0 %v2050
      %2214 = vmatpush1.msra.mxu0 %v2049
      %2215 = vmatprep.subr.mxu0 %v2052
      %2216 = vmatpush1.msra.mxu0 %v2051
      %2217 = vmatprep.subr.mxu0 %v2054
      %2218 = vmatpush1.msra.mxu0 %v2053
      %2219 = vmatprep.subr.mxu0 %v2056
      %2220 = vmatpush1.msra.mxu0 %v2055
      %2221 = vmatprep.subr.mxu0 %v2058
      %2222 = vmatpush1.msra.mxu0 %v2057
      %2223 = vmatprep.subr.mxu0 %v2060
      %2224 = vmatpush1.msra.mxu0 %v2059
      %2225 = vmatprep.subr.mxu0 %v2062
      %2226 = vmatpush1.msra.mxu0 %v2061
      %2227 = vmatprep.mubr.f32.mxu0 %v2140
      %2228 = vmatmul.mubr.f32.gmra.mrb[0].mxu0 %v2137
      %v2229 = vpop.f32.mrb[0].mxu0
      %v2230 = vadd.f32 0.0, %v2229
      %v2231 = vpop.f32.mrb[0].mxu0
      %v2232 = vadd.f32 0.0, %v2231
      %2233 = vmatprep.mubr.f32.mxu0 %v2150
      %2234 = vmatmul.mubr.f32.gmra.mrb[0].mxu0 %v2148
      %v2235 = vpop.f32.mrb[0].mxu0
      %v2236 = vadd.f32 0.0, %v2235
      %v2237 = vpop.f32.mrb[0].mxu0
      %v2238 = vadd.f32 0.0, %v2237
      %2239 = vdwg.mxu0
      %2240 = vmatprep.subr.mxu0 %v2064
      %2241 = vmatpush1.msra.mxu0 %v2063
      %2242 = vmatprep.subr.mxu0 %v2066
      %2243 = vmatpush1.msra.mxu0 %v2065
      %2244 = vmatprep.subr.mxu0 %v2068
      %2245 = vmatpush1.msra.mxu0 %v2067
      %2246 = vmatprep.subr.mxu0 %v2070
      %2247 = vmatpush1.msra.mxu0 %v2069
      %2248 = vmatprep.subr.mxu0 %v2072
      %2249 = vmatpush1.msra.mxu0 %v2071
      %2250 = vmatprep.subr.mxu0 %v2074
      %2251 = vmatpush1.msra.mxu0 %v2073
      %2252 = vmatprep.subr.mxu0 %v2076
      %2253 = vmatpush1.msra.mxu0 %v2075
      %2254 = vmatprep.subr.mxu0 %v2078
      %2255 = vmatpush1.msra.mxu0 %v2077
      %2256 = vmatprep.subr.mxu0 %v2080
      %2257 = vmatpush1.msra.mxu0 %v2079
      %2258 = vmatprep.subr.mxu0 %v2082
      %2259 = vmatpush1.msra.mxu0 %v2081
      %2260 = vmatprep.subr.mxu0 %v2084
      %2261 = vmatpush1.msra.mxu0 %v2083
      %2262 = vmatprep.subr.mxu0 %v2086
      %2263 = vmatpush1.msra.mxu0 %v2085
      %2264 = vmatprep.subr.mxu0 %v2088
      %2265 = vmatpush1.msra.mxu0 %v2087
      %2266 = vmatprep.subr.mxu0 %v2090
      %2267 = vmatpush1.msra.mxu0 %v2089
      %2268 = vmatprep.subr.mxu0 %v2092
      %2269 = vmatpush1.msra.mxu0 %v2091
      %2270 = vmatprep.subr.mxu0 %v2094
      %2271 = vmatpush1.msra.mxu0 %v2093
      %2272 = vmatprep.subr.mxu0 %v2096
      %2273 = vmatpush1.msra.mxu0 %v2095
      %2274 = vmatprep.subr.mxu0 %v2098
      %2275 = vmatpush1.msra.mxu0 %v2097
      %2276 = vmatprep.subr.mxu0 %v2100
      %2277 = vmatpush1.msra.mxu0 %v2099
      %2278 = vmatprep.subr.mxu0 %v2102
      %2279 = vmatpush1.msra.mxu0 %v2101
      %2280 = vmatprep.subr.mxu0 %v2104
      %2281 = vmatpush1.msra.mxu0 %v2103
      %2282 = vmatprep.subr.mxu0 %v2106
      %2283 = vmatpush1.msra.mxu0 %v2105
      %2284 = vmatprep.subr.mxu0 %v2108
      %2285 = vmatpush1.msra.mxu0 %v2107
      %2286 = vmatprep.subr.mxu0 %v2110
      %2287 = vmatpush1.msra.mxu0 %v2109
      %2288 = vmatprep.subr.mxu0 %v2112
      %2289 = vmatpush1.msra.mxu0 %v2111
      %2290 = vmatprep.subr.mxu0 %v2114
      %2291 = vmatpush1.msra.mxu0 %v2113
      %2292 = vmatprep.subr.mxu0 %v2116
      %2293 = vmatpush1.msra.mxu0 %v2115
      %2294 = vmatprep.subr.mxu0 %v2118
      %2295 = vmatpush1.msra.mxu0 %v2117
      %2296 = vmatprep.subr.mxu0 %v2120
      %2297 = vmatpush1.msra.mxu0 %v2119
      %2298 = vmatprep.subr.mxu0 %v2122
      %2299 = vmatpush1.msra.mxu0 %v2121
      %2300 = vmatprep.subr.mxu0 %v2124
      %2301 = vmatpush1.msra.mxu0 %v2123
      %2302 = vmatprep.subr.mxu0 %v2126
      %2303 = vmatpush1.msra.mxu0 %v2125
      %2304 = vmatprep.mubr.f32.mxu0 %v2146
      %2305 = vmatmul.mubr.f32.gmra.mrb[0].mxu0 %v2143
      %v2306 = vpop.f32.mrb[0].mxu0
      %v2307 = vadd.f32 %v2230, %v2306
      %v2308 = vpop.f32.mrb[0].mxu0
      %v2309 = vadd.f32 %v2232, %v2308
      %2310 = vmatprep.mubr.f32.mxu0 %v2154
      %2311 = vmatmul.mubr.f32.gmra.mrb[0].mxu0 %v2152
      %v2312 = vpop.f32.mrb[0].mxu0
      %v2313 = vadd.f32 %v2236, %v2312
      %v2314 = vpop.f32.mrb[0].mxu0
      %v2315 = vadd.f32 %v2238, %v2314
      %2316 = vdwg.mxu0
      %v2317 = vadd.f32 %v1980, %v2307
      %v2318 = vadd.f32 %v1982, %v2309
      %v2319 = vadd.f32 %v1986, %v2313
      %v2320 = vadd.f32 %v1988, %v2315
      %v2322 = vlaneseq
      %v2323 = vshrl.u32 %v2322, 7
      %v2324 = vsub.s32 0, %v2323
      %v2325 = vrot.slane %v1368, %v2324
      %v2326 = vlaneseq
      %v2327 = vshrl.u32 %v2326, 7
      %v2328 = vsub.s32 1, %v2327
      %v2329 = vrot.slane %v1368, %v2328
      %v2332 = vadd.f32 %v2317, %v2325
      %v2333 = vadd.f32 %v2318, %v2329
      %v2334 = vadd.f32 %v2319, %v2325
      %v2335 = vadd.f32 %v2320, %v2329
      %v2336 = vadd.f32 %v2332, %v2334
      %v2337 = vrot.slane %v2336, 4
      %v2338 = vadd.f32 %v2336, %v2337
      %v2339 = vrot.slane %v2338, 2
      %v2340 = vadd.f32 %v2338, %v2339
      %v2341 = vrot.slane %v2340, 1
      %v2342 = vadd.f32 %v2340, %v2341
      %v2343 = vadd.f32 %v2333, %v2335
      %v2344 = vrot.slane %v2343, 4
      %v2345 = vadd.f32 %v2343, %v2344
      %v2346 = vrot.slane %v2345, 2
      %v2347 = vadd.f32 %v2345, %v2346
      %v2348 = vrot.slane %v2347, 1
      %v2349 = vadd.f32 %v2347, %v2348
      %2351 = vrot.lane.b32.xlu0 %v2342, 112
      %v2352 = vpop.permute.xlu0 %2351
      %2354 = vrot.lane.b32.xlu0 %v2342, 96
      %v2355 = vpop.permute.xlu0 %2354
      %2357 = vrot.lane.b32.xlu0 %v2342, 80
      %v2358 = vpop.permute.xlu0 %2357
      %2360 = vrot.lane.b32.xlu0 %v2342, 64
      %v2361 = vpop.permute.xlu0 %2360
      %2363 = vrot.lane.b32.xlu0 %v2342, 48
      %v2364 = vpop.permute.xlu0 %2363
      %2366 = vrot.lane.b32.xlu0 %v2342, 32
      %v2367 = vpop.permute.xlu0 %2366
      %2369 = vrot.lane.b32.xlu0 %v2342, 16
      %v2370 = vpop.permute.xlu0 %2369
      %2373 = vrot.lane.b32.xlu0 %v2349, 112
      %v2374 = vpop.permute.xlu0 %2373
      %2376 = vrot.lane.b32.xlu0 %v2349, 96
      %v2377 = vpop.permute.xlu0 %2376
      %2379 = vrot.lane.b32.xlu0 %v2349, 80
      %v2380 = vpop.permute.xlu0 %2379
      %2382 = vrot.lane.b32.xlu0 %v2349, 64
      %v2383 = vpop.permute.xlu0 %2382
      %2385 = vrot.lane.b32.xlu0 %v2349, 48
      %v2386 = vpop.permute.xlu0 %2385
      %2388 = vrot.lane.b32.xlu0 %v2349, 32
      %v2389 = vpop.permute.xlu0 %2388
      %2391 = vrot.lane.b32.xlu0 %v2349, 16
      %v2392 = vpop.permute.xlu0 %2391
      %v2394 = vcombine.low %v2342, %v2355
      %v2396 = vunpack.c.l.s4 1983009808
      %v2397 = vunpack.c.0.s8 %v2396
      %v2398 = vlaneseq
      %v2399 = vshrl.u32 %v2398, 7
      %v2400 = vsub.s32 %v2397, %v2399
      %v2401 = vrot.slane %v2394, %v2400
      %v2402 = vcombine.low %v2352, %v2358
      %v2404 = vunpack.c.l.s4 1983009808
      %v2405 = vunpack.c.0.s8 %v2404
      %v2406 = vlaneseq
      %v2407 = vshrl.u32 %v2406, 7
      %v2408 = vsub.s32 %v2405, %v2407
      %v2409 = vrot.slane %v2402, %v2408
      %v2410 = vcombine.low %v2361, %v2367
      %v2412 = vunpack.c.l.s4 1983009808
      %v2413 = vunpack.c.0.s8 %v2412
      %v2414 = vlaneseq
      %v2415 = vshrl.u32 %v2414, 7
      %v2416 = vsub.s32 %v2413, %v2415
      %v2417 = vrot.slane %v2410, %v2416
      %v2418 = vcombine.low %v2364, %v2370
      %v2420 = vunpack.c.l.s4 1983009808
      %v2421 = vunpack.c.0.s8 %v2420
      %v2422 = vlaneseq
      %v2423 = vshrl.u32 %v2422, 7
      %v2424 = vsub.s32 %v2421, %v2423
      %v2425 = vrot.slane %v2418, %v2424
      %v2426 = vcombine.low %v2401, %v2409
      %v2428 = vunpack.c.l.s4 1934713408
      %v2429 = vunpack.c.0.s8 %v2428
      %v2430 = vlaneseq
      %v2431 = vshrl.u32 %v2430, 7
      %v2432 = vsub.s32 %v2429, %v2431
      %v2433 = vrot.slane %v2426, %v2432
      %v2434 = vcombine.low %v2417, %v2425
      %v2436 = vunpack.c.l.s4 1934713408
      %v2437 = vunpack.c.0.s8 %v2436
      %v2438 = vlaneseq
      %v2439 = vshrl.u32 %v2438, 7
      %v2440 = vsub.s32 %v2437, %v2439
      %v2441 = vrot.slane %v2434, %v2440
      %v2442 = vcombine.low %v2433, %v2441
      %v2443 = vcombine.low %v2349, %v2377
      %v2445 = vunpack.c.l.s4 1983009808
      %v2446 = vunpack.c.0.s8 %v2445
      %v2447 = vlaneseq
      %v2448 = vshrl.u32 %v2447, 7
      %v2449 = vsub.s32 %v2446, %v2448
      %v2450 = vrot.slane %v2443, %v2449
      %v2451 = vcombine.low %v2374, %v2380
      %v2453 = vunpack.c.l.s4 1983009808
      %v2454 = vunpack.c.0.s8 %v2453
      %v2455 = vlaneseq
      %v2456 = vshrl.u32 %v2455, 7
      %v2457 = vsub.s32 %v2454, %v2456
      %v2458 = vrot.slane %v2451, %v2457
      %v2459 = vcombine.low %v2383, %v2389
      %v2461 = vunpack.c.l.s4 1983009808
      %v2462 = vunpack.c.0.s8 %v2461
      %v2463 = vlaneseq
      %v2464 = vshrl.u32 %v2463, 7
      %v2465 = vsub.s32 %v2462, %v2464
      %v2466 = vrot.slane %v2459, %v2465
      %v2467 = vcombine.low %v2386, %v2392
      %v2469 = vunpack.c.l.s4 1983009808
      %v2470 = vunpack.c.0.s8 %v2469
      %v2471 = vlaneseq
      %v2472 = vshrl.u32 %v2471, 7
      %v2473 = vsub.s32 %v2470, %v2472
      %v2474 = vrot.slane %v2467, %v2473
      %v2475 = vcombine.low %v2450, %v2458
      %v2477 = vunpack.c.l.s4 1934713408
      %v2478 = vunpack.c.0.s8 %v2477
      %v2479 = vlaneseq
      %v2480 = vshrl.u32 %v2479, 7
      %v2481 = vsub.s32 %v2478, %v2480
      %v2482 = vrot.slane %v2475, %v2481
      %v2483 = vcombine.low %v2466, %v2474
      %v2485 = vunpack.c.l.s4 1934713408
      %v2486 = vunpack.c.0.s8 %v2485
      %v2487 = vlaneseq
      %v2488 = vshrl.u32 %v2487, 7
      %v2489 = vsub.s32 %v2486, %v2488
      %v2490 = vrot.slane %v2483, %v2489
      %v2491 = vcombine.low %v2482, %v2490
      %vm2492 = vcmask 130048
      %v2493 = vsel %vm2492, %v2442, 0.0
      %v2494 = vsel %vm2492, %v2491, 0.0
      %v2495 = vadd.f32 %v2493, %v2494
      %v2496 = vrot.slane %v2495, 4
      %v2497 = vadd.f32 %v2495, %v2496
      %v2498 = vrot.slane %v2497, 2
      %v2499 = vadd.f32 %v2497, %v2498
      %v2500 = vrot.slane %v2499, 1
      %v2501 = vadd.f32 %v2499, %v2500
      %v2502 = vmul.f32 %v2501, 0.00390625
      %v2503 = vld [vmem:[%s5] sm:$0x1]
      %v2504 = vmul.f32 %v2502, %v2503
      %vm2505 = vcmask 122880
      %v2506 = vsel %vm2505, %v2504, 0.0
      %2507 = vadd.xlane.f32.xlu0 %v2506
      %v2508 = vpop.xlane.xlu0 %2507
      %v2509 = vld [vmem:[#allocation4] sm:$0x1]
      %v2510 = vadd.f32 %v2508, %v2509
      %v2511 = vmax.f32 %v2510, 0.0
      %v2512 = vld [vmem:[%s7] sm:$0x1]
      %2514 = vset.pattern.permute.xlu0 0
      %2515 = vperm.xlu0 %2514, %v2511
      %v2516 = vpop.permute.xlu0 %2515
      %v2518 = vmul.f32 %v2516, %v2512
      %v2519 = vadd.f32 %v2518, 0.0
      %v2520 = vld [vmem:[%s8] sm:$0x1]
      %v2521 = vadd.f32 %v2519, %v2520
      %v2522 = vxor.u32 %v2521, 2147483648
      %v2523 = vmul.f32 %v2522, 1.442695
      %v2524 = vpow.pop %v2523
      %v2525 = vadd.f32 %v2524, 1.0
      %v2526 = vrcp.pop %v2525
      %v2527 = vmul.f32 1.0, %v2526
      %2529 = vrot.lane.b32.xlu0 %v2527, 16
      %v2530 = vpop.permute.xlu0 %2529
      %2532 = vrot.lane.b32.xlu0 %v2527, 32
      %v2533 = vpop.permute.xlu0 %2532
      %2535 = vrot.lane.b32.xlu0 %v2527, 48
      %v2536 = vpop.permute.xlu0 %2535
      %2538 = vrot.lane.b32.xlu0 %v2527, 64
      %v2539 = vpop.permute.xlu0 %2538
      %2541 = vrot.lane.b32.xlu0 %v2527, 80
      %v2542 = vpop.permute.xlu0 %2541
      %2544 = vrot.lane.b32.xlu0 %v2527, 96
      %v2545 = vpop.permute.xlu0 %2544
      %2547 = vrot.lane.b32.xlu0 %v2527, 112
      %v2548 = vpop.permute.xlu0 %2547
      %v2550 = vsel %vm2492, %v2527, %v2530
      %vm2551 = vcmask 261120
      %v2552 = vsel %vm2551, %v2550, %v2533
      %vm2553 = vcmask 392192
      %v2554 = vsel %vm2553, %v2552, %v2536
      %vm2555 = vcmask 523264
      %v2556 = vsel %vm2555, %v2554, %v2539
      %vm2557 = vcmask 654336
      %v2558 = vsel %vm2557, %v2556, %v2542
      %vm2559 = vcmask 785408
      %v2560 = vsel %vm2559, %v2558, %v2545
      %vm2561 = vcmask 916480
      %v2562 = vsel %vm2561, %v2560, %v2548
      %v2563 = vlaneseq
      %v2564 = vshrl.u32 %v2563, 7
      %v2565 = vsub.s32 0, %v2564
      %v2566 = vrot.slane %v2562, %v2565
      %v2567 = vmul.f32 %v2332, %v2566
      %v2568 = vmul.f32 %v2333, %v2566
      %v2569 = vmul.f32 %v2334, %v2566
      %v2570 = vmul.f32 %v2335, %v2566
      %v2571 = vld [vmem:[%s329] sm:$0xff]
      %v2572 = vld [vmem:[%s329 + $0x8] sm:$0xff]
      %v2573 = vld [vmem:[%s329 + $0x10] sm:$0xff]
      %v2574 = vld [vmem:[%s329 + $0x18] sm:$0xff]
      %v2575 = vadd.f32 %v2567, %v2571
      %v2576 = vadd.f32 %v2568, %v2572
      %v2577 = vadd.f32 %v2569, %v2573
      %v2578 = vadd.f32 %v2570, %v2574
      %2579 = vst [vmem:[%s334] sm:$0xff] %v2575
      %2580 = vst [vmem:[%s334 + $0x8] sm:$0xff] %v2576
      %2581 = vst [vmem:[%s334 + $0x10] sm:$0xff] %v2577
      %2582 = vst [vmem:[%s334 + $0x18] sm:$0xff] %v2578
      %p2583 = scmp.lt.s32.totalorder %s22, 1
      %s2584 = scalar_select %p2583, %s22, 1
      %s2585 = smul.addr %s2584, 4
      %s2586 = smul.addr %s2585, 8
      %s2587 = scalar_lea.vmem %s9, %s2586
      // Predicated region
      $region57: #{residual_block_pallas.1} parent=55 // pred_check
        %p2588 = pneg %p234
      $region58: #{residual_block_pallas.1} parent=55 // pred_check_branch
        %2590 = sbr.rel (%p2588) target = $region60
      $region59: #{residual_block_pallas.1} parent=55 // pred_region
        _
      $region60: #{residual_block_pallas.1} parent=55 // pred_fallthru
        _
    $region56: #{residual_block_pallas.1} parent=5 // pred_fallthru
      _
    %p2591 = scmp.le.s32.totalorder 2, %s17
    // Predicated region
    $region61: #{residual_block_pallas.1} parent=5 // pred_check
      %p2592 = pneg %p2591
    $region62: #{residual_block_pallas.1} parent=5 // pred_check_branch
      %2594 = sbr.rel (%p2592) target = $region64
    $region63: #{residual_block_pallas.1} parent=5 // pred_region
      %s2595 = ssub.s32 %s17, 2
      // Predicated region
      $region65: #{residual_block_pallas.1} parent=63 // pred_check
        %p2596 = pneg %p240
      $region66: #{residual_block_pallas.1} parent=63 // pred_check_branch
        %2598 = sbr.rel (%p2596) target = $region68
      $region67: #{residual_block_pallas.1} parent=63 // pred_region
        %p2599 = scmp.lt.s32.totalorder %s23, 1
        %s2600 = scalar_select %p2599, %s23, 1
        %s2601 = smul.addr %s2600, 4
        %s2602 = smul.addr %s2601, 8
        %s2603 = scalar_lea.vmem %s9, %s2602
      $region68: #{residual_block_pallas.1} parent=63 // pred_fallthru
        _
    $region64: #{residual_block_pallas.1} parent=5 // pred_fallthru
      _
  $region6: #{residual_block_pallas.1} parent=0 // loop_footer
    %s21 = sadd.s32 1, %s17
  $region7: #{residual_block_pallas.1} parent=0 // loop_footer_branch
    %16 = sbr.rel target = $region3
  $region8: #{residual_block_pallas.1} parent=0 // loop_exit
    _

</llo_original>
